<compile_context>
chip_gen: v6e
topology: v6e:2x2x1
jax: 0.10.0
libtpu: 0.0.40
codegen_flags: <defaults>
</compile_context>

<pallas_src>
import functools

import jax
import jax.numpy as jnp
from jax.experimental import pallas as pl
from jax.experimental.pallas import tpu as pltpu


# ----------------------------- Pallas kernels ------------------------------ #

def conv_bn_relu_pool_kernel(p_ref, w_ref, shift_ref, o_ref):
    """conv (im2col matmul, BN scale folded into w) + shift + ReLU + 2x2 maxpool.

    p_ref:     (4*M, K) -- the four 2x2 pool positions stacked along rows
    w_ref:     (K, C)   -- all four branches' weights concatenated along C
    shift_ref: (1, C)   -- folded conv-bias + BN shift (applied once, after max)
    o_ref:     (M, C)
    """
    m = o_ref.shape[0]
    d = jnp.dot(p_ref[...], w_ref[...], preferred_element_type=jnp.float32)
    pooled = jnp.maximum(jnp.maximum(d[0:m], d[m:2 * m]),
                         jnp.maximum(d[2 * m:3 * m], d[3 * m:4 * m]))
    o_ref[...] = jnp.maximum(pooled + shift_ref[...], 0.0).astype(o_ref.dtype)


def conv_pool_fc_kernel(p_ref, w2_ref, shift2_ref, wfc_ref, bfc_ref, o_ref,
                        y2_ref):
    """Layer-2 conv/BN/ReLU/pool fused with the four FC heads.

    p_ref:      (4*M2, K2) stacked pool-position patches; rows ordered (a2,b2,n)
    w2_ref:     (K2, C2)   branch-block conv weights (BN scale folded in)
    shift2_ref: (1, C2)
    wfc_ref:    ((M2/N)*C2, 16) block-diagonal FC weights, rows ordered (s,br,c)
    bfc_ref:    (1, 16)
    o_ref:      (N, 16)    4 branches x 4 logits
    y2_ref:     VMEM scratch (M2, C2) -- pooled activation stays in VMEM
    """
    m2, c2 = y2_ref.shape
    n, nout = o_ref.shape

    d = jnp.dot(p_ref[...], w2_ref[...], preferred_element_type=jnp.float32)
    pooled = jnp.maximum(jnp.maximum(d[0:m2], d[m2:2 * m2]),
                         jnp.maximum(d[2 * m2:3 * m2], d[3 * m2:4 * m2]))
    y2_ref[...] = jnp.maximum(pooled + shift2_ref[...], 0.0)

    # Fused Linear heads: each spatial position s is a contiguous N-row slice of
    # y2 (rows are (a2, b2, n)); accumulate its (N, C2) x (C2, 16) contribution.
    acc = jnp.zeros((n, nout), jnp.float32)
    for s in range(m2 // n):  # static unroll over the 16 pooled spatial positions
        acc += jnp.dot(y2_ref[s * n:(s + 1) * n, :],
                       wfc_ref[s * c2:(s + 1) * c2, :],
                       preferred_element_type=jnp.float32)
    o_ref[...] = (acc + bfc_ref[...]).astype(o_ref.dtype)


# ------------------------------ Pallas wrappers ----------------------------- #

def conv_bn_relu_pool(patches, w, shift, m_rows):
    fm, k = patches.shape
    c = w.shape[1]
    return pl.pallas_call(
        conv_bn_relu_pool_kernel,
        out_shape=jax.ShapeDtypeStruct((m_rows, c), jnp.float32),
        grid=(1,),
        in_specs=[
            pl.BlockSpec((fm, k), lambda i: (0, 0)),
            pl.BlockSpec((k, c), lambda i: (0, 0)),
            pl.BlockSpec((1, c), lambda i: (0, 0)),
        ],
        out_specs=pl.BlockSpec((m_rows, c), lambda i: (0, 0)),
    )(patches, w, shift)


def conv_pool_fc(patches, w2, shift2, wfc, bfc, n, m2):
    fm, kdim = patches.shape
    c2 = w2.shape[1]
    flat_dim, nout = wfc.shape
    assert flat_dim == (m2 // n) * c2
    return pl.pallas_call(
        conv_pool_fc_kernel,
        out_shape=jax.ShapeDtypeStruct((n, nout), jnp.float32),
        grid=(1,),
        in_specs=[
            pl.BlockSpec((fm, kdim), lambda i: (0, 0)),
            pl.BlockSpec((kdim, c2), lambda i: (0, 0)),
            pl.BlockSpec((1, c2), lambda i: (0, 0)),
            pl.BlockSpec((flat_dim, nout), lambda i: (0, 0)),
            pl.BlockSpec((1, nout), lambda i: (0, 0)),
        ],
        out_specs=pl.BlockSpec((n, nout), lambda i: (0, 0)),
        scratch_shapes=[pltpu.VMEM((m2, c2), jnp.float32)],
    )(patches, w2, shift2, wfc, bfc)


# ------------------------------- JAX glue ----------------------------------- #

def build_pool_patches(x_nhwc, ksize, pad, row_order):
    """im2col patches for conv(ksize, pad=2) grouped by 2x2 max-pool position.

    Returns (patches, (n, ho, wo)) with patches: (4*n*ho*wo, ksize*ksize*C).
    The 4 row blocks are the 2x2 pool positions; K is ordered (ki, kj, C).
    row_order: "nhw" -> rows (n, ho, wo); "hwn" -> rows (ho, wo, n).
    """
    n, h, w, c = x_nhwc.shape
    hc = h + 2 * pad - ksize + 1
    wc = w + 2 * pad - ksize + 1
    assert hc % 2 == 0 and wc % 2 == 0, "conv output must be even for 2x2 pool"
    xp = jnp.pad(x_nhwc, ((0, 0), (pad, pad), (pad, pad), (0, 0)))
    cols = [xp[:, i:i + hc, j:j + wc, :]
            for i in range(ksize) for j in range(ksize)]
    pat = jnp.concatenate(cols, axis=-1)           # (n, hc, wc, k*k*c)
    kdim = ksize * ksize * c
    blocks = []
    for pi in (0, 1):
        for pj in (0, 1):
            s = pat[:, pi::2, pj::2, :]            # (n, ho, wo, kdim)
            if row_order == "hwn":
                s = jnp.transpose(s, (1, 2, 0, 3))
            blocks.append(s.reshape(-1, kdim))
    return jnp.concatenate(blocks, axis=0), (n, hc // 2, wc // 2)


def init_params(key, dims, filters, kernel_sizes):
    h, w, cin0 = dims
    f1, f2 = filters
    k1, k2 = kernel_sizes
    eps = 1e-5
    names = ["colour", "counts", "fill", "shape"]
    nb = len(names)
    ho1 = (h + 4 - k1 + 1) // 2
    wo1 = (w + 4 - k1 + 1) // 2
    ho2 = (ho1 + 4 - k2 + 1) // 2
    wo2 = (wo1 + 4 - k2 + 1) // 2
    s2 = ho2 * wo2                                   # pooled spatial positions (16)

    def conv_bn(key, cin, cout, k):
        key, a, b, c, d, e = jax.random.split(key, 6)
        wt = 0.1 * jax.random.normal(a, (cout, cin, k, k), jnp.float32)  # torch layout
        conv_b = 0.1 * jax.random.normal(b, (cout,), jnp.float32)
        gamma = 1.0 + 0.1 * jax.random.normal(c, (cout,), jnp.float32)
        beta = 0.1 * jax.random.normal(d, (cout,), jnp.float32)
        rmean = 0.1 * jax.random.normal(e, (cout,), jnp.float32)
        rvar = jnp.ones((cout,), jnp.float32)
        scale = gamma / jnp.sqrt(rvar + eps)
        shift = (conv_b - rmean) * scale + beta
        # (ki, kj, cin, cout) matmul layout matching im2col K order, with the
        # BN scale folded into the weight columns (always safe, sign-wise).
        wmat = jnp.transpose(wt, (2, 3, 1, 0)) * scale
        return key, wmat, shift

    w1_cols, sh1_cols, sh2_cols, bfc_cols = [], [], [], []
    w2_blocks = jnp.zeros((k2 * k2, nb, f1, nb, f2), jnp.float32)
    wfc_blocks = jnp.zeros((s2, nb, f2, nb * 4), jnp.float32)

    for br in range(nb):
        # layer 1 (branch weights concatenated along Cout)
        key, wm1, sh1 = conv_bn(key, cin0, f1, k1)
        w1_cols.append(wm1.reshape(k1 * k1 * cin0, f1))
        sh1_cols.append(sh1)
        # layer 2 (block-structured: zero across branches)
        key, wm2, sh2v = conv_bn(key, f1, f2, k2)
        w2_blocks = w2_blocks.at[:, br, :, br, :].set(wm2.reshape(k2 * k2, f1, f2))
        sh2_cols.append(sh2v)
        # FC head (block-diagonal, input rows re-laid as (spatial, channel))
        key, kf1, kf2 = jax.random.split(key, 3)
        fw = 0.05 * jax.random.normal(kf1, (4, f2 * s2), jnp.float32)  # torch (out, in)
        fb = 0.05 * jax.random.normal(kf2, (4,), jnp.float32)
        blk = jnp.transpose(fw.reshape(4, f2, s2), (2, 1, 0))          # (s, c, out)
        wfc_blocks = wfc_blocks.at[:, br, :, br * 4:(br + 1) * 4].set(blk)
        bfc_cols.append(fb)

    return dict(
        w1=jnp.concatenate(w1_cols, axis=1),                    # (k*k*cin, 4*f1)
        shift1=jnp.concatenate(sh1_cols).reshape(1, nb * f1),
        w2=w2_blocks.reshape(k2 * k2 * nb * f1, nb * f2),       # (k*k*4*f1, 4*f2)
        shift2=jnp.concatenate(sh2_cols).reshape(1, nb * f2),
        wfc=wfc_blocks.reshape(s2 * nb * f2, nb * 4),           # (s2*4*f2, 16)
        bfc=jnp.concatenate(bfc_cols).reshape(1, nb * 4),
    )


def convnet_forward(params, x_nchw, dims, filters, kernel_sizes):
    del dims
    n = x_nchw.shape[0]
    nb = 4
    f1, _ = filters
    x = jnp.transpose(x_nchw, (0, 2, 3, 1)).astype(jnp.float32)   # NHWC

    # layer 1: all 4 branches fused into ONE kernel (Cout = 4*f1 = 32 lanes)
    p1, (_, ho1, wo1) = build_pool_patches(x, kernel_sizes[0], 2, row_order="nhw")
    y1 = conv_bn_relu_pool(p1, params["w1"], params["shift1"], n * ho1 * wo1)
    act = y1.reshape(n, ho1, wo1, nb * f1)

    # layer 2 + 4 FC heads: all branches fused into ONE kernel
    p2, (_, ho2, wo2) = build_pool_patches(act, kernel_sizes[1], 2, row_order="hwn")
    out16 = conv_pool_fc(p2, params["w2"], params["shift2"],
                         params["wfc"], params["bfc"], n, n * ho2 * wo2)
    return [out16[:, 4 * b:4 * (b + 1)] for b in range(4)]


if __name__ == "__main__":
    # dims follows the PyTorch module: (H, W, C)
    dims = (16, 16, 4)
    filters = (8, 16)
    kernel_sizes = (5, 5)      # padding=2 -> spatial-preserving convs
    batch = 2

    key = jax.random.PRNGKey(0)
    kp, kx = jax.random.split(key)
    params = init_params(kp, dims, filters, kernel_sizes)
    # input is NCHW, shape (2, 4, 16, 16)
    x = jax.random.normal(kx, (batch, dims[2], dims[0], dims[1]), jnp.float32)

    fwd = jax.jit(functools.partial(
        convnet_forward, dims=dims, filters=filters, kernel_sizes=kernel_sizes))
    outs = jax.block_until_ready(fwd(params, x))

    assert len(outs) == 4
    assert all(o.shape == (batch, 4) for o in outs)
    assert all(bool(jnp.all(jnp.isfinite(o))) for o in outs)
    print("KERNEL_OK")
</pallas_src>

<mosaic_0001>
module attributes {stable_mosaic.version = 11 : i64} {
  func.func @conv_bn_relu_pool_kernel(%arg0: i32, %arg1: memref<512x100xf32, #tpu.memory_space<vmem>>, %arg2: memref<100x32xf32, #tpu.memory_space<vmem>>, %arg3: memref<1x32xf32, #tpu.memory_space<vmem>>, %arg4: memref<128x32xf32, #tpu.memory_space<vmem>>) attributes {dimension_semantics = [#tpu.dimension_semantics<arbitrary>], iteration_bounds = array<i64: 1>, scalar_prefetch = 0 : i64, scratch_operands = 0 : i64, tpu.core_type = #tpu.core_type<tc>, window_params = [{pipeline_mode = #tpu.pipeline_mode<synchronous>, transform_indices = @transform_0, window_bounds = array<i64: 512, 100>}, {pipeline_mode = #tpu.pipeline_mode<synchronous>, transform_indices = @transform_1, window_bounds = array<i64: 100, 32>}, {pipeline_mode = #tpu.pipeline_mode<synchronous>, transform_indices = @transform_2, window_bounds = array<i64: 1, 32>}, {pipeline_mode = #tpu.pipeline_mode<synchronous>, transform_indices = @transform_3, window_bounds = array<i64: 128, 32>}]} {
    %c0 = arith.constant 0 : index
    %c0_0 = arith.constant 0 : index
    %0 = vector.load %arg1[%c0, %c0_0] : memref<512x100xf32, #tpu.memory_space<vmem>>, vector<512x100xf32>
    %c0_1 = arith.constant 0 : index
    %c0_2 = arith.constant 0 : index
    %1 = vector.load %arg2[%c0_1, %c0_2] : memref<100x32xf32, #tpu.memory_space<vmem>>, vector<100x32xf32>
    %cst = arith.constant dense<0.000000e+00> : vector<512x32xf32>
    %2 = tpu.matmul %0, %1, %cst {dimension_numbers = #tpu.dot_dimension_numbers<[1], [0], [0], [1], [0, 0, 1, 1], [], []>} : vector<512x100xf32>, vector<100x32xf32>, vector<512x32xf32> -> vector<512x32xf32>
    %3 = vector.extract_strided_slice %2 {offsets = [0, 0], sizes = [128, 32], strides = [1, 1]} : vector<512x32xf32> to vector<128x32xf32>
    %4 = vector.extract_strided_slice %2 {offsets = [128, 0], sizes = [128, 32], strides = [1, 1]} : vector<512x32xf32> to vector<128x32xf32>
    %5 = arith.maximumf %3, %4 : vector<128x32xf32>
    %6 = vector.extract_strided_slice %2 {offsets = [256, 0], sizes = [128, 32], strides = [1, 1]} : vector<512x32xf32> to vector<128x32xf32>
    %7 = vector.extract_strided_slice %2 {offsets = [384, 0], sizes = [128, 32], strides = [1, 1]} : vector<512x32xf32> to vector<128x32xf32>
    %8 = arith.maximumf %6, %7 : vector<128x32xf32>
    %9 = arith.maximumf %5, %8 : vector<128x32xf32>
    %c0_3 = arith.constant 0 : index
    %c0_4 = arith.constant 0 : index
    %10 = vector.load %arg3[%c0_3, %c0_4] : memref<1x32xf32, #tpu.memory_space<vmem>>, vector<1x32xf32>
    %11 = vector.broadcast %10 : vector<1x32xf32> to vector<128x32xf32>
    %12 = arith.addf %9, %11 : vector<128x32xf32>
    %cst_5 = arith.constant 0.000000e+00 : f32
    %13 = vector.broadcast %cst_5 : f32 to vector<128x32xf32>
    %14 = arith.maximumf %12, %13 : vector<128x32xf32>
    %c0_6 = arith.constant 0 : index
    %c0_7 = arith.constant 0 : index
    %15 = vector.load %arg4[%c0_6, %c0_7] : memref<128x32xf32, #tpu.memory_space<vmem>>, vector<128x32xf32>
    tpu.vector_store %arg4[%c0_6, %c0_7], %14 {strides = array<i32>} : memref<128x32xf32, #tpu.memory_space<vmem>>, vector<128x32xf32>,
    return
  }
  func.func @transform_0(%arg0: i32) -> (i32, i32) {
    %c0_i32 = arith.constant 0 : i32
    %c0_i32_0 = arith.constant 0 : i32
    %c0_i32_1 = arith.constant 0 : i32
    return %c0_i32, %c0_i32_0 : i32, i32
  }
  func.func @transform_1(%arg0: i32) -> (i32, i32) {
    %c0_i32 = arith.constant 0 : i32
    %c0_i32_0 = arith.constant 0 : i32
    %c0_i32_1 = arith.constant 0 : i32
    return %c0_i32, %c0_i32_0 : i32, i32
  }
  func.func @transform_2(%arg0: i32) -> (i32, i32) {
    %c0_i32 = arith.constant 0 : i32
    %c0_i32_0 = arith.constant 0 : i32
    %c0_i32_1 = arith.constant 0 : i32
    return %c0_i32, %c0_i32_0 : i32, i32
  }
  func.func @transform_3(%arg0: i32) -> (i32, i32) {
    %c0_i32 = arith.constant 0 : i32
    %c0_i32_0 = arith.constant 0 : i32
    %c0_i32_1 = arith.constant 0 : i32
    return %c0_i32, %c0_i32_0 : i32, i32
  }
}

module attributes {stable_mosaic.version = 11 : i64} {
  func.func @conv_pool_fc_kernel(%arg0: i32, %arg1: memref<128x800xf32, #tpu.memory_space<vmem>>, %arg2: memref<800x64xf32, #tpu.memory_space<vmem>>, %arg3: memref<1x64xf32, #tpu.memory_space<vmem>>, %arg4: memref<1024x16xf32, #tpu.memory_space<vmem>>, %arg5: memref<1x16xf32, #tpu.memory_space<vmem>>, %arg6: memref<2x16xf32, #tpu.memory_space<vmem>>, %arg7: memref<32x64xf32, #tpu.memory_space<vmem>>) attributes {dimension_semantics = [#tpu.dimension_semantics<arbitrary>], iteration_bounds = array<i64: 1>, scalar_prefetch = 0 : i64, scratch_operands = 1 : i64, tpu.core_type = #tpu.core_type<tc>, window_params = [{pipeline_mode = #tpu.pipeline_mode<synchronous>, transform_indices = @transform_0, window_bounds = array<i64: 128, 800>}, {pipeline_mode = #tpu.pipeline_mode<synchronous>, transform_indices = @transform_1, window_bounds = array<i64: 800, 64>}, {pipeline_mode = #tpu.pipeline_mode<synchronous>, transform_indices = @transform_2, window_bounds = array<i64: 1, 64>}, {pipeline_mode = #tpu.pipeline_mode<synchronous>, transform_indices = @transform_3, window_bounds = array<i64: 1024, 16>}, {pipeline_mode = #tpu.pipeline_mode<synchronous>, transform_indices = @transform_4, window_bounds = array<i64: 1, 16>}, {pipeline_mode = #tpu.pipeline_mode<synchronous>, transform_indices = @transform_5, window_bounds = array<i64: 2, 16>}]} {
    %c0 = arith.constant 0 : index
    %c0_0 = arith.constant 0 : index
    %0 = vector.load %arg1[%c0, %c0_0] : memref<128x800xf32, #tpu.memory_space<vmem>>, vector<128x800xf32>
    %c0_1 = arith.constant 0 : index
    %c0_2 = arith.constant 0 : index
    %1 = vector.load %arg2[%c0_1, %c0_2] : memref<800x64xf32, #tpu.memory_space<vmem>>, vector<800x64xf32>
    %cst = arith.constant dense<0.000000e+00> : vector<128x64xf32>
    %2 = tpu.matmul %0, %1, %cst {dimension_numbers = #tpu.dot_dimension_numbers<[1], [0], [0], [1], [0, 0, 1, 1], [], []>} : vector<128x800xf32>, vector<800x64xf32>, vector<128x64xf32> -> vector<128x64xf32>
    %3 = vector.extract_strided_slice %2 {offsets = [0, 0], sizes = [32, 64], strides = [1, 1]} : vector<128x64xf32> to vector<32x64xf32>
    %4 = vector.extract_strided_slice %2 {offsets = [32, 0], sizes = [32, 64], strides = [1, 1]} : vector<128x64xf32> to vector<32x64xf32>
    %5 = arith.maximumf %3, %4 : vector<32x64xf32>
    %6 = vector.extract_strided_slice %2 {offsets = [64, 0], sizes = [32, 64], strides = [1, 1]} : vector<128x64xf32> to vector<32x64xf32>
    %7 = vector.extract_strided_slice %2 {offsets = [96, 0], sizes = [32, 64], strides = [1, 1]} : vector<128x64xf32> to vector<32x64xf32>
    %8 = arith.maximumf %6, %7 : vector<32x64xf32>
    %9 = arith.maximumf %5, %8 : vector<32x64xf32>
    %c0_3 = arith.constant 0 : index
    %c0_4 = arith.constant 0 : index
    %10 = vector.load %arg3[%c0_3, %c0_4] : memref<1x64xf32, #tpu.memory_space<vmem>>, vector<1x64xf32>
    %11 = vector.broadcast %10 : vector<1x64xf32> to vector<32x64xf32>
    %12 = arith.addf %9, %11 : vector<32x64xf32>
    %cst_5 = arith.constant 0.000000e+00 : f32
    %13 = vector.broadcast %cst_5 : f32 to vector<32x64xf32>
    %14 = arith.maximumf %12, %13 : vector<32x64xf32>
    %c0_6 = arith.constant 0 : index
    %c0_7 = arith.constant 0 : index
    %15 = vector.load %arg7[%c0_6, %c0_7] : memref<32x64xf32, #tpu.memory_space<vmem>>, vector<32x64xf32>
    tpu.vector_store %arg7[%c0_6, %c0_7], %14 {strides = array<i32>} : memref<32x64xf32, #tpu.memory_space<vmem>>, vector<32x64xf32>,
    %cst_8 = arith.constant 0.000000e+00 : f32
    %16 = vector.broadcast %cst_8 : f32 to vector<2x16xf32>
    %c0_9 = arith.constant 0 : index
    %c0_10 = arith.constant 0 : index
    %17 = vector.load %arg7[%c0_9, %c0_10] : memref<32x64xf32, #tpu.memory_space<vmem>>, vector<2x64xf32>
    %c0_11 = arith.constant 0 : index
    %c0_12 = arith.constant 0 : index
    %18 = vector.load %arg4[%c0_11, %c0_12] : memref<1024x16xf32, #tpu.memory_space<vmem>>, vector<64x16xf32>
    %cst_13 = arith.constant dense<0.000000e+00> : vector<2x16xf32>
    %19 = tpu.matmul %17, %18, %cst_13 {dimension_numbers = #tpu.dot_dimension_numbers<[1], [0], [0], [1], [0, 0, 1, 1], [], []>} : vector<2x64xf32>, vector<64x16xf32>, vector<2x16xf32> -> vector<2x16xf32>
    %20 = arith.addf %16, %19 : vector<2x16xf32>
    %c2 = arith.constant 2 : index
    %c0_14 = arith.constant 0 : index
    %21 = vector.load %arg7[%c2, %c0_14] : memref<32x64xf32, #tpu.memory_space<vmem>>, vector<2x64xf32>
    %c64 = arith.constant 64 : index
    %c0_15 = arith.constant 0 : index
    %22 = vector.load %arg4[%c64, %c0_15] : memref<1024x16xf32, #tpu.memory_space<vmem>>, vector<64x16xf32>
    %cst_16 = arith.constant dense<0.000000e+00> : vector<2x16xf32>
    %23 = tpu.matmul %21, %22, %cst_16 {dimension_numbers = #tpu.dot_dimension_numbers<[1], [0], [0], [1], [0, 0, 1, 1], [], []>} : vector<2x64xf32>, vector<64x16xf32>, vector<2x16xf32> -> vector<2x16xf32>
    %24 = arith.addf %20, %23 : vector<2x16xf32>
    %c4 = arith.constant 4 : index
    %c0_17 = arith.constant 0 : index
    %25 = vector.load %arg7[%c4, %c0_17] : memref<32x64xf32, #tpu.memory_space<vmem>>, vector<2x64xf32>
    %c128 = arith.constant 128 : index
    %c0_18 = arith.constant 0 : index
    %26 = vector.load %arg4[%c128, %c0_18] : memref<1024x16xf32, #tpu.memory_space<vmem>>, vector<64x16xf32>
    %cst_19 = arith.constant dense<0.000000e+00> : vector<2x16xf32>
    %27 = tpu.matmul %25, %26, %cst_19 {dimension_numbers = #tpu.dot_dimension_numbers<[1], [0], [0], [1], [0, 0, 1, 1], [], []>} : vector<2x64xf32>, vector<64x16xf32>, vector<2x16xf32> -> vector<2x16xf32>
    %28 = arith.addf %24, %27 : vector<2x16xf32>
    %c6 = arith.constant 6 : index
    %c0_20 = arith.constant 0 : index
    %29 = vector.load %arg7[%c6, %c0_20] : memref<32x64xf32, #tpu.memory_space<vmem>>, vector<2x64xf32>
    %c192 = arith.constant 192 : index
    %c0_21 = arith.constant 0 : index
    %30 = vector.load %arg4[%c192, %c0_21] : memref<1024x16xf32, #tpu.memory_space<vmem>>, vector<64x16xf32>
    %cst_22 = arith.constant dense<0.000000e+00> : vector<2x16xf32>
    %31 = tpu.matmul %29, %30, %cst_22 {dimension_numbers = #tpu.dot_dimension_numbers<[1], [0], [0], [1], [0, 0, 1, 1], [], []>} : vector<2x64xf32>, vector<64x16xf32>, vector<2x16xf32> -> vector<2x16xf32>
    %32 = arith.addf %28, %31 : vector<2x16xf32>
    %c8 = arith.constant 8 : index
    %c0_23 = arith.constant 0 : index
    %33 = vector.load %arg7[%c8, %c0_23] : memref<32x64xf32, #tpu.memory_space<vmem>>, vector<2x64xf32>
    %c256 = arith.constant 256 : index
    %c0_24 = arith.constant 0 : index
    %34 = vector.load %arg4[%c256, %c0_24] : memref<1024x16xf32, #tpu.memory_space<vmem>>, vector<64x16xf32>
    %cst_25 = arith.constant dense<0.000000e+00> : vector<2x16xf32>
    %35 = tpu.matmul %33, %34, %cst_25 {dimension_numbers = #tpu.dot_dimension_numbers<[1], [0], [0], [1], [0, 0, 1, 1], [], []>} : vector<2x64xf32>, vector<64x16xf32>, vector<2x16xf32> -> vector<2x16xf32>
    %36 = arith.addf %32, %35 : vector<2x16xf32>
    %c10 = arith.constant 10 : index
    %c0_26 = arith.constant 0 : index
    %37 = vector.load %arg7[%c10, %c0_26] : memref<32x64xf32, #tpu.memory_space<vmem>>, vector<2x64xf32>
    %c320 = arith.constant 320 : index
    %c0_27 = arith.constant 0 : index
    %38 = vector.load %arg4[%c320, %c0_27] : memref<1024x16xf32, #tpu.memory_space<vmem>>, vector<64x16xf32>
    %cst_28 = arith.constant dense<0.000000e+00> : vector<2x16xf32>
    %39 = tpu.matmul %37, %38, %cst_28 {dimension_numbers = #tpu.dot_dimension_numbers<[1], [0], [0], [1], [0, 0, 1, 1], [], []>} : vector<2x64xf32>, vector<64x16xf32>, vector<2x16xf32> -> vector<2x16xf32>
    %40 = arith.addf %36, %39 : vector<2x16xf32>
    %c12 = arith.constant 12 : index
    %c0_29 = arith.constant 0 : index
    %41 = vector.load %arg7[%c12, %c0_29] : memref<32x64xf32, #tpu.memory_space<vmem>>, vector<2x64xf32>
    %c384 = arith.constant 384 : index
    %c0_30 = arith.constant 0 : index
    %42 = vector.load %arg4[%c384, %c0_30] : memref<1024x16xf32, #tpu.memory_space<vmem>>, vector<64x16xf32>
    %cst_31 = arith.constant dense<0.000000e+00> : vector<2x16xf32>
    %43 = tpu.matmul %41, %42, %cst_31 {dimension_numbers = #tpu.dot_dimension_numbers<[1], [0], [0], [1], [0, 0, 1, 1], [], []>} : vector<2x64xf32>, vector<64x16xf32>, vector<2x16xf32> -> vector<2x16xf32>
    %44 = arith.addf %40, %43 : vector<2x16xf32>
    %c14 = arith.constant 14 : index
    %c0_32 = arith.constant 0 : index
    %45 = vector.load %arg7[%c14, %c0_32] : memref<32x64xf32, #tpu.memory_space<vmem>>, vector<2x64xf32>
    %c448 = arith.constant 448 : index
    %c0_33 = arith.constant 0 : index
    %46 = vector.load %arg4[%c448, %c0_33] : memref<1024x16xf32, #tpu.memory_space<vmem>>, vector<64x16xf32>
    %cst_34 = arith.constant dense<0.000000e+00> : vector<2x16xf32>
    %47 = tpu.matmul %45, %46, %cst_34 {dimension_numbers = #tpu.dot_dimension_numbers<[1], [0], [0], [1], [0, 0, 1, 1], [], []>} : vector<2x64xf32>, vector<64x16xf32>, vector<2x16xf32> -> vector<2x16xf32>
    %48 = arith.addf %44, %47 : vector<2x16xf32>
    %c16 = arith.constant 16 : index
    %c0_35 = arith.constant 0 : index
    %49 = vector.load %arg7[%c16, %c0_35] : memref<32x64xf32, #tpu.memory_space<vmem>>, vector<2x64xf32>
    %c512 = arith.constant 512 : index
    %c0_36 = arith.constant 0 : index
    %50 = vector.load %arg4[%c512, %c0_36] : memref<1024x16xf32, #tpu.memory_space<vmem>>, vector<64x16xf32>
    %cst_37 = arith.constant dense<0.000000e+00> : vector<2x16xf32>
    %51 = tpu.matmul %49, %50, %cst_37 {dimension_numbers = #tpu.dot_dimension_numbers<[1], [0], [0], [1], [0, 0, 1, 1], [], []>} : vector<2x64xf32>, vector<64x16xf32>, vector<2x16xf32> -> vector<2x16xf32>
    %52 = arith.addf %48, %51 : vector<2x16xf32>
    %c18 = arith.constant 18 : index
    %c0_38 = arith.constant 0 : index
    %53 = vector.load %arg7[%c18, %c0_38] : memref<32x64xf32, #tpu.memory_space<vmem>>, vector<2x64xf32>
    %c576 = arith.constant 576 : index
    %c0_39 = arith.constant 0 : index
    %54 = vector.load %arg4[%c576, %c0_39] : memref<1024x16xf32, #tpu.memory_space<vmem>>, vector<64x16xf32>
    %cst_40 = arith.constant dense<0.000000e+00> : vector<2x16xf32>
    %55 = tpu.matmul %53, %54, %cst_40 {dimension_numbers = #tpu.dot_dimension_numbers<[1], [0], [0], [1], [0, 0, 1, 1], [], []>} : vector<2x64xf32>, vector<64x16xf32>, vector<2x16xf32> -> vector<2x16xf32>
    %56 = arith.addf %52, %55 : vector<2x16xf32>
    %c20 = arith.constant 20 : index
    %c0_41 = arith.constant 0 : index
    %57 = vector.load %arg7[%c20, %c0_41] : memref<32x64xf32, #tpu.memory_space<vmem>>, vector<2x64xf32>
    %c640 = arith.constant 640 : index
    %c0_42 = arith.constant 0 : index
    %58 = vector.load %arg4[%c640, %c0_42] : memref<1024x16xf32, #tpu.memory_space<vmem>>, vector<64x16xf32>
    %cst_43 = arith.constant dense<0.000000e+00> : vector<2x16xf32>
    %59 = tpu.matmul %57, %58, %cst_43 {dimension_numbers = #tpu.dot_dimension_numbers<[1], [0], [0], [1], [0, 0, 1, 1], [], []>} : vector<2x64xf32>, vector<64x16xf32>, vector<2x16xf32> -> vector<2x16xf32>
    %60 = arith.addf %56, %59 : vector<2x16xf32>
    %c22 = arith.constant 22 : index
    %c0_44 = arith.constant 0 : index
    %61 = vector.load %arg7[%c22, %c0_44] : memref<32x64xf32, #tpu.memory_space<vmem>>, vector<2x64xf32>
    %c704 = arith.constant 704 : index
    %c0_45 = arith.constant 0 : index
    %62 = vector.load %arg4[%c704, %c0_45] : memref<1024x16xf32, #tpu.memory_space<vmem>>, vector<64x16xf32>
    %cst_46 = arith.constant dense<0.000000e+00> : vector<2x16xf32>
    %63 = tpu.matmul %61, %62, %cst_46 {dimension_numbers = #tpu.dot_dimension_numbers<[1], [0], [0], [1], [0, 0, 1, 1], [], []>} : vector<2x64xf32>, vector<64x16xf32>, vector<2x16xf32> -> vector<2x16xf32>
    %64 = arith.addf %60, %63 : vector<2x16xf32>
    %c24 = arith.constant 24 : index
    %c0_47 = arith.constant 0 : index
    %65 = vector.load %arg7[%c24, %c0_47] : memref<32x64xf32, #tpu.memory_space<vmem>>, vector<2x64xf32>
    %c768 = arith.constant 768 : index
    %c0_48 = arith.constant 0 : index
    %66 = vector.load %arg4[%c768, %c0_48] : memref<1024x16xf32, #tpu.memory_space<vmem>>, vector<64x16xf32>
    %cst_49 = arith.constant dense<0.000000e+00> : vector<2x16xf32>
    %67 = tpu.matmul %65, %66, %cst_49 {dimension_numbers = #tpu.dot_dimension_numbers<[1], [0], [0], [1], [0, 0, 1, 1], [], []>} : vector<2x64xf32>, vector<64x16xf32>, vector<2x16xf32> -> vector<2x16xf32>
    %68 = arith.addf %64, %67 : vector<2x16xf32>
    %c26 = arith.constant 26 : index
    %c0_50 = arith.constant 0 : index
    %69 = vector.load %arg7[%c26, %c0_50] : memref<32x64xf32, #tpu.memory_space<vmem>>, vector<2x64xf32>
    %c832 = arith.constant 832 : index
    %c0_51 = arith.constant 0 : index
    %70 = vector.load %arg4[%c832, %c0_51] : memref<1024x16xf32, #tpu.memory_space<vmem>>, vector<64x16xf32>
    %cst_52 = arith.constant dense<0.000000e+00> : vector<2x16xf32>
    %71 = tpu.matmul %69, %70, %cst_52 {dimension_numbers = #tpu.dot_dimension_numbers<[1], [0], [0], [1], [0, 0, 1, 1], [], []>} : vector<2x64xf32>, vector<64x16xf32>, vector<2x16xf32> -> vector<2x16xf32>
    %72 = arith.addf %68, %71 : vector<2x16xf32>
    %c28 = arith.constant 28 : index
    %c0_53 = arith.constant 0 : index
    %73 = vector.load %arg7[%c28, %c0_53] : memref<32x64xf32, #tpu.memory_space<vmem>>, vector<2x64xf32>
    %c896 = arith.constant 896 : index
    %c0_54 = arith.constant 0 : index
    %74 = vector.load %arg4[%c896, %c0_54] : memref<1024x16xf32, #tpu.memory_space<vmem>>, vector<64x16xf32>
    %cst_55 = arith.constant dense<0.000000e+00> : vector<2x16xf32>
    %75 = tpu.matmul %73, %74, %cst_55 {dimension_numbers = #tpu.dot_dimension_numbers<[1], [0], [0], [1], [0, 0, 1, 1], [], []>} : vector<2x64xf32>, vector<64x16xf32>, vector<2x16xf32> -> vector<2x16xf32>
    %76 = arith.addf %72, %75 : vector<2x16xf32>
    %c30 = arith.constant 30 : index
    %c0_56 = arith.constant 0 : index
    %77 = vector.load %arg7[%c30, %c0_56] : memref<32x64xf32, #tpu.memory_space<vmem>>, vector<2x64xf32>
    %c960 = arith.constant 960 : index
    %c0_57 = arith.constant 0 : index
    %78 = vector.load %arg4[%c960, %c0_57] : memref<1024x16xf32, #tpu.memory_space<vmem>>, vector<64x16xf32>
    %cst_58 = arith.constant dense<0.000000e+00> : vector<2x16xf32>
    %79 = tpu.matmul %77, %78, %cst_58 {dimension_numbers = #tpu.dot_dimension_numbers<[1], [0], [0], [1], [0, 0, 1, 1], [], []>} : vector<2x64xf32>, vector<64x16xf32>, vector<2x16xf32> -> vector<2x16xf32>
    %80 = arith.addf %76, %79 : vector<2x16xf32>
    %c0_59 = arith.constant 0 : index
    %c0_60 = arith.constant 0 : index
    %81 = vector.load %arg5[%c0_59, %c0_60] : memref<1x16xf32, #tpu.memory_space<vmem>>, vector<1x16xf32>
    %82 = vector.broadcast %81 : vector<1x16xf32> to vector<2x16xf32>
    %83 = arith.addf %80, %82 : vector<2x16xf32>
    %c0_61 = arith.constant 0 : index
    %c0_62 = arith.constant 0 : index
    %84 = vector.load %arg6[%c0_61, %c0_62] : memref<2x16xf32, #tpu.memory_space<vmem>>, vector<2x16xf32>
    tpu.vector_store %arg6[%c0_61, %c0_62], %83 {strides = array<i32>} : memref<2x16xf32, #tpu.memory_space<vmem>>, vector<2x16xf32>,
    return
  }
  func.func @transform_0(%arg0: i32) -> (i32, i32) {
    %c0_i32 = arith.constant 0 : i32
    %c0_i32_0 = arith.constant 0 : i32
    %c0_i32_1 = arith.constant 0 : i32
    return %c0_i32, %c0_i32_0 : i32, i32
  }
  func.func @transform_1(%arg0: i32) -> (i32, i32) {
    %c0_i32 = arith.constant 0 : i32
    %c0_i32_0 = arith.constant 0 : i32
    %c0_i32_1 = arith.constant 0 : i32
    return %c0_i32, %c0_i32_0 : i32, i32
  }
  func.func @transform_2(%arg0: i32) -> (i32, i32) {
    %c0_i32 = arith.constant 0 : i32
    %c0_i32_0 = arith.constant 0 : i32
    %c0_i32_1 = arith.constant 0 : i32
    return %c0_i32, %c0_i32_0 : i32, i32
  }
  func.func @transform_3(%arg0: i32) -> (i32, i32) {
    %c0_i32 = arith.constant 0 : i32
    %c0_i32_0 = arith.constant 0 : i32
    %c0_i32_1 = arith.constant 0 : i32
    return %c0_i32, %c0_i32_0 : i32, i32
  }
  func.func @transform_4(%arg0: i32) -> (i32, i32) {
    %c0_i32 = arith.constant 0 : i32
    %c0_i32_0 = arith.constant 0 : i32
    %c0_i32_1 = arith.constant 0 : i32
    return %c0_i32, %c0_i32_0 : i32, i32
  }
  func.func @transform_5(%arg0: i32) -> (i32, i32) {
    %c0_i32 = arith.constant 0 : i32
    %c0_i32_0 = arith.constant 0 : i32
    %c0_i32_1 = arith.constant 0 : i32
    return %c0_i32, %c0_i32_0 : i32, i32
  }
}

</mosaic_0001>

<llo_original>
// kernel: convnet_forward.2
$region0: #{convnet_forward.2}
  #allocation0 [shape = 'u32[]', space=smem, size = 0x4, offset = 0x4, fixed_abs, tag = 'smem constant byte address 0x4 - core index']
  #allocation1 [shape = 'u32[144,128]{1,0:T(1,128)}', space=vmem, size = 0x12000, scoped, tag = 'internal scratch']
  %s0 = inlined_call_operand.vmem [shape: f32[512,100], index: 0, kind: input, shape index: {}]
  %s1 = inlined_call_operand.vmem [shape: f32[100,32], index: 1, kind: input, shape index: {}]
  %s2 = inlined_call_operand.vmem [shape: f32[1,32], index: 2, kind: input, shape index: {}]
  %s3 = inlined_call_operand.vmem [shape: f32[128,32], index: 3, kind: output, shape index: {}]
  %s4 = sld [smem:[#allocation0]]
  $region22: #{convnet_forward.2} parent=0
    _
  %s6 = ssub.s32 1, %s4
  %s7 = scalar_select 0, %s6, %s4
  // Predicated region
  $region2: #{convnet_forward.2} parent=0 // pred_check
    _
  $region3: #{convnet_forward.2} parent=0 // pred_check_branch
    %9 = sbr.rel (0) target = $region5
  $region4: #{convnet_forward.2} parent=0 // pred_region
    _
  $region5: #{convnet_forward.2} parent=0 // pred_fallthru
    _
  // Predicated region
  $region6: #{convnet_forward.2} parent=0 // pred_check
    _
  $region7: #{convnet_forward.2} parent=0 // pred_check_branch
    %11 = sbr.rel (0) target = $region9
  $region8: #{convnet_forward.2} parent=0 // pred_region
    _
  $region9: #{convnet_forward.2} parent=0 // pred_fallthru
    _
  // Predicated region
  $region10: #{convnet_forward.2} parent=0 // pred_check
    _
  $region11: #{convnet_forward.2} parent=0 // pred_check_branch
    %13 = sbr.rel (0) target = $region13
  $region12: #{convnet_forward.2} parent=0 // pred_region
    _
  $region13: #{convnet_forward.2} parent=0 // pred_fallthru
    _
  %v14 = vld [vmem:[%s0] sm:$0xff]
  %v15 = vld [vmem:[%s0 + $0x8] sm:$0xff]
  %v16 = vld [vmem:[%s0 + $0x10] sm:$0xff]
  %v17 = vld [vmem:[%s0 + $0x18] sm:$0xff]
  %v18 = vld [vmem:[%s0 + $0x20] sm:$0xff]
  %v19 = vld [vmem:[%s0 + $0x28] sm:$0xff]
  %v20 = vld [vmem:[%s0 + $0x30] sm:$0xff]
  %v21 = vld [vmem:[%s0 + $0x38] sm:$0xff]
  %v22 = vld [vmem:[%s0 + $0x40] sm:$0xff]
  %v23 = vld [vmem:[%s0 + $0x48] sm:$0xff]
  %v24 = vld [vmem:[%s0 + $0x50] sm:$0xff]
  %v25 = vld [vmem:[%s0 + $0x58] sm:$0xff]
  %v26 = vld [vmem:[%s0 + $0x60] sm:$0xff]
  %v27 = vld [vmem:[%s0 + $0x68] sm:$0xff]
  %v28 = vld [vmem:[%s0 + $0x70] sm:$0xff]
  %v29 = vld [vmem:[%s0 + $0x78] sm:$0xff]
  %v30 = vld [vmem:[%s0 + $0x80] sm:$0xff]
  %v31 = vld [vmem:[%s0 + $0x88] sm:$0xff]
  %v32 = vld [vmem:[%s0 + $0x90] sm:$0xff]
  %v33 = vld [vmem:[%s0 + $0x98] sm:$0xff]
  %v34 = vld [vmem:[%s0 + $0xa0] sm:$0xff]
  %v35 = vld [vmem:[%s0 + $0xa8] sm:$0xff]
  %v36 = vld [vmem:[%s0 + $0xb0] sm:$0xff]
  %v37 = vld [vmem:[%s0 + $0xb8] sm:$0xff]
  %v38 = vld [vmem:[%s0 + $0xc0] sm:$0xff]
  %v39 = vld [vmem:[%s0 + $0xc8] sm:$0xff]
  %v40 = vld [vmem:[%s0 + $0xd0] sm:$0xff]
  %v41 = vld [vmem:[%s0 + $0xd8] sm:$0xff]
  %v42 = vld [vmem:[%s0 + $0xe0] sm:$0xff]
  %v43 = vld [vmem:[%s0 + $0xe8] sm:$0xff]
  %v44 = vld [vmem:[%s0 + $0xf0] sm:$0xff]
  %v45 = vld [vmem:[%s0 + $0xf8] sm:$0xff]
  %v46 = vld [vmem:[%s0 + $0x100] sm:$0xff]
  %v47 = vld [vmem:[%s0 + $0x108] sm:$0xff]
  %v48 = vld [vmem:[%s0 + $0x110] sm:$0xff]
  %v49 = vld [vmem:[%s0 + $0x118] sm:$0xff]
  %v50 = vld [vmem:[%s0 + $0x120] sm:$0xff]
  %v51 = vld [vmem:[%s0 + $0x128] sm:$0xff]
  %v52 = vld [vmem:[%s0 + $0x130] sm:$0xff]
  %v53 = vld [vmem:[%s0 + $0x138] sm:$0xff]
  %v54 = vld [vmem:[%s0 + $0x140] sm:$0xff]
  %v55 = vld [vmem:[%s0 + $0x148] sm:$0xff]
  %v56 = vld [vmem:[%s0 + $0x150] sm:$0xff]
  %v57 = vld [vmem:[%s0 + $0x158] sm:$0xff]
  %v58 = vld [vmem:[%s0 + $0x160] sm:$0xff]
  %v59 = vld [vmem:[%s0 + $0x168] sm:$0xff]
  %v60 = vld [vmem:[%s0 + $0x170] sm:$0xff]
  %v61 = vld [vmem:[%s0 + $0x178] sm:$0xff]
  %v62 = vld [vmem:[%s0 + $0x180] sm:$0xff]
  %v63 = vld [vmem:[%s0 + $0x188] sm:$0xff]
  %v64 = vld [vmem:[%s0 + $0x190] sm:$0xff]
  %v65 = vld [vmem:[%s0 + $0x198] sm:$0xff]
  %v66 = vld [vmem:[%s0 + $0x1a0] sm:$0xff]
  %v67 = vld [vmem:[%s0 + $0x1a8] sm:$0xff]
  %v68 = vld [vmem:[%s0 + $0x1b0] sm:$0xff]
  %v69 = vld [vmem:[%s0 + $0x1b8] sm:$0xff]
  %v70 = vld [vmem:[%s0 + $0x1c0] sm:$0xff]
  %v71 = vld [vmem:[%s0 + $0x1c8] sm:$0xff]
  %v72 = vld [vmem:[%s0 + $0x1d0] sm:$0xff]
  %v73 = vld [vmem:[%s0 + $0x1d8] sm:$0xff]
  %v74 = vld [vmem:[%s0 + $0x1e0] sm:$0xff]
  %v75 = vld [vmem:[%s0 + $0x1e8] sm:$0xff]
  %v76 = vld [vmem:[%s0 + $0x1f0] sm:$0xff]
  %v77 = vld [vmem:[%s0 + $0x1f8] sm:$0xff]
  %v78 = vld [vmem:[%s1] sm:$0xff]
  %v79 = vld [vmem:[%s1 + $0x8] sm:$0xff]
  %v80 = vld [vmem:[%s1 + $0x10] sm:$0xff]
  %v81 = vld [vmem:[%s1 + $0x18] sm:$0xff]
  %v82 = vld [vmem:[%s1 + $0x20] sm:$0xff]
  %v83 = vld [vmem:[%s1 + $0x28] sm:$0xff]
  %v84 = vld [vmem:[%s1 + $0x30] sm:$0xff]
  %v85 = vld [vmem:[%s1 + $0x38] sm:$0xff]
  %v86 = vld [vmem:[%s1 + $0x40] sm:$0xff]
  %v87 = vld [vmem:[%s1 + $0x48] sm:$0xff]
  %v88 = vld [vmem:[%s1 + $0x50] sm:$0xff]
  %v89 = vld [vmem:[%s1 + $0x58] sm:$0xff]
  %v90 = vld [vmem:[%s1 + $0x60] sm:$0xf]
  %vm91 = vcmask 818176
  %v93 = vsel %vm91, %v14, 0
  %v96 = vsel %vm91, %v15, 0
  %v99 = vsel %vm91, %v16, 0
  %v102 = vsel %vm91, %v17, 0
  %v105 = vsel %vm91, %v18, 0
  %v108 = vsel %vm91, %v19, 0
  %v111 = vsel %vm91, %v20, 0
  %v114 = vsel %vm91, %v21, 0
  %v117 = vsel %vm91, %v22, 0
  %v120 = vsel %vm91, %v23, 0
  %v123 = vsel %vm91, %v24, 0
  %v126 = vsel %vm91, %v25, 0
  %v129 = vsel %vm91, %v26, 0
  %v132 = vsel %vm91, %v27, 0
  %v135 = vsel %vm91, %v28, 0
  %v138 = vsel %vm91, %v29, 0
  %v141 = vsel %vm91, %v30, 0
  %v144 = vsel %vm91, %v31, 0
  %v147 = vsel %vm91, %v32, 0
  %v150 = vsel %vm91, %v33, 0
  %v153 = vsel %vm91, %v34, 0
  %v156 = vsel %vm91, %v35, 0
  %v159 = vsel %vm91, %v36, 0
  %v162 = vsel %vm91, %v37, 0
  %v165 = vsel %vm91, %v38, 0
  %v168 = vsel %vm91, %v39, 0
  %v171 = vsel %vm91, %v40, 0
  %v174 = vsel %vm91, %v41, 0
  %v177 = vsel %vm91, %v42, 0
  %v180 = vsel %vm91, %v43, 0
  %v183 = vsel %vm91, %v44, 0
  %v186 = vsel %vm91, %v45, 0
  %v189 = vsel %vm91, %v46, 0
  %v192 = vsel %vm91, %v47, 0
  %v195 = vsel %vm91, %v48, 0
  %v198 = vsel %vm91, %v49, 0
  %v201 = vsel %vm91, %v50, 0
  %v204 = vsel %vm91, %v51, 0
  %v207 = vsel %vm91, %v52, 0
  %v210 = vsel %vm91, %v53, 0
  %v213 = vsel %vm91, %v54, 0
  %v216 = vsel %vm91, %v55, 0
  %v219 = vsel %vm91, %v56, 0
  %v222 = vsel %vm91, %v57, 0
  %v225 = vsel %vm91, %v58, 0
  %v228 = vsel %vm91, %v59, 0
  %v231 = vsel %vm91, %v60, 0
  %v234 = vsel %vm91, %v61, 0
  %v237 = vsel %vm91, %v62, 0
  %v240 = vsel %vm91, %v63, 0
  %v243 = vsel %vm91, %v64, 0
  %v246 = vsel %vm91, %v65, 0
  %v249 = vsel %vm91, %v66, 0
  %v252 = vsel %vm91, %v67, 0
  %v255 = vsel %vm91, %v68, 0
  %v258 = vsel %vm91, %v69, 0
  %v261 = vsel %vm91, %v70, 0
  %v264 = vsel %vm91, %v71, 0
  %v267 = vsel %vm91, %v72, 0
  %v270 = vsel %vm91, %v73, 0
  %v273 = vsel %vm91, %v74, 0
  %v276 = vsel %vm91, %v75, 0
  %v279 = vsel %vm91, %v76, 0
  %v282 = vsel %vm91, %v77, 0
  %vm284 = vcmask 1043456
  %v286 = vsel %vm284, %v90, 0
  %288 = vmatprep.subr.mxu0 0.0
  %289 = vmatpush1.msra.mxu0 0.0
  %290 = vmatprep.subr.mxu0 0.0
  %291 = vmatpush1.msra.mxu0 0.0
  %292 = vmatprep.subr.mxu0 0.0
  %293 = vmatpush1.msra.mxu0 0.0
  %294 = vmatprep.subr.mxu0 0.0
  %295 = vmatpush1.msra.mxu0 %v286
  %296 = vmatprep.subr.mxu0 0.0
  %297 = vmatpush1.msra.mxu0 %v89
  %298 = vmatprep.subr.mxu0 0.0
  %299 = vmatpush1.msra.mxu0 %v88
  %300 = vmatprep.subr.mxu0 0.0
  %301 = vmatpush1.msra.mxu0 %v87
  %302 = vmatprep.subr.mxu0 0.0
  %303 = vmatpush1.msra.mxu0 %v86
  %304 = vmatprep.subr.mxu0 0.0
  %305 = vmatpush1.msra.mxu0 %v85
  %306 = vmatprep.subr.mxu0 0.0
  %307 = vmatpush1.msra.mxu0 %v84
  %308 = vmatprep.subr.mxu0 0.0
  %309 = vmatpush1.msra.mxu0 %v83
  %310 = vmatprep.subr.mxu0 0.0
  %311 = vmatpush1.msra.mxu0 %v82
  %312 = vmatprep.subr.mxu0 0.0
  %313 = vmatpush1.msra.mxu0 %v81
  %314 = vmatprep.subr.mxu0 0.0
  %315 = vmatpush1.msra.mxu0 %v80
  %316 = vmatprep.subr.mxu0 0.0
  %317 = vmatpush1.msra.mxu0 %v79
  %318 = vmatprep.subr.mxu0 0.0
  %319 = vmatpush1.msra.mxu0 %v78
  %320 = vmatprep.subr.mxu0 0.0
  %321 = vmatpush2.msra.mxu0 0.0
  %322 = vmatprep.subr.mxu0 0.0
  %323 = vmatpush2.msra.mxu0 0.0
  %324 = vmatprep.subr.mxu0 0.0
  %325 = vmatpush2.msra.mxu0 0.0
  %326 = vmatprep.subr.mxu0 0.0
  %327 = vmatpush2.msra.mxu0 0.0
  %328 = vmatprep.subr.mxu0 0.0
  %329 = vmatpush2.msra.mxu0 0.0
  %330 = vmatprep.subr.mxu0 0.0
  %331 = vmatpush2.msra.mxu0 0.0
  %332 = vmatprep.subr.mxu0 0.0
  %333 = vmatpush2.msra.mxu0 0.0
  %334 = vmatprep.subr.mxu0 0.0
  %335 = vmatpush2.msra.mxu0 0.0
  %336 = vmatprep.subr.mxu0 0.0
  %337 = vmatpush2.msra.mxu0 0.0
  %338 = vmatprep.subr.mxu0 0.0
  %339 = vmatpush2.msra.mxu0 0.0
  %340 = vmatprep.subr.mxu0 0.0
  %341 = vmatpush2.msra.mxu0 0.0
  %342 = vmatprep.subr.mxu0 0.0
  %343 = vmatpush2.msra.mxu0 0.0
  %344 = vmatprep.subr.mxu0 0.0
  %345 = vmatpush2.msra.mxu0 0.0
  %346 = vmatprep.subr.mxu0 0.0
  %347 = vmatpush2.msra.mxu0 0.0
  %348 = vmatprep.subr.mxu0 0.0
  %349 = vmatpush2.msra.mxu0 0.0
  %350 = vmatprep.subr.mxu0 0.0
  %351 = vmatpush2.msra.mxu0 0.0
  %352 = vmatprep.mubr.f32.mxu0 0.0
  %353 = vmatmul.mubr.f32.gmra.mxu0 %v93
  %v354 = vpop.f32.mrf.mxu0
  %v355 = vadd.f32 0.0, %v354
  %v356 = vpop.f32.mrf.mxu0
  %357 = vmatprep.mubr.f32.mxu0 0.0
  %358 = vmatmul.mubr.f32.gmra.mxu0 %v96
  %v359 = vpop.f32.mrf.mxu0
  %v360 = vadd.f32 0.0, %v359
  %v361 = vpop.f32.mrf.mxu0
  %362 = vmatprep.mubr.f32.mxu0 0.0
  %363 = vmatmul.mubr.f32.gmra.mxu0 %v99
  %v364 = vpop.f32.mrf.mxu0
  %v365 = vadd.f32 0.0, %v364
  %v366 = vpop.f32.mrf.mxu0
  %367 = vmatprep.mubr.f32.mxu0 0.0
  %368 = vmatmul.mubr.f32.gmra.mxu0 %v102
  %v369 = vpop.f32.mrf.mxu0
  %v370 = vadd.f32 0.0, %v369
  %v371 = vpop.f32.mrf.mxu0
  %372 = vmatprep.mubr.f32.mxu0 0.0
  %373 = vmatmul.mubr.f32.gmra.mxu0 %v105
  %v374 = vpop.f32.mrf.mxu0
  %v375 = vadd.f32 0.0, %v374
  %v376 = vpop.f32.mrf.mxu0
  %377 = vmatprep.mubr.f32.mxu0 0.0
  %378 = vmatmul.mubr.f32.gmra.mxu0 %v108
  %v379 = vpop.f32.mrf.mxu0
  %v380 = vadd.f32 0.0, %v379
  %v381 = vpop.f32.mrf.mxu0
  %382 = vmatprep.mubr.f32.mxu0 0.0
  %383 = vmatmul.mubr.f32.gmra.mxu0 %v111
  %v384 = vpop.f32.mrf.mxu0
  %v385 = vadd.f32 0.0, %v384
  %v386 = vpop.f32.mrf.mxu0
  %387 = vmatprep.mubr.f32.mxu0 0.0
  %388 = vmatmul.mubr.f32.gmra.mxu0 %v114
  %v389 = vpop.f32.mrf.mxu0
  %v390 = vadd.f32 0.0, %v389
  %v391 = vpop.f32.mrf.mxu0
  %392 = vmatprep.mubr.f32.mxu0 0.0
  %393 = vmatmul.mubr.f32.gmra.mxu0 %v117
  %v394 = vpop.f32.mrf.mxu0
  %v395 = vadd.f32 0.0, %v394
  %v396 = vpop.f32.mrf.mxu0
  %397 = vmatprep.mubr.f32.mxu0 0.0
  %398 = vmatmul.mubr.f32.gmra.mxu0 %v120
  %v399 = vpop.f32.mrf.mxu0
  %v400 = vadd.f32 0.0, %v399
  %v401 = vpop.f32.mrf.mxu0
  %402 = vmatprep.mubr.f32.mxu0 0.0
  %403 = vmatmul.mubr.f32.gmra.mxu0 %v123
  %v404 = vpop.f32.mrf.mxu0
  %v405 = vadd.f32 0.0, %v404
  %v406 = vpop.f32.mrf.mxu0
  %407 = vmatprep.mubr.f32.mxu0 0.0
  %408 = vmatmul.mubr.f32.gmra.mxu0 %v126
  %v409 = vpop.f32.mrf.mxu0
  %v410 = vadd.f32 0.0, %v409
  %v411 = vpop.f32.mrf.mxu0
  %412 = vmatprep.mubr.f32.mxu0 0.0
  %413 = vmatmul.mubr.f32.gmra.mxu0 %v129
  %v414 = vpop.f32.mrf.mxu0
  %v415 = vadd.f32 0.0, %v414
  %v416 = vpop.f32.mrf.mxu0
  %417 = vmatprep.mubr.f32.mxu0 0.0
  %418 = vmatmul.mubr.f32.gmra.mxu0 %v132
  %v419 = vpop.f32.mrf.mxu0
  %v420 = vadd.f32 0.0, %v419
  %v421 = vpop.f32.mrf.mxu0
  %422 = vmatprep.mubr.f32.mxu0 0.0
  %423 = vmatmul.mubr.f32.gmra.mxu0 %v135
  %v424 = vpop.f32.mrf.mxu0
  %v425 = vadd.f32 0.0, %v424
  %v426 = vpop.f32.mrf.mxu0
  %427 = vmatprep.mubr.f32.mxu0 0.0
  %428 = vmatmul.mubr.f32.gmra.mxu0 %v138
  %v429 = vpop.f32.mrf.mxu0
  %v430 = vadd.f32 0.0, %v429
  %v431 = vpop.f32.mrf.mxu0
  %432 = vmatprep.mubr.f32.mxu0 0.0
  %433 = vmatmul.mubr.f32.gmra.mxu0 %v141
  %v434 = vpop.f32.mrf.mxu0
  %v435 = vadd.f32 0.0, %v434
  %v436 = vpop.f32.mrf.mxu0
  %437 = vmatprep.mubr.f32.mxu0 0.0
  %438 = vmatmul.mubr.f32.gmra.mxu0 %v144
  %v439 = vpop.f32.mrf.mxu0
  %v440 = vadd.f32 0.0, %v439
  %v441 = vpop.f32.mrf.mxu0
  %442 = vmatprep.mubr.f32.mxu0 0.0
  %443 = vmatmul.mubr.f32.gmra.mxu0 %v147
  %v444 = vpop.f32.mrf.mxu0
  %v445 = vadd.f32 0.0, %v444
  %v446 = vpop.f32.mrf.mxu0
  %447 = vmatprep.mubr.f32.mxu0 0.0
  %448 = vmatmul.mubr.f32.gmra.mxu0 %v150
  %v449 = vpop.f32.mrf.mxu0
  %v450 = vadd.f32 0.0, %v449
  %v451 = vpop.f32.mrf.mxu0
  %452 = vmatprep.mubr.f32.mxu0 0.0
  %453 = vmatmul.mubr.f32.gmra.mxu0 %v153
  %v454 = vpop.f32.mrf.mxu0
  %v455 = vadd.f32 0.0, %v454
  %v456 = vpop.f32.mrf.mxu0
  %457 = vmatprep.mubr.f32.mxu0 0.0
  %458 = vmatmul.mubr.f32.gmra.mxu0 %v156
  %v459 = vpop.f32.mrf.mxu0
  %v460 = vadd.f32 0.0, %v459
  %v461 = vpop.f32.mrf.mxu0
  %462 = vmatprep.mubr.f32.mxu0 0.0
  %463 = vmatmul.mubr.f32.gmra.mxu0 %v159
  %v464 = vpop.f32.mrf.mxu0
  %v465 = vadd.f32 0.0, %v464
  %v466 = vpop.f32.mrf.mxu0
  %467 = vmatprep.mubr.f32.mxu0 0.0
  %468 = vmatmul.mubr.f32.gmra.mxu0 %v162
  %v469 = vpop.f32.mrf.mxu0
  %v470 = vadd.f32 0.0, %v469
  %v471 = vpop.f32.mrf.mxu0
  %472 = vmatprep.mubr.f32.mxu0 0.0
  %473 = vmatmul.mubr.f32.gmra.mxu0 %v165
  %v474 = vpop.f32.mrf.mxu0
  %v475 = vadd.f32 0.0, %v474
  %v476 = vpop.f32.mrf.mxu0
  %477 = vmatprep.mubr.f32.mxu0 0.0
  %478 = vmatmul.mubr.f32.gmra.mxu0 %v168
  %v479 = vpop.f32.mrf.mxu0
  %v480 = vadd.f32 0.0, %v479
  %v481 = vpop.f32.mrf.mxu0
  %482 = vmatprep.mubr.f32.mxu0 0.0
  %483 = vmatmul.mubr.f32.gmra.mxu0 %v171
  %v484 = vpop.f32.mrf.mxu0
  %v485 = vadd.f32 0.0, %v484
  %v486 = vpop.f32.mrf.mxu0
  %487 = vmatprep.mubr.f32.mxu0 0.0
  %488 = vmatmul.mubr.f32.gmra.mxu0 %v174
  %v489 = vpop.f32.mrf.mxu0
  %v490 = vadd.f32 0.0, %v489
  %v491 = vpop.f32.mrf.mxu0
  %492 = vmatprep.mubr.f32.mxu0 0.0
  %493 = vmatmul.mubr.f32.gmra.mxu0 %v177
  %v494 = vpop.f32.mrf.mxu0
  %v495 = vadd.f32 0.0, %v494
  %v496 = vpop.f32.mrf.mxu0
  %497 = vmatprep.mubr.f32.mxu0 0.0
  %498 = vmatmul.mubr.f32.gmra.mxu0 %v180
  %v499 = vpop.f32.mrf.mxu0
  %v500 = vadd.f32 0.0, %v499
  %v501 = vpop.f32.mrf.mxu0
  %502 = vmatprep.mubr.f32.mxu0 0.0
  %503 = vmatmul.mubr.f32.gmra.mxu0 %v183
  %v504 = vpop.f32.mrf.mxu0
  %v505 = vadd.f32 0.0, %v504
  %v506 = vpop.f32.mrf.mxu0
  %507 = vmatprep.mubr.f32.mxu0 0.0
  %508 = vmatmul.mubr.f32.gmra.mxu0 %v186
  %v509 = vpop.f32.mrf.mxu0
  %v510 = vadd.f32 0.0, %v509
  %v511 = vpop.f32.mrf.mxu0
  %512 = vmatprep.mubr.f32.mxu0 0.0
  %513 = vmatmul.mubr.f32.gmra.mxu0 %v189
  %v514 = vpop.f32.mrf.mxu0
  %v515 = vadd.f32 0.0, %v514
  %v516 = vpop.f32.mrf.mxu0
  %517 = vmatprep.mubr.f32.mxu0 0.0
  %518 = vmatmul.mubr.f32.gmra.mxu0 %v192
  %v519 = vpop.f32.mrf.mxu0
  %v520 = vadd.f32 0.0, %v519
  %v521 = vpop.f32.mrf.mxu0
  %522 = vmatprep.mubr.f32.mxu0 0.0
  %523 = vmatmul.mubr.f32.gmra.mxu0 %v195
  %v524 = vpop.f32.mrf.mxu0
  %v525 = vadd.f32 0.0, %v524
  %v526 = vpop.f32.mrf.mxu0
  %527 = vmatprep.mubr.f32.mxu0 0.0
  %528 = vmatmul.mubr.f32.gmra.mxu0 %v198
  %v529 = vpop.f32.mrf.mxu0
  %v530 = vadd.f32 0.0, %v529
  %v531 = vpop.f32.mrf.mxu0
  %532 = vmatprep.mubr.f32.mxu0 0.0
  %533 = vmatmul.mubr.f32.gmra.mxu0 %v201
  %v534 = vpop.f32.mrf.mxu0
  %v535 = vadd.f32 0.0, %v534
  %v536 = vpop.f32.mrf.mxu0
  %537 = vmatprep.mubr.f32.mxu0 0.0
  %538 = vmatmul.mubr.f32.gmra.mxu0 %v204
  %v539 = vpop.f32.mrf.mxu0
  %v540 = vadd.f32 0.0, %v539
  %v541 = vpop.f32.mrf.mxu0
  %542 = vmatprep.mubr.f32.mxu0 0.0
  %543 = vmatmul.mubr.f32.gmra.mxu0 %v207
  %v544 = vpop.f32.mrf.mxu0
  %v545 = vadd.f32 0.0, %v544
  %v546 = vpop.f32.mrf.mxu0
  %547 = vmatprep.mubr.f32.mxu0 0.0
  %548 = vmatmul.mubr.f32.gmra.mxu0 %v210
  %v549 = vpop.f32.mrf.mxu0
  %v550 = vadd.f32 0.0, %v549
  %v551 = vpop.f32.mrf.mxu0
  %552 = vmatprep.mubr.f32.mxu0 0.0
  %553 = vmatmul.mubr.f32.gmra.mxu0 %v213
  %v554 = vpop.f32.mrf.mxu0
  %v555 = vadd.f32 0.0, %v554
  %v556 = vpop.f32.mrf.mxu0
  %557 = vmatprep.mubr.f32.mxu0 0.0
  %558 = vmatmul.mubr.f32.gmra.mxu0 %v216
  %v559 = vpop.f32.mrf.mxu0
  %v560 = vadd.f32 0.0, %v559
  %v561 = vpop.f32.mrf.mxu0
  %562 = vmatprep.mubr.f32.mxu0 0.0
  %563 = vmatmul.mubr.f32.gmra.mxu0 %v219
  %v564 = vpop.f32.mrf.mxu0
  %v565 = vadd.f32 0.0, %v564
  %v566 = vpop.f32.mrf.mxu0
  %567 = vmatprep.mubr.f32.mxu0 0.0
  %568 = vmatmul.mubr.f32.gmra.mxu0 %v222
  %v569 = vpop.f32.mrf.mxu0
  %v570 = vadd.f32 0.0, %v569
  %v571 = vpop.f32.mrf.mxu0
  %572 = vmatprep.mubr.f32.mxu0 0.0
  %573 = vmatmul.mubr.f32.gmra.mxu0 %v225
  %v574 = vpop.f32.mrf.mxu0
  %v575 = vadd.f32 0.0, %v574
  %v576 = vpop.f32.mrf.mxu0
  %577 = vmatprep.mubr.f32.mxu0 0.0
  %578 = vmatmul.mubr.f32.gmra.mxu0 %v228
  %v579 = vpop.f32.mrf.mxu0
  %v580 = vadd.f32 0.0, %v579
  %v581 = vpop.f32.mrf.mxu0
  %582 = vmatprep.mubr.f32.mxu0 0.0
  %583 = vmatmul.mubr.f32.gmra.mxu0 %v231
  %v584 = vpop.f32.mrf.mxu0
  %v585 = vadd.f32 0.0, %v584
  %v586 = vpop.f32.mrf.mxu0
  %587 = vmatprep.mubr.f32.mxu0 0.0
  %588 = vmatmul.mubr.f32.gmra.mxu0 %v234
  %v589 = vpop.f32.mrf.mxu0
  %v590 = vadd.f32 0.0, %v589
  %v591 = vpop.f32.mrf.mxu0
  %592 = vmatprep.mubr.f32.mxu0 0.0
  %593 = vmatmul.mubr.f32.gmra.mxu0 %v237
  %v594 = vpop.f32.mrf.mxu0
  %v595 = vadd.f32 0.0, %v594
  %v596 = vpop.f32.mrf.mxu0
  %597 = vmatprep.mubr.f32.mxu0 0.0
  %598 = vmatmul.mubr.f32.gmra.mxu0 %v240
  %v599 = vpop.f32.mrf.mxu0
  %v600 = vadd.f32 0.0, %v599
  %v601 = vpop.f32.mrf.mxu0
  %602 = vmatprep.mubr.f32.mxu0 0.0
  %603 = vmatmul.mubr.f32.gmra.mxu0 %v243
  %v604 = vpop.f32.mrf.mxu0
  %v605 = vadd.f32 0.0, %v604
  %v606 = vpop.f32.mrf.mxu0
  %607 = vmatprep.mubr.f32.mxu0 0.0
  %608 = vmatmul.mubr.f32.gmra.mxu0 %v246
  %v609 = vpop.f32.mrf.mxu0
  %v610 = vadd.f32 0.0, %v609
  %v611 = vpop.f32.mrf.mxu0
  %612 = vmatprep.mubr.f32.mxu0 0.0
  %613 = vmatmul.mubr.f32.gmra.mxu0 %v249
  %v614 = vpop.f32.mrf.mxu0
  %v615 = vadd.f32 0.0, %v614
  %v616 = vpop.f32.mrf.mxu0
  %617 = vmatprep.mubr.f32.mxu0 0.0
  %618 = vmatmul.mubr.f32.gmra.mxu0 %v252
  %v619 = vpop.f32.mrf.mxu0
  %v620 = vadd.f32 0.0, %v619
  %v621 = vpop.f32.mrf.mxu0
  %622 = vmatprep.mubr.f32.mxu0 0.0
  %623 = vmatmul.mubr.f32.gmra.mxu0 %v255
  %v624 = vpop.f32.mrf.mxu0
  %v625 = vadd.f32 0.0, %v624
  %v626 = vpop.f32.mrf.mxu0
  %627 = vmatprep.mubr.f32.mxu0 0.0
  %628 = vmatmul.mubr.f32.gmra.mxu0 %v258
  %v629 = vpop.f32.mrf.mxu0
  %v630 = vadd.f32 0.0, %v629
  %v631 = vpop.f32.mrf.mxu0
  %632 = vmatprep.mubr.f32.mxu0 0.0
  %633 = vmatmul.mubr.f32.gmra.mxu0 %v261
  %v634 = vpop.f32.mrf.mxu0
  %v635 = vadd.f32 0.0, %v634
  %v636 = vpop.f32.mrf.mxu0
  %637 = vmatprep.mubr.f32.mxu0 0.0
  %638 = vmatmul.mubr.f32.gmra.mxu0 %v264
  %v639 = vpop.f32.mrf.mxu0
  %v640 = vadd.f32 0.0, %v639
  %v641 = vpop.f32.mrf.mxu0
  %642 = vmatprep.mubr.f32.mxu0 0.0
  %643 = vmatmul.mubr.f32.gmra.mxu0 %v267
  %v644 = vpop.f32.mrf.mxu0
  %v645 = vadd.f32 0.0, %v644
  %v646 = vpop.f32.mrf.mxu0
  %647 = vmatprep.mubr.f32.mxu0 0.0
  %648 = vmatmul.mubr.f32.gmra.mxu0 %v270
  %v649 = vpop.f32.mrf.mxu0
  %v650 = vadd.f32 0.0, %v649
  %v651 = vpop.f32.mrf.mxu0
  %652 = vmatprep.mubr.f32.mxu0 0.0
  %653 = vmatmul.mubr.f32.gmra.mxu0 %v273
  %v654 = vpop.f32.mrf.mxu0
  %v655 = vadd.f32 0.0, %v654
  %v656 = vpop.f32.mrf.mxu0
  %657 = vmatprep.mubr.f32.mxu0 0.0
  %658 = vmatmul.mubr.f32.gmra.mxu0 %v276
  %v659 = vpop.f32.mrf.mxu0
  %v660 = vadd.f32 0.0, %v659
  %v661 = vpop.f32.mrf.mxu0
  %662 = vmatprep.mubr.f32.mxu0 0.0
  %663 = vmatmul.mubr.f32.gmra.mxu0 %v279
  %v664 = vpop.f32.mrf.mxu0
  %v665 = vadd.f32 0.0, %v664
  %v666 = vpop.f32.mrf.mxu0
  %667 = vmatprep.mubr.f32.mxu0 0.0
  %668 = vmatmul.mubr.f32.gmra.mxu0 %v282
  %v669 = vpop.f32.mrf.mxu0
  %v670 = vadd.f32 0.0, %v669
  %v671 = vpop.f32.mrf.mxu0
  %672 = vdwg.mxu0
  %v673 = vmax.f32 %v355, %v435
  %v674 = vmax.f32 %v360, %v440
  %v675 = vmax.f32 %v365, %v445
  %v676 = vmax.f32 %v370, %v450
  %v677 = vmax.f32 %v375, %v455
  %v678 = vmax.f32 %v380, %v460
  %v679 = vmax.f32 %v385, %v465
  %v680 = vmax.f32 %v390, %v470
  %v681 = vmax.f32 %v395, %v475
  %v682 = vmax.f32 %v400, %v480
  %v683 = vmax.f32 %v405, %v485
  %v684 = vmax.f32 %v410, %v490
  %v685 = vmax.f32 %v415, %v495
  %v686 = vmax.f32 %v420, %v500
  %v687 = vmax.f32 %v425, %v505
  %v688 = vmax.f32 %v430, %v510
  %v689 = vmax.f32 %v515, %v595
  %v690 = vmax.f32 %v520, %v600
  %v691 = vmax.f32 %v525, %v605
  %v692 = vmax.f32 %v530, %v610
  %v693 = vmax.f32 %v535, %v615
  %v694 = vmax.f32 %v540, %v620
  %v695 = vmax.f32 %v545, %v625
  %v696 = vmax.f32 %v550, %v630
  %v697 = vmax.f32 %v555, %v635
  %v698 = vmax.f32 %v560, %v640
  %v699 = vmax.f32 %v565, %v645
  %v700 = vmax.f32 %v570, %v650
  %v701 = vmax.f32 %v575, %v655
  %v702 = vmax.f32 %v580, %v660
  %v703 = vmax.f32 %v585, %v665
  %v704 = vmax.f32 %v590, %v670
  %v705 = vmax.f32 %v673, %v689
  %v706 = vmax.f32 %v674, %v690
  %v707 = vmax.f32 %v675, %v691
  %v708 = vmax.f32 %v676, %v692
  %v709 = vmax.f32 %v677, %v693
  %v710 = vmax.f32 %v678, %v694
  %v711 = vmax.f32 %v679, %v695
  %v712 = vmax.f32 %v680, %v696
  %v713 = vmax.f32 %v681, %v697
  %v714 = vmax.f32 %v682, %v698
  %v715 = vmax.f32 %v683, %v699
  %v716 = vmax.f32 %v684, %v700
  %v717 = vmax.f32 %v685, %v701
  %v718 = vmax.f32 %v686, %v702
  %v719 = vmax.f32 %v687, %v703
  %v720 = vmax.f32 %v688, %v704
  %v721 = vld [vmem:[%s2] sm:$0x1]
  %v723 = vlaneseq
  %v724 = vshrl.u32 %v723, 7
  %v725 = vsub.s32 0, %v724
  %v726 = vrot.slane %v721, %v725
  %v728 = vadd.f32 %v705, %v726
  %v729 = vadd.f32 %v706, %v726
  %v730 = vadd.f32 %v707, %v726
  %v731 = vadd.f32 %v708, %v726
  %v732 = vadd.f32 %v709, %v726
  %v733 = vadd.f32 %v710, %v726
  %v734 = vadd.f32 %v711, %v726
  %v735 = vadd.f32 %v712, %v726
  %v736 = vadd.f32 %v713, %v726
  %v737 = vadd.f32 %v714, %v726
  %v738 = vadd.f32 %v715, %v726
  %v739 = vadd.f32 %v716, %v726
  %v740 = vadd.f32 %v717, %v726
  %v741 = vadd.f32 %v718, %v726
  %v742 = vadd.f32 %v719, %v726
  %v743 = vadd.f32 %v720, %v726
  %v744 = vmax.f32 %v728, 0.0
  %v745 = vmax.f32 %v729, 0.0
  %v746 = vmax.f32 %v730, 0.0
  %v747 = vmax.f32 %v731, 0.0
  %v748 = vmax.f32 %v732, 0.0
  %v749 = vmax.f32 %v733, 0.0
  %v750 = vmax.f32 %v734, 0.0
  %v751 = vmax.f32 %v735, 0.0
  %v752 = vmax.f32 %v736, 0.0
  %v753 = vmax.f32 %v737, 0.0
  %v754 = vmax.f32 %v738, 0.0
  %v755 = vmax.f32 %v739, 0.0
  %v756 = vmax.f32 %v740, 0.0
  %v757 = vmax.f32 %v741, 0.0
  %v758 = vmax.f32 %v742, 0.0
  %v759 = vmax.f32 %v743, 0.0
  %vm760 = vcmask 261120
  %761 = vst.msk [vmem:[%s3] sm:$0xff] %vm760, %v744
  %762 = vst.msk [vmem:[%s3 + $0x8] sm:$0xff] %vm760, %v745
  %763 = vst.msk [vmem:[%s3 + $0x10] sm:$0xff] %vm760, %v746
  %764 = vst.msk [vmem:[%s3 + $0x18] sm:$0xff] %vm760, %v747
  %765 = vst.msk [vmem:[%s3 + $0x20] sm:$0xff] %vm760, %v748
  %766 = vst.msk [vmem:[%s3 + $0x28] sm:$0xff] %vm760, %v749
  %767 = vst.msk [vmem:[%s3 + $0x30] sm:$0xff] %vm760, %v750
  %768 = vst.msk [vmem:[%s3 + $0x38] sm:$0xff] %vm760, %v751
  %769 = vst.msk [vmem:[%s3 + $0x40] sm:$0xff] %vm760, %v752
  %770 = vst.msk [vmem:[%s3 + $0x48] sm:$0xff] %vm760, %v753
  %771 = vst.msk [vmem:[%s3 + $0x50] sm:$0xff] %vm760, %v754
  %772 = vst.msk [vmem:[%s3 + $0x58] sm:$0xff] %vm760, %v755
  %773 = vst.msk [vmem:[%s3 + $0x60] sm:$0xff] %vm760, %v756
  %774 = vst.msk [vmem:[%s3 + $0x68] sm:$0xff] %vm760, %v757
  %775 = vst.msk [vmem:[%s3 + $0x70] sm:$0xff] %vm760, %v758
  %776 = vst.msk [vmem:[%s3 + $0x78] sm:$0xff] %vm760, %v759
  // Predicated region
  $region14: #{convnet_forward.2} parent=0 // pred_check
    _
  $region15: #{convnet_forward.2} parent=0 // pred_check_branch
    %778 = sbr.rel (0) target = $region17
  $region16: #{convnet_forward.2} parent=0 // pred_region
    _
  $region17: #{convnet_forward.2} parent=0 // pred_fallthru
    _
  // Predicated region
  $region18: #{convnet_forward.2} parent=0 // pred_check
    _
  $region19: #{convnet_forward.2} parent=0 // pred_check_branch
    %780 = sbr.rel (0) target = $region21
  $region20: #{convnet_forward.2} parent=0 // pred_region
    _
  $region21: #{convnet_forward.2} parent=0 // pred_fallthru
    _

// kernel: convnet_forward.3
$region0: #{convnet_forward.3}
  #allocation0 [shape = 'u32[]', space=smem, size = 0x4, offset = 0x4, fixed_abs, tag = 'smem constant byte address 0x4 - core index']
  #allocation1 [shape = 'u32[144,128]{1,0:T(1,128)}', space=vmem, size = 0x12000, scoped, tag = 'internal scratch']
  #allocation2 [shape = 'f32[32,64]{1,0:T(8,128)}', space=vmem, size = 0x4000, scoped, tag = 'scratch operand']
  %s0 = inlined_call_operand.vmem [shape: f32[128,800], index: 0, kind: input, shape index: {}]
  %s1 = inlined_call_operand.vmem [shape: f32[800,64], index: 1, kind: input, shape index: {}]
  %s2 = inlined_call_operand.vmem [shape: f32[1,64], index: 2, kind: input, shape index: {}]
  %s3 = inlined_call_operand.vmem [shape: f32[1024,16], index: 3, kind: input, shape index: {}]
  %s4 = inlined_call_operand.vmem [shape: f32[1,16], index: 4, kind: input, shape index: {}]
  %s5 = inlined_call_operand.vmem [shape: f32[2,16], index: 5, kind: output, shape index: {}]
  %s6 = sld [smem:[#allocation0]]
  $region30: #{convnet_forward.3} parent=0
    _
  %s8 = ssub.s32 1, %s6
  %s9 = scalar_select 0, %s8, %s6
  // Predicated region
  $region2: #{convnet_forward.3} parent=0 // pred_check
    _
  $region3: #{convnet_forward.3} parent=0 // pred_check_branch
    %11 = sbr.rel (0) target = $region5
  $region4: #{convnet_forward.3} parent=0 // pred_region
    _
  $region5: #{convnet_forward.3} parent=0 // pred_fallthru
    _
  // Predicated region
  $region6: #{convnet_forward.3} parent=0 // pred_check
    _
  $region7: #{convnet_forward.3} parent=0 // pred_check_branch
    %13 = sbr.rel (0) target = $region9
  $region8: #{convnet_forward.3} parent=0 // pred_region
    _
  $region9: #{convnet_forward.3} parent=0 // pred_fallthru
    _
  // Predicated region
  $region10: #{convnet_forward.3} parent=0 // pred_check
    _
  $region11: #{convnet_forward.3} parent=0 // pred_check_branch
    %15 = sbr.rel (0) target = $region13
  $region12: #{convnet_forward.3} parent=0 // pred_region
    _
  $region13: #{convnet_forward.3} parent=0 // pred_fallthru
    _
  // Predicated region
  $region14: #{convnet_forward.3} parent=0 // pred_check
    _
  $region15: #{convnet_forward.3} parent=0 // pred_check_branch
    %17 = sbr.rel (0) target = $region17
  $region16: #{convnet_forward.3} parent=0 // pred_region
    _
  $region17: #{convnet_forward.3} parent=0 // pred_fallthru
    _
  // Predicated region
  $region18: #{convnet_forward.3} parent=0 // pred_check
    _
  $region19: #{convnet_forward.3} parent=0 // pred_check_branch
    %19 = sbr.rel (0) target = $region21
  $region20: #{convnet_forward.3} parent=0 // pred_region
    _
  $region21: #{convnet_forward.3} parent=0 // pred_fallthru
    _
  %v20 = vld [vmem:[%s0] sm:$0xff]
  %v21 = vld [vmem:[%s0 + $0x8] sm:$0xff]
  %v22 = vld [vmem:[%s0 + $0x10] sm:$0xff]
  %v23 = vld [vmem:[%s0 + $0x18] sm:$0xff]
  %v24 = vld [vmem:[%s0 + $0x20] sm:$0xff]
  %v25 = vld [vmem:[%s0 + $0x28] sm:$0xff]
  %v26 = vld [vmem:[%s0 + $0x30] sm:$0xff]
  %v27 = vld [vmem:[%s0 + $0x38] sm:$0xff]
  %v28 = vld [vmem:[%s0 + $0x40] sm:$0xff]
  %v29 = vld [vmem:[%s0 + $0x48] sm:$0xff]
  %v30 = vld [vmem:[%s0 + $0x50] sm:$0xff]
  %v31 = vld [vmem:[%s0 + $0x58] sm:$0xff]
  %v32 = vld [vmem:[%s0 + $0x60] sm:$0xff]
  %v33 = vld [vmem:[%s0 + $0x68] sm:$0xff]
  %v34 = vld [vmem:[%s0 + $0x70] sm:$0xff]
  %v35 = vld [vmem:[%s0 + $0x78] sm:$0xff]
  %v36 = vld [vmem:[%s0 + $0x80] sm:$0xff]
  %v37 = vld [vmem:[%s0 + $0x88] sm:$0xff]
  %v38 = vld [vmem:[%s0 + $0x90] sm:$0xff]
  %v39 = vld [vmem:[%s0 + $0x98] sm:$0xff]
  %v40 = vld [vmem:[%s0 + $0xa0] sm:$0xff]
  %v41 = vld [vmem:[%s0 + $0xa8] sm:$0xff]
  %v42 = vld [vmem:[%s0 + $0xb0] sm:$0xff]
  %v43 = vld [vmem:[%s0 + $0xb8] sm:$0xff]
  %v44 = vld [vmem:[%s0 + $0xc0] sm:$0xff]
  %v45 = vld [vmem:[%s0 + $0xc8] sm:$0xff]
  %v46 = vld [vmem:[%s0 + $0xd0] sm:$0xff]
  %v47 = vld [vmem:[%s0 + $0xd8] sm:$0xff]
  %v48 = vld [vmem:[%s0 + $0xe0] sm:$0xff]
  %v49 = vld [vmem:[%s0 + $0xe8] sm:$0xff]
  %v50 = vld [vmem:[%s0 + $0xf0] sm:$0xff]
  %v51 = vld [vmem:[%s0 + $0xf8] sm:$0xff]
  %v52 = vld [vmem:[%s0 + $0x100] sm:$0xff]
  %v53 = vld [vmem:[%s0 + $0x108] sm:$0xff]
  %v54 = vld [vmem:[%s0 + $0x110] sm:$0xff]
  %v55 = vld [vmem:[%s0 + $0x118] sm:$0xff]
  %v56 = vld [vmem:[%s0 + $0x120] sm:$0xff]
  %v57 = vld [vmem:[%s0 + $0x128] sm:$0xff]
  %v58 = vld [vmem:[%s0 + $0x130] sm:$0xff]
  %v59 = vld [vmem:[%s0 + $0x138] sm:$0xff]
  %v60 = vld [vmem:[%s0 + $0x140] sm:$0xff]
  %v61 = vld [vmem:[%s0 + $0x148] sm:$0xff]
  %v62 = vld [vmem:[%s0 + $0x150] sm:$0xff]
  %v63 = vld [vmem:[%s0 + $0x158] sm:$0xff]
  %v64 = vld [vmem:[%s0 + $0x160] sm:$0xff]
  %v65 = vld [vmem:[%s0 + $0x168] sm:$0xff]
  %v66 = vld [vmem:[%s0 + $0x170] sm:$0xff]
  %v67 = vld [vmem:[%s0 + $0x178] sm:$0xff]
  %v68 = vld [vmem:[%s0 + $0x180] sm:$0xff]
  %v69 = vld [vmem:[%s0 + $0x188] sm:$0xff]
  %v70 = vld [vmem:[%s0 + $0x190] sm:$0xff]
  %v71 = vld [vmem:[%s0 + $0x198] sm:$0xff]
  %v72 = vld [vmem:[%s0 + $0x1a0] sm:$0xff]
  %v73 = vld [vmem:[%s0 + $0x1a8] sm:$0xff]
  %v74 = vld [vmem:[%s0 + $0x1b0] sm:$0xff]
  %v75 = vld [vmem:[%s0 + $0x1b8] sm:$0xff]
  %v76 = vld [vmem:[%s0 + $0x1c0] sm:$0xff]
  %v77 = vld [vmem:[%s0 + $0x1c8] sm:$0xff]
  %v78 = vld [vmem:[%s0 + $0x1d0] sm:$0xff]
  %v79 = vld [vmem:[%s0 + $0x1d8] sm:$0xff]
  %v80 = vld [vmem:[%s0 + $0x1e0] sm:$0xff]
  %v81 = vld [vmem:[%s0 + $0x1e8] sm:$0xff]
  %v82 = vld [vmem:[%s0 + $0x1f0] sm:$0xff]
  %v83 = vld [vmem:[%s0 + $0x1f8] sm:$0xff]
  %v84 = vld [vmem:[%s0 + $0x200] sm:$0xff]
  %v85 = vld [vmem:[%s0 + $0x208] sm:$0xff]
  %v86 = vld [vmem:[%s0 + $0x210] sm:$0xff]
  %v87 = vld [vmem:[%s0 + $0x218] sm:$0xff]
  %v88 = vld [vmem:[%s0 + $0x220] sm:$0xff]
  %v89 = vld [vmem:[%s0 + $0x228] sm:$0xff]
  %v90 = vld [vmem:[%s0 + $0x230] sm:$0xff]
  %v91 = vld [vmem:[%s0 + $0x238] sm:$0xff]
  %v92 = vld [vmem:[%s0 + $0x240] sm:$0xff]
  %v93 = vld [vmem:[%s0 + $0x248] sm:$0xff]
  %v94 = vld [vmem:[%s0 + $0x250] sm:$0xff]
  %v95 = vld [vmem:[%s0 + $0x258] sm:$0xff]
  %v96 = vld [vmem:[%s0 + $0x260] sm:$0xff]
  %v97 = vld [vmem:[%s0 + $0x268] sm:$0xff]
  %v98 = vld [vmem:[%s0 + $0x270] sm:$0xff]
  %v99 = vld [vmem:[%s0 + $0x278] sm:$0xff]
  %v100 = vld [vmem:[%s0 + $0x280] sm:$0xff]
  %v101 = vld [vmem:[%s0 + $0x288] sm:$0xff]
  %v102 = vld [vmem:[%s0 + $0x290] sm:$0xff]
  %v103 = vld [vmem:[%s0 + $0x298] sm:$0xff]
  %v104 = vld [vmem:[%s0 + $0x2a0] sm:$0xff]
  %v105 = vld [vmem:[%s0 + $0x2a8] sm:$0xff]
  %v106 = vld [vmem:[%s0 + $0x2b0] sm:$0xff]
  %v107 = vld [vmem:[%s0 + $0x2b8] sm:$0xff]
  %v108 = vld [vmem:[%s0 + $0x2c0] sm:$0xff]
  %v109 = vld [vmem:[%s0 + $0x2c8] sm:$0xff]
  %v110 = vld [vmem:[%s0 + $0x2d0] sm:$0xff]
  %v111 = vld [vmem:[%s0 + $0x2d8] sm:$0xff]
  %v112 = vld [vmem:[%s0 + $0x2e0] sm:$0xff]
  %v113 = vld [vmem:[%s0 + $0x2e8] sm:$0xff]
  %v114 = vld [vmem:[%s0 + $0x2f0] sm:$0xff]
  %v115 = vld [vmem:[%s0 + $0x2f8] sm:$0xff]
  %v116 = vld [vmem:[%s0 + $0x300] sm:$0xff]
  %v117 = vld [vmem:[%s0 + $0x308] sm:$0xff]
  %v118 = vld [vmem:[%s0 + $0x310] sm:$0xff]
  %v119 = vld [vmem:[%s0 + $0x318] sm:$0xff]
  %v120 = vld [vmem:[%s0 + $0x320] sm:$0xff]
  %v121 = vld [vmem:[%s0 + $0x328] sm:$0xff]
  %v122 = vld [vmem:[%s0 + $0x330] sm:$0xff]
  %v123 = vld [vmem:[%s0 + $0x338] sm:$0xff]
  %v124 = vld [vmem:[%s0 + $0x340] sm:$0xff]
  %v125 = vld [vmem:[%s0 + $0x348] sm:$0xff]
  %v126 = vld [vmem:[%s0 + $0x350] sm:$0xff]
  %v127 = vld [vmem:[%s0 + $0x358] sm:$0xff]
  %v128 = vld [vmem:[%s0 + $0x360] sm:$0xff]
  %v129 = vld [vmem:[%s0 + $0x368] sm:$0xff]
  %v130 = vld [vmem:[%s0 + $0x370] sm:$0xff]
  %v131 = vld [vmem:[%s0 + $0x378] sm:$0xff]
  %v132 = vld [vmem:[%s1] sm:$0xff]
  %v133 = vld [vmem:[%s1 + $0x8] sm:$0xff]
  %v134 = vld [vmem:[%s1 + $0x10] sm:$0xff]
  %v135 = vld [vmem:[%s1 + $0x18] sm:$0xff]
  %v136 = vld [vmem:[%s1 + $0x20] sm:$0xff]
  %v137 = vld [vmem:[%s1 + $0x28] sm:$0xff]
  %v138 = vld [vmem:[%s1 + $0x30] sm:$0xff]
  %v139 = vld [vmem:[%s1 + $0x38] sm:$0xff]
  %v140 = vld [vmem:[%s1 + $0x40] sm:$0xff]
  %v141 = vld [vmem:[%s1 + $0x48] sm:$0xff]
  %v142 = vld [vmem:[%s1 + $0x50] sm:$0xff]
  %v143 = vld [vmem:[%s1 + $0x58] sm:$0xff]
  %v144 = vld [vmem:[%s1 + $0x60] sm:$0xff]
  %v145 = vld [vmem:[%s1 + $0x68] sm:$0xff]
  %v146 = vld [vmem:[%s1 + $0x70] sm:$0xff]
  %v147 = vld [vmem:[%s1 + $0x78] sm:$0xff]
  %v148 = vld [vmem:[%s1 + $0x80] sm:$0xff]
  %v149 = vld [vmem:[%s1 + $0x88] sm:$0xff]
  %v150 = vld [vmem:[%s1 + $0x90] sm:$0xff]
  %v151 = vld [vmem:[%s1 + $0x98] sm:$0xff]
  %v152 = vld [vmem:[%s1 + $0xa0] sm:$0xff]
  %v153 = vld [vmem:[%s1 + $0xa8] sm:$0xff]
  %v154 = vld [vmem:[%s1 + $0xb0] sm:$0xff]
  %v155 = vld [vmem:[%s1 + $0xb8] sm:$0xff]
  %v156 = vld [vmem:[%s1 + $0xc0] sm:$0xff]
  %v157 = vld [vmem:[%s1 + $0xc8] sm:$0xff]
  %v158 = vld [vmem:[%s1 + $0xd0] sm:$0xff]
  %v159 = vld [vmem:[%s1 + $0xd8] sm:$0xff]
  %v160 = vld [vmem:[%s1 + $0xe0] sm:$0xff]
  %v161 = vld [vmem:[%s1 + $0xe8] sm:$0xff]
  %v162 = vld [vmem:[%s1 + $0xf0] sm:$0xff]
  %v163 = vld [vmem:[%s1 + $0xf8] sm:$0xff]
  %v164 = vld [vmem:[%s1 + $0x100] sm:$0xff]
  %v165 = vld [vmem:[%s1 + $0x108] sm:$0xff]
  %v166 = vld [vmem:[%s1 + $0x110] sm:$0xff]
  %v167 = vld [vmem:[%s1 + $0x118] sm:$0xff]
  %v168 = vld [vmem:[%s1 + $0x120] sm:$0xff]
  %v169 = vld [vmem:[%s1 + $0x128] sm:$0xff]
  %v170 = vld [vmem:[%s1 + $0x130] sm:$0xff]
  %v171 = vld [vmem:[%s1 + $0x138] sm:$0xff]
  %v172 = vld [vmem:[%s1 + $0x140] sm:$0xff]
  %v173 = vld [vmem:[%s1 + $0x148] sm:$0xff]
  %v174 = vld [vmem:[%s1 + $0x150] sm:$0xff]
  %v175 = vld [vmem:[%s1 + $0x158] sm:$0xff]
  %v176 = vld [vmem:[%s1 + $0x160] sm:$0xff]
  %v177 = vld [vmem:[%s1 + $0x168] sm:$0xff]
  %v178 = vld [vmem:[%s1 + $0x170] sm:$0xff]
  %v179 = vld [vmem:[%s1 + $0x178] sm:$0xff]
  %v180 = vld [vmem:[%s1 + $0x180] sm:$0xff]
  %v181 = vld [vmem:[%s1 + $0x188] sm:$0xff]
  %v182 = vld [vmem:[%s1 + $0x190] sm:$0xff]
  %v183 = vld [vmem:[%s1 + $0x198] sm:$0xff]
  %v184 = vld [vmem:[%s1 + $0x1a0] sm:$0xff]
  %v185 = vld [vmem:[%s1 + $0x1a8] sm:$0xff]
  %v186 = vld [vmem:[%s1 + $0x1b0] sm:$0xff]
  %v187 = vld [vmem:[%s1 + $0x1b8] sm:$0xff]
  %v188 = vld [vmem:[%s1 + $0x1c0] sm:$0xff]
  %v189 = vld [vmem:[%s1 + $0x1c8] sm:$0xff]
  %v190 = vld [vmem:[%s1 + $0x1d0] sm:$0xff]
  %v191 = vld [vmem:[%s1 + $0x1d8] sm:$0xff]
  %v192 = vld [vmem:[%s1 + $0x1e0] sm:$0xff]
  %v193 = vld [vmem:[%s1 + $0x1e8] sm:$0xff]
  %v194 = vld [vmem:[%s1 + $0x1f0] sm:$0xff]
  %v195 = vld [vmem:[%s1 + $0x1f8] sm:$0xff]
  %v196 = vld [vmem:[%s1 + $0x200] sm:$0xff]
  %v197 = vld [vmem:[%s1 + $0x208] sm:$0xff]
  %v198 = vld [vmem:[%s1 + $0x210] sm:$0xff]
  %v199 = vld [vmem:[%s1 + $0x218] sm:$0xff]
  %v200 = vld [vmem:[%s1 + $0x220] sm:$0xff]
  %v201 = vld [vmem:[%s1 + $0x228] sm:$0xff]
  %v202 = vld [vmem:[%s1 + $0x230] sm:$0xff]
  %v203 = vld [vmem:[%s1 + $0x238] sm:$0xff]
  %v204 = vld [vmem:[%s1 + $0x240] sm:$0xff]
  %v205 = vld [vmem:[%s1 + $0x248] sm:$0xff]
  %v206 = vld [vmem:[%s1 + $0x250] sm:$0xff]
  %v207 = vld [vmem:[%s1 + $0x258] sm:$0xff]
  %v208 = vld [vmem:[%s1 + $0x260] sm:$0xff]
  %v209 = vld [vmem:[%s1 + $0x268] sm:$0xff]
  %v210 = vld [vmem:[%s1 + $0x270] sm:$0xff]
  %v211 = vld [vmem:[%s1 + $0x278] sm:$0xff]
  %v212 = vld [vmem:[%s1 + $0x280] sm:$0xff]
  %v213 = vld [vmem:[%s1 + $0x288] sm:$0xff]
  %v214 = vld [vmem:[%s1 + $0x290] sm:$0xff]
  %v215 = vld [vmem:[%s1 + $0x298] sm:$0xff]
  %v216 = vld [vmem:[%s1 + $0x2a0] sm:$0xff]
  %v217 = vld [vmem:[%s1 + $0x2a8] sm:$0xff]
  %v218 = vld [vmem:[%s1 + $0x2b0] sm:$0xff]
  %v219 = vld [vmem:[%s1 + $0x2b8] sm:$0xff]
  %v220 = vld [vmem:[%s1 + $0x2c0] sm:$0xff]
  %v221 = vld [vmem:[%s1 + $0x2c8] sm:$0xff]
  %v222 = vld [vmem:[%s1 + $0x2d0] sm:$0xff]
  %v223 = vld [vmem:[%s1 + $0x2d8] sm:$0xff]
  %v224 = vld [vmem:[%s1 + $0x2e0] sm:$0xff]
  %v225 = vld [vmem:[%s1 + $0x2e8] sm:$0xff]
  %v226 = vld [vmem:[%s1 + $0x2f0] sm:$0xff]
  %v227 = vld [vmem:[%s1 + $0x2f8] sm:$0xff]
  %v228 = vld [vmem:[%s1 + $0x300] sm:$0xff]
  %v229 = vld [vmem:[%s1 + $0x308] sm:$0xff]
  %v230 = vld [vmem:[%s1 + $0x310] sm:$0xff]
  %v231 = vld [vmem:[%s1 + $0x318] sm:$0xff]
  %vm232 = vcmask 261120
  %v234 = vsel %vm232, %v26, 0
  %v237 = vsel %vm232, %v33, 0
  %v240 = vsel %vm232, %v40, 0
  %v243 = vsel %vm232, %v47, 0
  %v246 = vsel %vm232, %v54, 0
  %v249 = vsel %vm232, %v61, 0
  %v252 = vsel %vm232, %v68, 0
  %v255 = vsel %vm232, %v75, 0
  %v258 = vsel %vm232, %v82, 0
  %v261 = vsel %vm232, %v89, 0
  %v264 = vsel %vm232, %v96, 0
  %v267 = vsel %vm232, %v103, 0
  %v270 = vsel %vm232, %v110, 0
  %v273 = vsel %vm232, %v117, 0
  %v276 = vsel %vm232, %v124, 0
  %v279 = vsel %vm232, %v131, 0
  %281 = vmatprep.subr.mxu0 0.0
  %282 = vmatpush1.msra.mxu0 %v147
  %283 = vmatprep.subr.mxu0 0.0
  %284 = vmatpush1.msra.mxu0 %v146
  %285 = vmatprep.subr.mxu0 0.0
  %286 = vmatpush1.msra.mxu0 %v145
  %287 = vmatprep.subr.mxu0 0.0
  %288 = vmatpush1.msra.mxu0 %v144
  %289 = vmatprep.subr.mxu0 0.0
  %290 = vmatpush1.msra.mxu0 %v143
  %291 = vmatprep.subr.mxu0 0.0
  %292 = vmatpush1.msra.mxu0 %v142
  %293 = vmatprep.subr.mxu0 0.0
  %294 = vmatpush1.msra.mxu0 %v141
  %295 = vmatprep.subr.mxu0 0.0
  %296 = vmatpush1.msra.mxu0 %v140
  %297 = vmatprep.subr.mxu0 0.0
  %298 = vmatpush1.msra.mxu0 %v139
  %299 = vmatprep.subr.mxu0 0.0
  %300 = vmatpush1.msra.mxu0 %v138
  %301 = vmatprep.subr.mxu0 0.0
  %302 = vmatpush1.msra.mxu0 %v137
  %303 = vmatprep.subr.mxu0 0.0
  %304 = vmatpush1.msra.mxu0 %v136
  %305 = vmatprep.subr.mxu0 0.0
  %306 = vmatpush1.msra.mxu0 %v135
  %307 = vmatprep.subr.mxu0 0.0
  %308 = vmatpush1.msra.mxu0 %v134
  %309 = vmatprep.subr.mxu0 0.0
  %310 = vmatpush1.msra.mxu0 %v133
  %311 = vmatprep.subr.mxu0 0.0
  %312 = vmatpush1.msra.mxu0 %v132
  %313 = vmatprep.subr.mxu0 0.0
  %314 = vmatpush2.msra.mxu0 %v163
  %315 = vmatprep.subr.mxu0 0.0
  %316 = vmatpush2.msra.mxu0 %v162
  %317 = vmatprep.subr.mxu0 0.0
  %318 = vmatpush2.msra.mxu0 %v161
  %319 = vmatprep.subr.mxu0 0.0
  %320 = vmatpush2.msra.mxu0 %v160
  %321 = vmatprep.subr.mxu0 0.0
  %322 = vmatpush2.msra.mxu0 %v159
  %323 = vmatprep.subr.mxu0 0.0
  %324 = vmatpush2.msra.mxu0 %v158
  %325 = vmatprep.subr.mxu0 0.0
  %326 = vmatpush2.msra.mxu0 %v157
  %327 = vmatprep.subr.mxu0 0.0
  %328 = vmatpush2.msra.mxu0 %v156
  %329 = vmatprep.subr.mxu0 0.0
  %330 = vmatpush2.msra.mxu0 %v155
  %331 = vmatprep.subr.mxu0 0.0
  %332 = vmatpush2.msra.mxu0 %v154
  %333 = vmatprep.subr.mxu0 0.0
  %334 = vmatpush2.msra.mxu0 %v153
  %335 = vmatprep.subr.mxu0 0.0
  %336 = vmatpush2.msra.mxu0 %v152
  %337 = vmatprep.subr.mxu0 0.0
  %338 = vmatpush2.msra.mxu0 %v151
  %339 = vmatprep.subr.mxu0 0.0
  %340 = vmatpush2.msra.mxu0 %v150
  %341 = vmatprep.subr.mxu0 0.0
  %342 = vmatpush2.msra.mxu0 %v149
  %343 = vmatprep.subr.mxu0 0.0
  %344 = vmatpush2.msra.mxu0 %v148
  %345 = vmatprep.mubr.f32.mxu0 %v21
  %346 = vmatmul.mubr.f32.gmra.mxu0 %v20
  %v347 = vpop.f32.mrf.mxu0
  %v348 = vadd.f32 0.0, %v347
  %v349 = vpop.f32.mrf.mxu0
  %350 = vmatprep.mubr.f32.mxu0 %v28
  %351 = vmatmul.mubr.f32.gmra.mxu0 %v27
  %v352 = vpop.f32.mrf.mxu0
  %v353 = vadd.f32 0.0, %v352
  %v354 = vpop.f32.mrf.mxu0
  %355 = vmatprep.mubr.f32.mxu0 %v35
  %356 = vmatmul.mubr.f32.gmra.mxu0 %v34
  %v357 = vpop.f32.mrf.mxu0
  %v358 = vadd.f32 0.0, %v357
  %v359 = vpop.f32.mrf.mxu0
  %360 = vmatprep.mubr.f32.mxu0 %v42
  %361 = vmatmul.mubr.f32.gmra.mxu0 %v41
  %v362 = vpop.f32.mrf.mxu0
  %v363 = vadd.f32 0.0, %v362
  %v364 = vpop.f32.mrf.mxu0
  %365 = vmatprep.mubr.f32.mxu0 %v49
  %366 = vmatmul.mubr.f32.gmra.mxu0 %v48
  %v367 = vpop.f32.mrf.mxu0
  %v368 = vadd.f32 0.0, %v367
  %v369 = vpop.f32.mrf.mxu0
  %370 = vmatprep.mubr.f32.mxu0 %v56
  %371 = vmatmul.mubr.f32.gmra.mxu0 %v55
  %v372 = vpop.f32.mrf.mxu0
  %v373 = vadd.f32 0.0, %v372
  %v374 = vpop.f32.mrf.mxu0
  %375 = vmatprep.mubr.f32.mxu0 %v63
  %376 = vmatmul.mubr.f32.gmra.mxu0 %v62
  %v377 = vpop.f32.mrf.mxu0
  %v378 = vadd.f32 0.0, %v377
  %v379 = vpop.f32.mrf.mxu0
  %380 = vmatprep.mubr.f32.mxu0 %v70
  %381 = vmatmul.mubr.f32.gmra.mxu0 %v69
  %v382 = vpop.f32.mrf.mxu0
  %v383 = vadd.f32 0.0, %v382
  %v384 = vpop.f32.mrf.mxu0
  %385 = vmatprep.mubr.f32.mxu0 %v77
  %386 = vmatmul.mubr.f32.gmra.mxu0 %v76
  %v387 = vpop.f32.mrf.mxu0
  %v388 = vadd.f32 0.0, %v387
  %v389 = vpop.f32.mrf.mxu0
  %390 = vmatprep.mubr.f32.mxu0 %v84
  %391 = vmatmul.mubr.f32.gmra.mxu0 %v83
  %v392 = vpop.f32.mrf.mxu0
  %v393 = vadd.f32 0.0, %v392
  %v394 = vpop.f32.mrf.mxu0
  %395 = vmatprep.mubr.f32.mxu0 %v91
  %396 = vmatmul.mubr.f32.gmra.mxu0 %v90
  %v397 = vpop.f32.mrf.mxu0
  %v398 = vadd.f32 0.0, %v397
  %v399 = vpop.f32.mrf.mxu0
  %400 = vmatprep.mubr.f32.mxu0 %v98
  %401 = vmatmul.mubr.f32.gmra.mxu0 %v97
  %v402 = vpop.f32.mrf.mxu0
  %v403 = vadd.f32 0.0, %v402
  %v404 = vpop.f32.mrf.mxu0
  %405 = vmatprep.mubr.f32.mxu0 %v105
  %406 = vmatmul.mubr.f32.gmra.mxu0 %v104
  %v407 = vpop.f32.mrf.mxu0
  %v408 = vadd.f32 0.0, %v407
  %v409 = vpop.f32.mrf.mxu0
  %410 = vmatprep.mubr.f32.mxu0 %v112
  %411 = vmatmul.mubr.f32.gmra.mxu0 %v111
  %v412 = vpop.f32.mrf.mxu0
  %v413 = vadd.f32 0.0, %v412
  %v414 = vpop.f32.mrf.mxu0
  %415 = vmatprep.mubr.f32.mxu0 %v119
  %416 = vmatmul.mubr.f32.gmra.mxu0 %v118
  %v417 = vpop.f32.mrf.mxu0
  %v418 = vadd.f32 0.0, %v417
  %v419 = vpop.f32.mrf.mxu0
  %420 = vmatprep.mubr.f32.mxu0 %v126
  %421 = vmatmul.mubr.f32.gmra.mxu0 %v125
  %v422 = vpop.f32.mrf.mxu0
  %v423 = vadd.f32 0.0, %v422
  %v424 = vpop.f32.mrf.mxu0
  %425 = vdwg.mxu0
  %426 = vmatprep.subr.mxu0 0.0
  %427 = vmatpush1.msra.mxu0 %v179
  %428 = vmatprep.subr.mxu0 0.0
  %429 = vmatpush1.msra.mxu0 %v178
  %430 = vmatprep.subr.mxu0 0.0
  %431 = vmatpush1.msra.mxu0 %v177
  %432 = vmatprep.subr.mxu0 0.0
  %433 = vmatpush1.msra.mxu0 %v176
  %434 = vmatprep.subr.mxu0 0.0
  %435 = vmatpush1.msra.mxu0 %v175
  %436 = vmatprep.subr.mxu0 0.0
  %437 = vmatpush1.msra.mxu0 %v174
  %438 = vmatprep.subr.mxu0 0.0
  %439 = vmatpush1.msra.mxu0 %v173
  %440 = vmatprep.subr.mxu0 0.0
  %441 = vmatpush1.msra.mxu0 %v172
  %442 = vmatprep.subr.mxu0 0.0
  %443 = vmatpush1.msra.mxu0 %v171
  %444 = vmatprep.subr.mxu0 0.0
  %445 = vmatpush1.msra.mxu0 %v170
  %446 = vmatprep.subr.mxu0 0.0
  %447 = vmatpush1.msra.mxu0 %v169
  %448 = vmatprep.subr.mxu0 0.0
  %449 = vmatpush1.msra.mxu0 %v168
  %450 = vmatprep.subr.mxu0 0.0
  %451 = vmatpush1.msra.mxu0 %v167
  %452 = vmatprep.subr.mxu0 0.0
  %453 = vmatpush1.msra.mxu0 %v166
  %454 = vmatprep.subr.mxu0 0.0
  %455 = vmatpush1.msra.mxu0 %v165
  %456 = vmatprep.subr.mxu0 0.0
  %457 = vmatpush1.msra.mxu0 %v164
  %458 = vmatprep.subr.mxu0 0.0
  %459 = vmatpush2.msra.mxu0 %v195
  %460 = vmatprep.subr.mxu0 0.0
  %461 = vmatpush2.msra.mxu0 %v194
  %462 = vmatprep.subr.mxu0 0.0
  %463 = vmatpush2.msra.mxu0 %v193
  %464 = vmatprep.subr.mxu0 0.0
  %465 = vmatpush2.msra.mxu0 %v192
  %466 = vmatprep.subr.mxu0 0.0
  %467 = vmatpush2.msra.mxu0 %v191
  %468 = vmatprep.subr.mxu0 0.0
  %469 = vmatpush2.msra.mxu0 %v190
  %470 = vmatprep.subr.mxu0 0.0
  %471 = vmatpush2.msra.mxu0 %v189
  %472 = vmatprep.subr.mxu0 0.0
  %473 = vmatpush2.msra.mxu0 %v188
  %474 = vmatprep.subr.mxu0 0.0
  %475 = vmatpush2.msra.mxu0 %v187
  %476 = vmatprep.subr.mxu0 0.0
  %477 = vmatpush2.msra.mxu0 %v186
  %478 = vmatprep.subr.mxu0 0.0
  %479 = vmatpush2.msra.mxu0 %v185
  %480 = vmatprep.subr.mxu0 0.0
  %481 = vmatpush2.msra.mxu0 %v184
  %482 = vmatprep.subr.mxu0 0.0
  %483 = vmatpush2.msra.mxu0 %v183
  %484 = vmatprep.subr.mxu0 0.0
  %485 = vmatpush2.msra.mxu0 %v182
  %486 = vmatprep.subr.mxu0 0.0
  %487 = vmatpush2.msra.mxu0 %v181
  %488 = vmatprep.subr.mxu0 0.0
  %489 = vmatpush2.msra.mxu0 %v180
  %490 = vmatprep.mubr.f32.mxu0 %v23
  %491 = vmatmul.mubr.f32.gmra.mxu0 %v22
  %v492 = vpop.f32.mrf.mxu0
  %v493 = vadd.f32 %v348, %v492
  %v494 = vpop.f32.mrf.mxu0
  %495 = vmatprep.mubr.f32.mxu0 %v30
  %496 = vmatmul.mubr.f32.gmra.mxu0 %v29
  %v497 = vpop.f32.mrf.mxu0
  %v498 = vadd.f32 %v353, %v497
  %v499 = vpop.f32.mrf.mxu0
  %500 = vmatprep.mubr.f32.mxu0 %v37
  %501 = vmatmul.mubr.f32.gmra.mxu0 %v36
  %v502 = vpop.f32.mrf.mxu0
  %v503 = vadd.f32 %v358, %v502
  %v504 = vpop.f32.mrf.mxu0
  %505 = vmatprep.mubr.f32.mxu0 %v44
  %506 = vmatmul.mubr.f32.gmra.mxu0 %v43
  %v507 = vpop.f32.mrf.mxu0
  %v508 = vadd.f32 %v363, %v507
  %v509 = vpop.f32.mrf.mxu0
  %510 = vmatprep.mubr.f32.mxu0 %v51
  %511 = vmatmul.mubr.f32.gmra.mxu0 %v50
  %v512 = vpop.f32.mrf.mxu0
  %v513 = vadd.f32 %v368, %v512
  %v514 = vpop.f32.mrf.mxu0
  %515 = vmatprep.mubr.f32.mxu0 %v58
  %516 = vmatmul.mubr.f32.gmra.mxu0 %v57
  %v517 = vpop.f32.mrf.mxu0
  %v518 = vadd.f32 %v373, %v517
  %v519 = vpop.f32.mrf.mxu0
  %520 = vmatprep.mubr.f32.mxu0 %v65
  %521 = vmatmul.mubr.f32.gmra.mxu0 %v64
  %v522 = vpop.f32.mrf.mxu0
  %v523 = vadd.f32 %v378, %v522
  %v524 = vpop.f32.mrf.mxu0
  %525 = vmatprep.mubr.f32.mxu0 %v72
  %526 = vmatmul.mubr.f32.gmra.mxu0 %v71
  %v527 = vpop.f32.mrf.mxu0
  %v528 = vadd.f32 %v383, %v527
  %v529 = vpop.f32.mrf.mxu0
  %530 = vmatprep.mubr.f32.mxu0 %v79
  %531 = vmatmul.mubr.f32.gmra.mxu0 %v78
  %v532 = vpop.f32.mrf.mxu0
  %v533 = vadd.f32 %v388, %v532
  %v534 = vpop.f32.mrf.mxu0
  %535 = vmatprep.mubr.f32.mxu0 %v86
  %536 = vmatmul.mubr.f32.gmra.mxu0 %v85
  %v537 = vpop.f32.mrf.mxu0
  %v538 = vadd.f32 %v393, %v537
  %v539 = vpop.f32.mrf.mxu0
  %540 = vmatprep.mubr.f32.mxu0 %v93
  %541 = vmatmul.mubr.f32.gmra.mxu0 %v92
  %v542 = vpop.f32.mrf.mxu0
  %v543 = vadd.f32 %v398, %v542
  %v544 = vpop.f32.mrf.mxu0
  %545 = vmatprep.mubr.f32.mxu0 %v100
  %546 = vmatmul.mubr.f32.gmra.mxu0 %v99
  %v547 = vpop.f32.mrf.mxu0
  %v548 = vadd.f32 %v403, %v547
  %v549 = vpop.f32.mrf.mxu0
  %550 = vmatprep.mubr.f32.mxu0 %v107
  %551 = vmatmul.mubr.f32.gmra.mxu0 %v106
  %v552 = vpop.f32.mrf.mxu0
  %v553 = vadd.f32 %v408, %v552
  %v554 = vpop.f32.mrf.mxu0
  %555 = vmatprep.mubr.f32.mxu0 %v114
  %556 = vmatmul.mubr.f32.gmra.mxu0 %v113
  %v557 = vpop.f32.mrf.mxu0
  %v558 = vadd.f32 %v413, %v557
  %v559 = vpop.f32.mrf.mxu0
  %560 = vmatprep.mubr.f32.mxu0 %v121
  %561 = vmatmul.mubr.f32.gmra.mxu0 %v120
  %v562 = vpop.f32.mrf.mxu0
  %v563 = vadd.f32 %v418, %v562
  %v564 = vpop.f32.mrf.mxu0
  %565 = vmatprep.mubr.f32.mxu0 %v128
  %566 = vmatmul.mubr.f32.gmra.mxu0 %v127
  %v567 = vpop.f32.mrf.mxu0
  %v568 = vadd.f32 %v423, %v567
  %v569 = vpop.f32.mrf.mxu0
  %570 = vdwg.mxu0
  %571 = vmatprep.subr.mxu0 0.0
  %572 = vmatpush1.msra.mxu0 %v211
  %573 = vmatprep.subr.mxu0 0.0
  %574 = vmatpush1.msra.mxu0 %v210
  %575 = vmatprep.subr.mxu0 0.0
  %576 = vmatpush1.msra.mxu0 %v209
  %577 = vmatprep.subr.mxu0 0.0
  %578 = vmatpush1.msra.mxu0 %v208
  %579 = vmatprep.subr.mxu0 0.0
  %580 = vmatpush1.msra.mxu0 %v207
  %581 = vmatprep.subr.mxu0 0.0
  %582 = vmatpush1.msra.mxu0 %v206
  %583 = vmatprep.subr.mxu0 0.0
  %584 = vmatpush1.msra.mxu0 %v205
  %585 = vmatprep.subr.mxu0 0.0
  %586 = vmatpush1.msra.mxu0 %v204
  %587 = vmatprep.subr.mxu0 0.0
  %588 = vmatpush1.msra.mxu0 %v203
  %589 = vmatprep.subr.mxu0 0.0
  %590 = vmatpush1.msra.mxu0 %v202
  %591 = vmatprep.subr.mxu0 0.0
  %592 = vmatpush1.msra.mxu0 %v201
  %593 = vmatprep.subr.mxu0 0.0
  %594 = vmatpush1.msra.mxu0 %v200
  %595 = vmatprep.subr.mxu0 0.0
  %596 = vmatpush1.msra.mxu0 %v199
  %597 = vmatprep.subr.mxu0 0.0
  %598 = vmatpush1.msra.mxu0 %v198
  %599 = vmatprep.subr.mxu0 0.0
  %600 = vmatpush1.msra.mxu0 %v197
  %601 = vmatprep.subr.mxu0 0.0
  %602 = vmatpush1.msra.mxu0 %v196
  %603 = vmatprep.subr.mxu0 0.0
  %604 = vmatpush2.msra.mxu0 %v227
  %605 = vmatprep.subr.mxu0 0.0
  %606 = vmatpush2.msra.mxu0 %v226
  %607 = vmatprep.subr.mxu0 0.0
  %608 = vmatpush2.msra.mxu0 %v225
  %609 = vmatprep.subr.mxu0 0.0
  %610 = vmatpush2.msra.mxu0 %v224
  %611 = vmatprep.subr.mxu0 0.0
  %612 = vmatpush2.msra.mxu0 %v223
  %613 = vmatprep.subr.mxu0 0.0
  %614 = vmatpush2.msra.mxu0 %v222
  %615 = vmatprep.subr.mxu0 0.0
  %616 = vmatpush2.msra.mxu0 %v221
  %617 = vmatprep.subr.mxu0 0.0
  %618 = vmatpush2.msra.mxu0 %v220
  %619 = vmatprep.subr.mxu0 0.0
  %620 = vmatpush2.msra.mxu0 %v219
  %621 = vmatprep.subr.mxu0 0.0
  %622 = vmatpush2.msra.mxu0 %v218
  %623 = vmatprep.subr.mxu0 0.0
  %624 = vmatpush2.msra.mxu0 %v217
  %625 = vmatprep.subr.mxu0 0.0
  %626 = vmatpush2.msra.mxu0 %v216
  %627 = vmatprep.subr.mxu0 0.0
  %628 = vmatpush2.msra.mxu0 %v215
  %629 = vmatprep.subr.mxu0 0.0
  %630 = vmatpush2.msra.mxu0 %v214
  %631 = vmatprep.subr.mxu0 0.0
  %632 = vmatpush2.msra.mxu0 %v213
  %633 = vmatprep.subr.mxu0 0.0
  %634 = vmatpush2.msra.mxu0 %v212
  %635 = vmatprep.mubr.f32.mxu0 %v25
  %636 = vmatmul.mubr.f32.gmra.mxu0 %v24
  %v637 = vpop.f32.mrf.mxu0
  %v638 = vadd.f32 %v493, %v637
  %v639 = vpop.f32.mrf.mxu0
  %640 = vmatprep.mubr.f32.mxu0 %v32
  %641 = vmatmul.mubr.f32.gmra.mxu0 %v31
  %v642 = vpop.f32.mrf.mxu0
  %v643 = vadd.f32 %v498, %v642
  %v644 = vpop.f32.mrf.mxu0
  %645 = vmatprep.mubr.f32.mxu0 %v39
  %646 = vmatmul.mubr.f32.gmra.mxu0 %v38
  %v647 = vpop.f32.mrf.mxu0
  %v648 = vadd.f32 %v503, %v647
  %v649 = vpop.f32.mrf.mxu0
  %650 = vmatprep.mubr.f32.mxu0 %v46
  %651 = vmatmul.mubr.f32.gmra.mxu0 %v45
  %v652 = vpop.f32.mrf.mxu0
  %v653 = vadd.f32 %v508, %v652
  %v654 = vpop.f32.mrf.mxu0
  %655 = vmatprep.mubr.f32.mxu0 %v53
  %656 = vmatmul.mubr.f32.gmra.mxu0 %v52
  %v657 = vpop.f32.mrf.mxu0
  %v658 = vadd.f32 %v513, %v657
  %v659 = vpop.f32.mrf.mxu0
  %660 = vmatprep.mubr.f32.mxu0 %v60
  %661 = vmatmul.mubr.f32.gmra.mxu0 %v59
  %v662 = vpop.f32.mrf.mxu0
  %v663 = vadd.f32 %v518, %v662
  %v664 = vpop.f32.mrf.mxu0
  %665 = vmatprep.mubr.f32.mxu0 %v67
  %666 = vmatmul.mubr.f32.gmra.mxu0 %v66
  %v667 = vpop.f32.mrf.mxu0
  %v668 = vadd.f32 %v523, %v667
  %v669 = vpop.f32.mrf.mxu0
  %670 = vmatprep.mubr.f32.mxu0 %v74
  %671 = vmatmul.mubr.f32.gmra.mxu0 %v73
  %v672 = vpop.f32.mrf.mxu0
  %v673 = vadd.f32 %v528, %v672
  %v674 = vpop.f32.mrf.mxu0
  %675 = vmatprep.mubr.f32.mxu0 %v81
  %676 = vmatmul.mubr.f32.gmra.mxu0 %v80
  %v677 = vpop.f32.mrf.mxu0
  %v678 = vadd.f32 %v533, %v677
  %v679 = vpop.f32.mrf.mxu0
  %680 = vmatprep.mubr.f32.mxu0 %v88
  %681 = vmatmul.mubr.f32.gmra.mxu0 %v87
  %v682 = vpop.f32.mrf.mxu0
  %v683 = vadd.f32 %v538, %v682
  %v684 = vpop.f32.mrf.mxu0
  %685 = vmatprep.mubr.f32.mxu0 %v95
  %686 = vmatmul.mubr.f32.gmra.mxu0 %v94
  %v687 = vpop.f32.mrf.mxu0
  %v688 = vadd.f32 %v543, %v687
  %v689 = vpop.f32.mrf.mxu0
  %690 = vmatprep.mubr.f32.mxu0 %v102
  %691 = vmatmul.mubr.f32.gmra.mxu0 %v101
  %v692 = vpop.f32.mrf.mxu0
  %v693 = vadd.f32 %v548, %v692
  %v694 = vpop.f32.mrf.mxu0
  %695 = vmatprep.mubr.f32.mxu0 %v109
  %696 = vmatmul.mubr.f32.gmra.mxu0 %v108
  %v697 = vpop.f32.mrf.mxu0
  %v698 = vadd.f32 %v553, %v697
  %v699 = vpop.f32.mrf.mxu0
  %700 = vmatprep.mubr.f32.mxu0 %v116
  %701 = vmatmul.mubr.f32.gmra.mxu0 %v115
  %v702 = vpop.f32.mrf.mxu0
  %v703 = vadd.f32 %v558, %v702
  %v704 = vpop.f32.mrf.mxu0
  %705 = vmatprep.mubr.f32.mxu0 %v123
  %706 = vmatmul.mubr.f32.gmra.mxu0 %v122
  %v707 = vpop.f32.mrf.mxu0
  %v708 = vadd.f32 %v563, %v707
  %v709 = vpop.f32.mrf.mxu0
  %710 = vmatprep.mubr.f32.mxu0 %v130
  %711 = vmatmul.mubr.f32.gmra.mxu0 %v129
  %v712 = vpop.f32.mrf.mxu0
  %v713 = vadd.f32 %v568, %v712
  %v714 = vpop.f32.mrf.mxu0
  %715 = vdwg.mxu0
  %716 = vmatprep.subr.mxu0 0.0
  %717 = vmatpush1.msra.mxu0 0.0
  %718 = vmatprep.subr.mxu0 0.0
  %719 = vmatpush1.msra.mxu0 0.0
  %720 = vmatprep.subr.mxu0 0.0
  %721 = vmatpush1.msra.mxu0 0.0
  %722 = vmatprep.subr.mxu0 0.0
  %723 = vmatpush1.msra.mxu0 0.0
  %724 = vmatprep.subr.mxu0 0.0
  %725 = vmatpush1.msra.mxu0 0.0
  %726 = vmatprep.subr.mxu0 0.0
  %727 = vmatpush1.msra.mxu0 0.0
  %728 = vmatprep.subr.mxu0 0.0
  %729 = vmatpush1.msra.mxu0 0.0
  %730 = vmatprep.subr.mxu0 0.0
  %731 = vmatpush1.msra.mxu0 0.0
  %732 = vmatprep.subr.mxu0 0.0
  %733 = vmatpush1.msra.mxu0 0.0
  %734 = vmatprep.subr.mxu0 0.0
  %735 = vmatpush1.msra.mxu0 0.0
  %736 = vmatprep.subr.mxu0 0.0
  %737 = vmatpush1.msra.mxu0 0.0
  %738 = vmatprep.subr.mxu0 0.0
  %739 = vmatpush1.msra.mxu0 0.0
  %740 = vmatprep.subr.mxu0 0.0
  %741 = vmatpush1.msra.mxu0 %v231
  %742 = vmatprep.subr.mxu0 0.0
  %743 = vmatpush1.msra.mxu0 %v230
  %744 = vmatprep.subr.mxu0 0.0
  %745 = vmatpush1.msra.mxu0 %v229
  %746 = vmatprep.subr.mxu0 0.0
  %747 = vmatpush1.msra.mxu0 %v228
  %748 = vmatprep.subr.mxu0 0.0
  %749 = vmatpush2.msra.mxu0 0.0
  %750 = vmatprep.subr.mxu0 0.0
  %751 = vmatpush2.msra.mxu0 0.0
  %752 = vmatprep.subr.mxu0 0.0
  %753 = vmatpush2.msra.mxu0 0.0
  %754 = vmatprep.subr.mxu0 0.0
  %755 = vmatpush2.msra.mxu0 0.0
  %756 = vmatprep.subr.mxu0 0.0
  %757 = vmatpush2.msra.mxu0 0.0
  %758 = vmatprep.subr.mxu0 0.0
  %759 = vmatpush2.msra.mxu0 0.0
  %760 = vmatprep.subr.mxu0 0.0
  %761 = vmatpush2.msra.mxu0 0.0
  %762 = vmatprep.subr.mxu0 0.0
  %763 = vmatpush2.msra.mxu0 0.0
  %764 = vmatprep.subr.mxu0 0.0
  %765 = vmatpush2.msra.mxu0 0.0
  %766 = vmatprep.subr.mxu0 0.0
  %767 = vmatpush2.msra.mxu0 0.0
  %768 = vmatprep.subr.mxu0 0.0
  %769 = vmatpush2.msra.mxu0 0.0
  %770 = vmatprep.subr.mxu0 0.0
  %771 = vmatpush2.msra.mxu0 0.0
  %772 = vmatprep.subr.mxu0 0.0
  %773 = vmatpush2.msra.mxu0 0.0
  %774 = vmatprep.subr.mxu0 0.0
  %775 = vmatpush2.msra.mxu0 0.0
  %776 = vmatprep.subr.mxu0 0.0
  %777 = vmatpush2.msra.mxu0 0.0
  %778 = vmatprep.subr.mxu0 0.0
  %779 = vmatpush2.msra.mxu0 0.0
  %780 = vmatprep.mubr.f32.mxu0 0.0
  %781 = vmatmul.mubr.f32.gmra.mxu0 %v234
  %v782 = vpop.f32.mrf.mxu0
  %v783 = vadd.f32 %v638, %v782
  %v784 = vpop.f32.mrf.mxu0
  %785 = vmatprep.mubr.f32.mxu0 0.0
  %786 = vmatmul.mubr.f32.gmra.mxu0 %v237
  %v787 = vpop.f32.mrf.mxu0
  %v788 = vadd.f32 %v643, %v787
  %v789 = vpop.f32.mrf.mxu0
  %790 = vmatprep.mubr.f32.mxu0 0.0
  %791 = vmatmul.mubr.f32.gmra.mxu0 %v240
  %v792 = vpop.f32.mrf.mxu0
  %v793 = vadd.f32 %v648, %v792
  %v794 = vpop.f32.mrf.mxu0
  %795 = vmatprep.mubr.f32.mxu0 0.0
  %796 = vmatmul.mubr.f32.gmra.mxu0 %v243
  %v797 = vpop.f32.mrf.mxu0
  %v798 = vadd.f32 %v653, %v797
  %v799 = vpop.f32.mrf.mxu0
  %800 = vmatprep.mubr.f32.mxu0 0.0
  %801 = vmatmul.mubr.f32.gmra.mxu0 %v246
  %v802 = vpop.f32.mrf.mxu0
  %v803 = vadd.f32 %v658, %v802
  %v804 = vpop.f32.mrf.mxu0
  %805 = vmatprep.mubr.f32.mxu0 0.0
  %806 = vmatmul.mubr.f32.gmra.mxu0 %v249
  %v807 = vpop.f32.mrf.mxu0
  %v808 = vadd.f32 %v663, %v807
  %v809 = vpop.f32.mrf.mxu0
  %810 = vmatprep.mubr.f32.mxu0 0.0
  %811 = vmatmul.mubr.f32.gmra.mxu0 %v252
  %v812 = vpop.f32.mrf.mxu0
  %v813 = vadd.f32 %v668, %v812
  %v814 = vpop.f32.mrf.mxu0
  %815 = vmatprep.mubr.f32.mxu0 0.0
  %816 = vmatmul.mubr.f32.gmra.mxu0 %v255
  %v817 = vpop.f32.mrf.mxu0
  %v818 = vadd.f32 %v673, %v817
  %v819 = vpop.f32.mrf.mxu0
  %820 = vmatprep.mubr.f32.mxu0 0.0
  %821 = vmatmul.mubr.f32.gmra.mxu0 %v258
  %v822 = vpop.f32.mrf.mxu0
  %v823 = vadd.f32 %v678, %v822
  %v824 = vpop.f32.mrf.mxu0
  %825 = vmatprep.mubr.f32.mxu0 0.0
  %826 = vmatmul.mubr.f32.gmra.mxu0 %v261
  %v827 = vpop.f32.mrf.mxu0
  %v828 = vadd.f32 %v683, %v827
  %v829 = vpop.f32.mrf.mxu0
  %830 = vmatprep.mubr.f32.mxu0 0.0
  %831 = vmatmul.mubr.f32.gmra.mxu0 %v264
  %v832 = vpop.f32.mrf.mxu0
  %v833 = vadd.f32 %v688, %v832
  %v834 = vpop.f32.mrf.mxu0
  %835 = vmatprep.mubr.f32.mxu0 0.0
  %836 = vmatmul.mubr.f32.gmra.mxu0 %v267
  %v837 = vpop.f32.mrf.mxu0
  %v838 = vadd.f32 %v693, %v837
  %v839 = vpop.f32.mrf.mxu0
  %840 = vmatprep.mubr.f32.mxu0 0.0
  %841 = vmatmul.mubr.f32.gmra.mxu0 %v270
  %v842 = vpop.f32.mrf.mxu0
  %v843 = vadd.f32 %v698, %v842
  %v844 = vpop.f32.mrf.mxu0
  %845 = vmatprep.mubr.f32.mxu0 0.0
  %846 = vmatmul.mubr.f32.gmra.mxu0 %v273
  %v847 = vpop.f32.mrf.mxu0
  %v848 = vadd.f32 %v703, %v847
  %v849 = vpop.f32.mrf.mxu0
  %850 = vmatprep.mubr.f32.mxu0 0.0
  %851 = vmatmul.mubr.f32.gmra.mxu0 %v276
  %v852 = vpop.f32.mrf.mxu0
  %v853 = vadd.f32 %v708, %v852
  %v854 = vpop.f32.mrf.mxu0
  %855 = vmatprep.mubr.f32.mxu0 0.0
  %856 = vmatmul.mubr.f32.gmra.mxu0 %v279
  %v857 = vpop.f32.mrf.mxu0
  %v858 = vadd.f32 %v713, %v857
  %v859 = vpop.f32.mrf.mxu0
  %860 = vdwg.mxu0
  %v861 = vmax.f32 %v783, %v803
  %v862 = vmax.f32 %v788, %v808
  %v863 = vmax.f32 %v793, %v813
  %v864 = vmax.f32 %v798, %v818
  %v865 = vmax.f32 %v823, %v843
  %v866 = vmax.f32 %v828, %v848
  %v867 = vmax.f32 %v833, %v853
  %v868 = vmax.f32 %v838, %v858
  %v869 = vmax.f32 %v861, %v865
  %v870 = vmax.f32 %v862, %v866
  %v871 = vmax.f32 %v863, %v867
  %v872 = vmax.f32 %v864, %v868
  %v873 = vld [vmem:[%s2] sm:$0x1]
  %v875 = vlaneseq
  %v876 = vshrl.u32 %v875, 7
  %v877 = vsub.s32 0, %v876
  %v878 = vrot.slane %v873, %v877
  %v880 = vadd.f32 %v869, %v878
  %v881 = vadd.f32 %v870, %v878
  %v882 = vadd.f32 %v871, %v878
  %v883 = vadd.f32 %v872, %v878
  %v884 = vmax.f32 %v880, 0.0
  %v885 = vmax.f32 %v881, 0.0
  %v886 = vmax.f32 %v882, 0.0
  %v887 = vmax.f32 %v883, 0.0
  %vm888 = vcmask 523264
  %889 = vst.msk [vmem:[#allocation2] sm:$0xff] %vm888, %v884
  %890 = vst.msk [vmem:[#allocation2 + $0x8] sm:$0xff] %vm888, %v885
  %891 = vst.msk [vmem:[#allocation2 + $0x10] sm:$0xff] %vm888, %v886
  %892 = vst.msk [vmem:[#allocation2 + $0x18] sm:$0xff] %vm888, %v887
  %v893 = vld [vmem:[#allocation2] sm:$0x3]
  %v894 = vld [vmem:[%s3] sm:$0xff]
  %v895 = vld [vmem:[%s3 + $0x8] sm:$0xff]
  %v896 = vld [vmem:[%s3 + $0x10] sm:$0xff]
  %v897 = vld [vmem:[%s3 + $0x18] sm:$0xff]
  %v898 = vld [vmem:[%s3 + $0x20] sm:$0xff]
  %v899 = vld [vmem:[%s3 + $0x28] sm:$0xff]
  %v900 = vld [vmem:[%s3 + $0x30] sm:$0xff]
  %v901 = vld [vmem:[%s3 + $0x38] sm:$0xff]
  %v902 = vld [vmem:[#allocation2 + $0x2] sm:$0x3]
  %v903 = vld [vmem:[%s3 + $0x40] sm:$0xff]
  %v904 = vld [vmem:[%s3 + $0x48] sm:$0xff]
  %v905 = vld [vmem:[%s3 + $0x50] sm:$0xff]
  %v906 = vld [vmem:[%s3 + $0x58] sm:$0xff]
  %v907 = vld [vmem:[%s3 + $0x60] sm:$0xff]
  %v908 = vld [vmem:[%s3 + $0x68] sm:$0xff]
  %v909 = vld [vmem:[%s3 + $0x70] sm:$0xff]
  %v910 = vld [vmem:[%s3 + $0x78] sm:$0xff]
  %v912 = vsel %vm888, %v902, 0
  %914 = vmatprep.subr.mxu0 0.0
  %915 = vmatpush1.msra.mxu0 0.0
  %916 = vmatprep.subr.mxu0 0.0
  %917 = vmatpush1.msra.mxu0 0.0
  %918 = vmatprep.subr.mxu0 0.0
  %919 = vmatpush1.msra.mxu0 0.0
  %920 = vmatprep.subr.mxu0 0.0
  %921 = vmatpush1.msra.mxu0 0.0
  %922 = vmatprep.subr.mxu0 0.0
  %923 = vmatpush1.msra.mxu0 0.0
  %924 = vmatprep.subr.mxu0 0.0
  %925 = vmatpush1.msra.mxu0 0.0
  %926 = vmatprep.subr.mxu0 0.0
  %927 = vmatpush1.msra.mxu0 0.0
  %928 = vmatprep.subr.mxu0 0.0
  %929 = vmatpush1.msra.mxu0 0.0
  %930 = vmatprep.subr.mxu0 0.0
  %931 = vmatpush1.msra.mxu0 %v910
  %932 = vmatprep.subr.mxu0 0.0
  %933 = vmatpush1.msra.mxu0 %v909
  %934 = vmatprep.subr.mxu0 0.0
  %935 = vmatpush1.msra.mxu0 %v908
  %936 = vmatprep.subr.mxu0 0.0
  %937 = vmatpush1.msra.mxu0 %v907
  %938 = vmatprep.subr.mxu0 0.0
  %939 = vmatpush1.msra.mxu0 %v906
  %940 = vmatprep.subr.mxu0 0.0
  %941 = vmatpush1.msra.mxu0 %v905
  %942 = vmatprep.subr.mxu0 0.0
  %943 = vmatpush1.msra.mxu0 %v904
  %944 = vmatprep.subr.mxu0 0.0
  %945 = vmatpush1.msra.mxu0 %v903
  %946 = vmatprep.subr.mxu0 0.0
  %947 = vmatpush2.msra.mxu0 0.0
  %948 = vmatprep.subr.mxu0 0.0
  %949 = vmatpush2.msra.mxu0 0.0
  %950 = vmatprep.subr.mxu0 0.0
  %951 = vmatpush2.msra.mxu0 0.0
  %952 = vmatprep.subr.mxu0 0.0
  %953 = vmatpush2.msra.mxu0 0.0
  %954 = vmatprep.subr.mxu0 0.0
  %955 = vmatpush2.msra.mxu0 0.0
  %956 = vmatprep.subr.mxu0 0.0
  %957 = vmatpush2.msra.mxu0 0.0
  %958 = vmatprep.subr.mxu0 0.0
  %959 = vmatpush2.msra.mxu0 0.0
  %960 = vmatprep.subr.mxu0 0.0
  %961 = vmatpush2.msra.mxu0 0.0
  %962 = vmatprep.subr.mxu0 0.0
  %963 = vmatpush2.msra.mxu0 0.0
  %964 = vmatprep.subr.mxu0 0.0
  %965 = vmatpush2.msra.mxu0 0.0
  %966 = vmatprep.subr.mxu0 0.0
  %967 = vmatpush2.msra.mxu0 0.0
  %968 = vmatprep.subr.mxu0 0.0
  %969 = vmatpush2.msra.mxu0 0.0
  %970 = vmatprep.subr.mxu0 0.0
  %971 = vmatpush2.msra.mxu0 0.0
  %972 = vmatprep.subr.mxu0 0.0
  %973 = vmatpush2.msra.mxu0 0.0
  %974 = vmatprep.subr.mxu0 0.0
  %975 = vmatpush2.msra.mxu0 0.0
  %976 = vmatprep.subr.mxu0 0.0
  %977 = vmatpush2.msra.mxu0 0.0
  %978 = vmatprep.mubr.f32.mxu0 0.0
  %979 = vmatmul.mubr.f32.gmra.mxu0 %v912
  %v980 = vpop.f32.mrf.mxu0
  %v981 = vadd.f32 0.0, %v980
  %v982 = vpop.f32.mrf.mxu0
  %983 = vdwg.mxu0
  %v985 = vsel %vm888, %v893, 0
  %987 = vmatprep.subr.mxu0 0.0
  %988 = vmatpush1.msra.mxu0 0.0
  %989 = vmatprep.subr.mxu0 0.0
  %990 = vmatpush1.msra.mxu0 0.0
  %991 = vmatprep.subr.mxu0 0.0
  %992 = vmatpush1.msra.mxu0 0.0
  %993 = vmatprep.subr.mxu0 0.0
  %994 = vmatpush1.msra.mxu0 0.0
  %995 = vmatprep.subr.mxu0 0.0
  %996 = vmatpush1.msra.mxu0 0.0
  %997 = vmatprep.subr.mxu0 0.0
  %998 = vmatpush1.msra.mxu0 0.0
  %999 = vmatprep.subr.mxu0 0.0
  %1000 = vmatpush1.msra.mxu0 0.0
  %1001 = vmatprep.subr.mxu0 0.0
  %1002 = vmatpush1.msra.mxu0 0.0
  %1003 = vmatprep.subr.mxu0 0.0
  %1004 = vmatpush1.msra.mxu0 %v901
  %1005 = vmatprep.subr.mxu0 0.0
  %1006 = vmatpush1.msra.mxu0 %v900
  %1007 = vmatprep.subr.mxu0 0.0
  %1008 = vmatpush1.msra.mxu0 %v899
  %1009 = vmatprep.subr.mxu0 0.0
  %1010 = vmatpush1.msra.mxu0 %v898
  %1011 = vmatprep.subr.mxu0 0.0
  %1012 = vmatpush1.msra.mxu0 %v897
  %1013 = vmatprep.subr.mxu0 0.0
  %1014 = vmatpush1.msra.mxu0 %v896
  %1015 = vmatprep.subr.mxu0 0.0
  %1016 = vmatpush1.msra.mxu0 %v895
  %1017 = vmatprep.subr.mxu0 0.0
  %1018 = vmatpush1.msra.mxu0 %v894
  %1019 = vmatprep.subr.mxu0 0.0
  %1020 = vmatpush2.msra.mxu0 0.0
  %1021 = vmatprep.subr.mxu0 0.0
  %1022 = vmatpush2.msra.mxu0 0.0
  %1023 = vmatprep.subr.mxu0 0.0
  %1024 = vmatpush2.msra.mxu0 0.0
  %1025 = vmatprep.subr.mxu0 0.0
  %1026 = vmatpush2.msra.mxu0 0.0
  %1027 = vmatprep.subr.mxu0 0.0
  %1028 = vmatpush2.msra.mxu0 0.0
  %1029 = vmatprep.subr.mxu0 0.0
  %1030 = vmatpush2.msra.mxu0 0.0
  %1031 = vmatprep.subr.mxu0 0.0
  %1032 = vmatpush2.msra.mxu0 0.0
  %1033 = vmatprep.subr.mxu0 0.0
  %1034 = vmatpush2.msra.mxu0 0.0
  %1035 = vmatprep.subr.mxu0 0.0
  %1036 = vmatpush2.msra.mxu0 0.0
  %1037 = vmatprep.subr.mxu0 0.0
  %1038 = vmatpush2.msra.mxu0 0.0
  %1039 = vmatprep.subr.mxu0 0.0
  %1040 = vmatpush2.msra.mxu0 0.0
  %1041 = vmatprep.subr.mxu0 0.0
  %1042 = vmatpush2.msra.mxu0 0.0
  %1043 = vmatprep.subr.mxu0 0.0
  %1044 = vmatpush2.msra.mxu0 0.0
  %1045 = vmatprep.subr.mxu0 0.0
  %1046 = vmatpush2.msra.mxu0 0.0
  %1047 = vmatprep.subr.mxu0 0.0
  %1048 = vmatpush2.msra.mxu0 0.0
  %1049 = vmatprep.subr.mxu0 0.0
  %1050 = vmatpush2.msra.mxu0 0.0
  %1051 = vmatprep.mubr.f32.mxu0 0.0
  %1052 = vmatmul.mubr.f32.gmra.mxu0 %v985
  %v1053 = vpop.f32.mrf.mxu0
  %v1054 = vadd.f32 %v981, %v1053
  %v1055 = vpop.f32.mrf.mxu0
  %1056 = vdwg.mxu0
  %v1057 = vld [vmem:[#allocation2 + $0x4] sm:$0x3]
  %v1058 = vld [vmem:[%s3 + $0x80] sm:$0xff]
  %v1059 = vld [vmem:[%s3 + $0x88] sm:$0xff]
  %v1060 = vld [vmem:[%s3 + $0x90] sm:$0xff]
  %v1061 = vld [vmem:[%s3 + $0x98] sm:$0xff]
  %v1062 = vld [vmem:[%s3 + $0xa0] sm:$0xff]
  %v1063 = vld [vmem:[%s3 + $0xa8] sm:$0xff]
  %v1064 = vld [vmem:[%s3 + $0xb0] sm:$0xff]
  %v1065 = vld [vmem:[%s3 + $0xb8] sm:$0xff]
  %v1067 = vsel %vm888, %v1057, 0
  %1069 = vmatprep.subr.mxu0 0.0
  %1070 = vmatpush1.msra.mxu0 0.0
  %1071 = vmatprep.subr.mxu0 0.0
  %1072 = vmatpush1.msra.mxu0 0.0
  %1073 = vmatprep.subr.mxu0 0.0
  %1074 = vmatpush1.msra.mxu0 0.0
  %1075 = vmatprep.subr.mxu0 0.0
  %1076 = vmatpush1.msra.mxu0 0.0
  %1077 = vmatprep.subr.mxu0 0.0
  %1078 = vmatpush1.msra.mxu0 0.0
  %1079 = vmatprep.subr.mxu0 0.0
  %1080 = vmatpush1.msra.mxu0 0.0
  %1081 = vmatprep.subr.mxu0 0.0
  %1082 = vmatpush1.msra.mxu0 0.0
  %1083 = vmatprep.subr.mxu0 0.0
  %1084 = vmatpush1.msra.mxu0 0.0
  %1085 = vmatprep.subr.mxu0 0.0
  %1086 = vmatpush1.msra.mxu0 %v1065
  %1087 = vmatprep.subr.mxu0 0.0
  %1088 = vmatpush1.msra.mxu0 %v1064
  %1089 = vmatprep.subr.mxu0 0.0
  %1090 = vmatpush1.msra.mxu0 %v1063
  %1091 = vmatprep.subr.mxu0 0.0
  %1092 = vmatpush1.msra.mxu0 %v1062
  %1093 = vmatprep.subr.mxu0 0.0
  %1094 = vmatpush1.msra.mxu0 %v1061
  %1095 = vmatprep.subr.mxu0 0.0
  %1096 = vmatpush1.msra.mxu0 %v1060
  %1097 = vmatprep.subr.mxu0 0.0
  %1098 = vmatpush1.msra.mxu0 %v1059
  %1099 = vmatprep.subr.mxu0 0.0
  %1100 = vmatpush1.msra.mxu0 %v1058
  %1101 = vmatprep.subr.mxu0 0.0
  %1102 = vmatpush2.msra.mxu0 0.0
  %1103 = vmatprep.subr.mxu0 0.0
  %1104 = vmatpush2.msra.mxu0 0.0
  %1105 = vmatprep.subr.mxu0 0.0
  %1106 = vmatpush2.msra.mxu0 0.0
  %1107 = vmatprep.subr.mxu0 0.0
  %1108 = vmatpush2.msra.mxu0 0.0
  %1109 = vmatprep.subr.mxu0 0.0
  %1110 = vmatpush2.msra.mxu0 0.0
  %1111 = vmatprep.subr.mxu0 0.0
  %1112 = vmatpush2.msra.mxu0 0.0
  %1113 = vmatprep.subr.mxu0 0.0
  %1114 = vmatpush2.msra.mxu0 0.0
  %1115 = vmatprep.subr.mxu0 0.0
  %1116 = vmatpush2.msra.mxu0 0.0
  %1117 = vmatprep.subr.mxu0 0.0
  %1118 = vmatpush2.msra.mxu0 0.0
  %1119 = vmatprep.subr.mxu0 0.0
  %1120 = vmatpush2.msra.mxu0 0.0
  %1121 = vmatprep.subr.mxu0 0.0
  %1122 = vmatpush2.msra.mxu0 0.0
  %1123 = vmatprep.subr.mxu0 0.0
  %1124 = vmatpush2.msra.mxu0 0.0
  %1125 = vmatprep.subr.mxu0 0.0
  %1126 = vmatpush2.msra.mxu0 0.0
  %1127 = vmatprep.subr.mxu0 0.0
  %1128 = vmatpush2.msra.mxu0 0.0
  %1129 = vmatprep.subr.mxu0 0.0
  %1130 = vmatpush2.msra.mxu0 0.0
  %1131 = vmatprep.subr.mxu0 0.0
  %1132 = vmatpush2.msra.mxu0 0.0
  %1133 = vmatprep.mubr.f32.mxu0 0.0
  %1134 = vmatmul.mubr.f32.gmra.mxu0 %v1067
  %v1135 = vpop.f32.mrf.mxu0
  %v1136 = vadd.f32 0.0, %v1135
  %v1137 = vpop.f32.mrf.mxu0
  %1138 = vdwg.mxu0
  %v1139 = vadd.f32 %v1054, %v1136
  %v1140 = vld [vmem:[#allocation2 + $0x6] sm:$0x3]
  %v1141 = vld [vmem:[%s3 + $0xc0] sm:$0xff]
  %v1142 = vld [vmem:[%s3 + $0xc8] sm:$0xff]
  %v1143 = vld [vmem:[%s3 + $0xd0] sm:$0xff]
  %v1144 = vld [vmem:[%s3 + $0xd8] sm:$0xff]
  %v1145 = vld [vmem:[%s3 + $0xe0] sm:$0xff]
  %v1146 = vld [vmem:[%s3 + $0xe8] sm:$0xff]
  %v1147 = vld [vmem:[%s3 + $0xf0] sm:$0xff]
  %v1148 = vld [vmem:[%s3 + $0xf8] sm:$0xff]
  %v1150 = vsel %vm888, %v1140, 0
  %1152 = vmatprep.subr.mxu0 0.0
  %1153 = vmatpush1.msra.mxu0 0.0
  %1154 = vmatprep.subr.mxu0 0.0
  %1155 = vmatpush1.msra.mxu0 0.0
  %1156 = vmatprep.subr.mxu0 0.0
  %1157 = vmatpush1.msra.mxu0 0.0
  %1158 = vmatprep.subr.mxu0 0.0
  %1159 = vmatpush1.msra.mxu0 0.0
  %1160 = vmatprep.subr.mxu0 0.0
  %1161 = vmatpush1.msra.mxu0 0.0
  %1162 = vmatprep.subr.mxu0 0.0
  %1163 = vmatpush1.msra.mxu0 0.0
  %1164 = vmatprep.subr.mxu0 0.0
  %1165 = vmatpush1.msra.mxu0 0.0
  %1166 = vmatprep.subr.mxu0 0.0
  %1167 = vmatpush1.msra.mxu0 0.0
  %1168 = vmatprep.subr.mxu0 0.0
  %1169 = vmatpush1.msra.mxu0 %v1148
  %1170 = vmatprep.subr.mxu0 0.0
  %1171 = vmatpush1.msra.mxu0 %v1147
  %1172 = vmatprep.subr.mxu0 0.0
  %1173 = vmatpush1.msra.mxu0 %v1146
  %1174 = vmatprep.subr.mxu0 0.0
  %1175 = vmatpush1.msra.mxu0 %v1145
  %1176 = vmatprep.subr.mxu0 0.0
  %1177 = vmatpush1.msra.mxu0 %v1144
  %1178 = vmatprep.subr.mxu0 0.0
  %1179 = vmatpush1.msra.mxu0 %v1143
  %1180 = vmatprep.subr.mxu0 0.0
  %1181 = vmatpush1.msra.mxu0 %v1142
  %1182 = vmatprep.subr.mxu0 0.0
  %1183 = vmatpush1.msra.mxu0 %v1141
  %1184 = vmatprep.subr.mxu0 0.0
  %1185 = vmatpush2.msra.mxu0 0.0
  %1186 = vmatprep.subr.mxu0 0.0
  %1187 = vmatpush2.msra.mxu0 0.0
  %1188 = vmatprep.subr.mxu0 0.0
  %1189 = vmatpush2.msra.mxu0 0.0
  %1190 = vmatprep.subr.mxu0 0.0
  %1191 = vmatpush2.msra.mxu0 0.0
  %1192 = vmatprep.subr.mxu0 0.0
  %1193 = vmatpush2.msra.mxu0 0.0
  %1194 = vmatprep.subr.mxu0 0.0
  %1195 = vmatpush2.msra.mxu0 0.0
  %1196 = vmatprep.subr.mxu0 0.0
  %1197 = vmatpush2.msra.mxu0 0.0
  %1198 = vmatprep.subr.mxu0 0.0
  %1199 = vmatpush2.msra.mxu0 0.0
  %1200 = vmatprep.subr.mxu0 0.0
  %1201 = vmatpush2.msra.mxu0 0.0
  %1202 = vmatprep.subr.mxu0 0.0
  %1203 = vmatpush2.msra.mxu0 0.0
  %1204 = vmatprep.subr.mxu0 0.0
  %1205 = vmatpush2.msra.mxu0 0.0
  %1206 = vmatprep.subr.mxu0 0.0
  %1207 = vmatpush2.msra.mxu0 0.0
  %1208 = vmatprep.subr.mxu0 0.0
  %1209 = vmatpush2.msra.mxu0 0.0
  %1210 = vmatprep.subr.mxu0 0.0
  %1211 = vmatpush2.msra.mxu0 0.0
  %1212 = vmatprep.subr.mxu0 0.0
  %1213 = vmatpush2.msra.mxu0 0.0
  %1214 = vmatprep.subr.mxu0 0.0
  %1215 = vmatpush2.msra.mxu0 0.0
  %1216 = vmatprep.mubr.f32.mxu0 0.0
  %1217 = vmatmul.mubr.f32.gmra.mxu0 %v1150
  %v1218 = vpop.f32.mrf.mxu0
  %v1219 = vadd.f32 0.0, %v1218
  %v1220 = vpop.f32.mrf.mxu0
  %1221 = vdwg.mxu0
  %v1222 = vadd.f32 %v1139, %v1219
  %v1223 = vld [vmem:[#allocation2 + $0x8] sm:$0x3]
  %v1224 = vld [vmem:[%s3 + $0x100] sm:$0xff]
  %v1225 = vld [vmem:[%s3 + $0x108] sm:$0xff]
  %v1226 = vld [vmem:[%s3 + $0x110] sm:$0xff]
  %v1227 = vld [vmem:[%s3 + $0x118] sm:$0xff]
  %v1228 = vld [vmem:[%s3 + $0x120] sm:$0xff]
  %v1229 = vld [vmem:[%s3 + $0x128] sm:$0xff]
  %v1230 = vld [vmem:[%s3 + $0x130] sm:$0xff]
  %v1231 = vld [vmem:[%s3 + $0x138] sm:$0xff]
  %v1233 = vsel %vm888, %v1223, 0
  %1235 = vmatprep.subr.mxu0 0.0
  %1236 = vmatpush1.msra.mxu0 0.0
  %1237 = vmatprep.subr.mxu0 0.0
  %1238 = vmatpush1.msra.mxu0 0.0
  %1239 = vmatprep.subr.mxu0 0.0
  %1240 = vmatpush1.msra.mxu0 0.0
  %1241 = vmatprep.subr.mxu0 0.0
  %1242 = vmatpush1.msra.mxu0 0.0
  %1243 = vmatprep.subr.mxu0 0.0
  %1244 = vmatpush1.msra.mxu0 0.0
  %1245 = vmatprep.subr.mxu0 0.0
  %1246 = vmatpush1.msra.mxu0 0.0
  %1247 = vmatprep.subr.mxu0 0.0
  %1248 = vmatpush1.msra.mxu0 0.0
  %1249 = vmatprep.subr.mxu0 0.0
  %1250 = vmatpush1.msra.mxu0 0.0
  %1251 = vmatprep.subr.mxu0 0.0
  %1252 = vmatpush1.msra.mxu0 %v1231
  %1253 = vmatprep.subr.mxu0 0.0
  %1254 = vmatpush1.msra.mxu0 %v1230
  %1255 = vmatprep.subr.mxu0 0.0
  %1256 = vmatpush1.msra.mxu0 %v1229
  %1257 = vmatprep.subr.mxu0 0.0
  %1258 = vmatpush1.msra.mxu0 %v1228
  %1259 = vmatprep.subr.mxu0 0.0
  %1260 = vmatpush1.msra.mxu0 %v1227
  %1261 = vmatprep.subr.mxu0 0.0
  %1262 = vmatpush1.msra.mxu0 %v1226
  %1263 = vmatprep.subr.mxu0 0.0
  %1264 = vmatpush1.msra.mxu0 %v1225
  %1265 = vmatprep.subr.mxu0 0.0
  %1266 = vmatpush1.msra.mxu0 %v1224
  %1267 = vmatprep.subr.mxu0 0.0
  %1268 = vmatpush2.msra.mxu0 0.0
  %1269 = vmatprep.subr.mxu0 0.0
  %1270 = vmatpush2.msra.mxu0 0.0
  %1271 = vmatprep.subr.mxu0 0.0
  %1272 = vmatpush2.msra.mxu0 0.0
  %1273 = vmatprep.subr.mxu0 0.0
  %1274 = vmatpush2.msra.mxu0 0.0
  %1275 = vmatprep.subr.mxu0 0.0
  %1276 = vmatpush2.msra.mxu0 0.0
  %1277 = vmatprep.subr.mxu0 0.0
  %1278 = vmatpush2.msra.mxu0 0.0
  %1279 = vmatprep.subr.mxu0 0.0
  %1280 = vmatpush2.msra.mxu0 0.0
  %1281 = vmatprep.subr.mxu0 0.0
  %1282 = vmatpush2.msra.mxu0 0.0
  %1283 = vmatprep.subr.mxu0 0.0
  %1284 = vmatpush2.msra.mxu0 0.0
  %1285 = vmatprep.subr.mxu0 0.0
  %1286 = vmatpush2.msra.mxu0 0.0
  %1287 = vmatprep.subr.mxu0 0.0
  %1288 = vmatpush2.msra.mxu0 0.0
  %1289 = vmatprep.subr.mxu0 0.0
  %1290 = vmatpush2.msra.mxu0 0.0
  %1291 = vmatprep.subr.mxu0 0.0
  %1292 = vmatpush2.msra.mxu0 0.0
  %1293 = vmatprep.subr.mxu0 0.0
  %1294 = vmatpush2.msra.mxu0 0.0
  %1295 = vmatprep.subr.mxu0 0.0
  %1296 = vmatpush2.msra.mxu0 0.0
  %1297 = vmatprep.subr.mxu0 0.0
  %1298 = vmatpush2.msra.mxu0 0.0
  %1299 = vmatprep.mubr.f32.mxu0 0.0
  %1300 = vmatmul.mubr.f32.gmra.mxu0 %v1233
  %v1301 = vpop.f32.mrf.mxu0
  %v1302 = vadd.f32 0.0, %v1301
  %v1303 = vpop.f32.mrf.mxu0
  %1304 = vdwg.mxu0
  %v1305 = vadd.f32 %v1222, %v1302
  %v1306 = vld [vmem:[#allocation2 + $0xa] sm:$0x3]
  %v1307 = vld [vmem:[%s3 + $0x140] sm:$0xff]
  %v1308 = vld [vmem:[%s3 + $0x148] sm:$0xff]
  %v1309 = vld [vmem:[%s3 + $0x150] sm:$0xff]
  %v1310 = vld [vmem:[%s3 + $0x158] sm:$0xff]
  %v1311 = vld [vmem:[%s3 + $0x160] sm:$0xff]
  %v1312 = vld [vmem:[%s3 + $0x168] sm:$0xff]
  %v1313 = vld [vmem:[%s3 + $0x170] sm:$0xff]
  %v1314 = vld [vmem:[%s3 + $0x178] sm:$0xff]
  %v1316 = vsel %vm888, %v1306, 0
  %1318 = vmatprep.subr.mxu0 0.0
  %1319 = vmatpush1.msra.mxu0 0.0
  %1320 = vmatprep.subr.mxu0 0.0
  %1321 = vmatpush1.msra.mxu0 0.0
  %1322 = vmatprep.subr.mxu0 0.0
  %1323 = vmatpush1.msra.mxu0 0.0
  %1324 = vmatprep.subr.mxu0 0.0
  %1325 = vmatpush1.msra.mxu0 0.0
  %1326 = vmatprep.subr.mxu0 0.0
  %1327 = vmatpush1.msra.mxu0 0.0
  %1328 = vmatprep.subr.mxu0 0.0
  %1329 = vmatpush1.msra.mxu0 0.0
  %1330 = vmatprep.subr.mxu0 0.0
  %1331 = vmatpush1.msra.mxu0 0.0
  %1332 = vmatprep.subr.mxu0 0.0
  %1333 = vmatpush1.msra.mxu0 0.0
  %1334 = vmatprep.subr.mxu0 0.0
  %1335 = vmatpush1.msra.mxu0 %v1314
  %1336 = vmatprep.subr.mxu0 0.0
  %1337 = vmatpush1.msra.mxu0 %v1313
  %1338 = vmatprep.subr.mxu0 0.0
  %1339 = vmatpush1.msra.mxu0 %v1312
  %1340 = vmatprep.subr.mxu0 0.0
  %1341 = vmatpush1.msra.mxu0 %v1311
  %1342 = vmatprep.subr.mxu0 0.0
  %1343 = vmatpush1.msra.mxu0 %v1310
  %1344 = vmatprep.subr.mxu0 0.0
  %1345 = vmatpush1.msra.mxu0 %v1309
  %1346 = vmatprep.subr.mxu0 0.0
  %1347 = vmatpush1.msra.mxu0 %v1308
  %1348 = vmatprep.subr.mxu0 0.0
  %1349 = vmatpush1.msra.mxu0 %v1307
  %1350 = vmatprep.subr.mxu0 0.0
  %1351 = vmatpush2.msra.mxu0 0.0
  %1352 = vmatprep.subr.mxu0 0.0
  %1353 = vmatpush2.msra.mxu0 0.0
  %1354 = vmatprep.subr.mxu0 0.0
  %1355 = vmatpush2.msra.mxu0 0.0
  %1356 = vmatprep.subr.mxu0 0.0
  %1357 = vmatpush2.msra.mxu0 0.0
  %1358 = vmatprep.subr.mxu0 0.0
  %1359 = vmatpush2.msra.mxu0 0.0
  %1360 = vmatprep.subr.mxu0 0.0
  %1361 = vmatpush2.msra.mxu0 0.0
  %1362 = vmatprep.subr.mxu0 0.0
  %1363 = vmatpush2.msra.mxu0 0.0
  %1364 = vmatprep.subr.mxu0 0.0
  %1365 = vmatpush2.msra.mxu0 0.0
  %1366 = vmatprep.subr.mxu0 0.0
  %1367 = vmatpush2.msra.mxu0 0.0
  %1368 = vmatprep.subr.mxu0 0.0
  %1369 = vmatpush2.msra.mxu0 0.0
  %1370 = vmatprep.subr.mxu0 0.0
  %1371 = vmatpush2.msra.mxu0 0.0
  %1372 = vmatprep.subr.mxu0 0.0
  %1373 = vmatpush2.msra.mxu0 0.0
  %1374 = vmatprep.subr.mxu0 0.0
  %1375 = vmatpush2.msra.mxu0 0.0
  %1376 = vmatprep.subr.mxu0 0.0
  %1377 = vmatpush2.msra.mxu0 0.0
  %1378 = vmatprep.subr.mxu0 0.0
  %1379 = vmatpush2.msra.mxu0 0.0
  %1380 = vmatprep.subr.mxu0 0.0
  %1381 = vmatpush2.msra.mxu0 0.0
  %1382 = vmatprep.mubr.f32.mxu0 0.0
  %1383 = vmatmul.mubr.f32.gmra.mxu0 %v1316
  %v1384 = vpop.f32.mrf.mxu0
  %v1385 = vadd.f32 0.0, %v1384
  %v1386 = vpop.f32.mrf.mxu0
  %1387 = vdwg.mxu0
  %v1388 = vadd.f32 %v1305, %v1385
  %v1389 = vld [vmem:[#allocation2 + $0xc] sm:$0x3]
  %v1390 = vld [vmem:[%s3 + $0x180] sm:$0xff]
  %v1391 = vld [vmem:[%s3 + $0x188] sm:$0xff]
  %v1392 = vld [vmem:[%s3 + $0x190] sm:$0xff]
  %v1393 = vld [vmem:[%s3 + $0x198] sm:$0xff]
  %v1394 = vld [vmem:[%s3 + $0x1a0] sm:$0xff]
  %v1395 = vld [vmem:[%s3 + $0x1a8] sm:$0xff]
  %v1396 = vld [vmem:[%s3 + $0x1b0] sm:$0xff]
  %v1397 = vld [vmem:[%s3 + $0x1b8] sm:$0xff]
  %v1399 = vsel %vm888, %v1389, 0
  %1401 = vmatprep.subr.mxu0 0.0
  %1402 = vmatpush1.msra.mxu0 0.0
  %1403 = vmatprep.subr.mxu0 0.0
  %1404 = vmatpush1.msra.mxu0 0.0
  %1405 = vmatprep.subr.mxu0 0.0
  %1406 = vmatpush1.msra.mxu0 0.0
  %1407 = vmatprep.subr.mxu0 0.0
  %1408 = vmatpush1.msra.mxu0 0.0
  %1409 = vmatprep.subr.mxu0 0.0
  %1410 = vmatpush1.msra.mxu0 0.0
  %1411 = vmatprep.subr.mxu0 0.0
  %1412 = vmatpush1.msra.mxu0 0.0
  %1413 = vmatprep.subr.mxu0 0.0
  %1414 = vmatpush1.msra.mxu0 0.0
  %1415 = vmatprep.subr.mxu0 0.0
  %1416 = vmatpush1.msra.mxu0 0.0
  %1417 = vmatprep.subr.mxu0 0.0
  %1418 = vmatpush1.msra.mxu0 %v1397
  %1419 = vmatprep.subr.mxu0 0.0
  %1420 = vmatpush1.msra.mxu0 %v1396
  %1421 = vmatprep.subr.mxu0 0.0
  %1422 = vmatpush1.msra.mxu0 %v1395
  %1423 = vmatprep.subr.mxu0 0.0
  %1424 = vmatpush1.msra.mxu0 %v1394
  %1425 = vmatprep.subr.mxu0 0.0
  %1426 = vmatpush1.msra.mxu0 %v1393
  %1427 = vmatprep.subr.mxu0 0.0
  %1428 = vmatpush1.msra.mxu0 %v1392
  %1429 = vmatprep.subr.mxu0 0.0
  %1430 = vmatpush1.msra.mxu0 %v1391
  %1431 = vmatprep.subr.mxu0 0.0
  %1432 = vmatpush1.msra.mxu0 %v1390
  %1433 = vmatprep.subr.mxu0 0.0
  %1434 = vmatpush2.msra.mxu0 0.0
  %1435 = vmatprep.subr.mxu0 0.0
  %1436 = vmatpush2.msra.mxu0 0.0
  %1437 = vmatprep.subr.mxu0 0.0
  %1438 = vmatpush2.msra.mxu0 0.0
  %1439 = vmatprep.subr.mxu0 0.0
  %1440 = vmatpush2.msra.mxu0 0.0
  %1441 = vmatprep.subr.mxu0 0.0
  %1442 = vmatpush2.msra.mxu0 0.0
  %1443 = vmatprep.subr.mxu0 0.0
  %1444 = vmatpush2.msra.mxu0 0.0
  %1445 = vmatprep.subr.mxu0 0.0
  %1446 = vmatpush2.msra.mxu0 0.0
  %1447 = vmatprep.subr.mxu0 0.0
  %1448 = vmatpush2.msra.mxu0 0.0
  %1449 = vmatprep.subr.mxu0 0.0
  %1450 = vmatpush2.msra.mxu0 0.0
  %1451 = vmatprep.subr.mxu0 0.0
  %1452 = vmatpush2.msra.mxu0 0.0
  %1453 = vmatprep.subr.mxu0 0.0
  %1454 = vmatpush2.msra.mxu0 0.0
  %1455 = vmatprep.subr.mxu0 0.0
  %1456 = vmatpush2.msra.mxu0 0.0
  %1457 = vmatprep.subr.mxu0 0.0
  %1458 = vmatpush2.msra.mxu0 0.0
  %1459 = vmatprep.subr.mxu0 0.0
  %1460 = vmatpush2.msra.mxu0 0.0
  %1461 = vmatprep.subr.mxu0 0.0
  %1462 = vmatpush2.msra.mxu0 0.0
  %1463 = vmatprep.subr.mxu0 0.0
  %1464 = vmatpush2.msra.mxu0 0.0
  %1465 = vmatprep.mubr.f32.mxu0 0.0
  %1466 = vmatmul.mubr.f32.gmra.mxu0 %v1399
  %v1467 = vpop.f32.mrf.mxu0
  %v1468 = vadd.f32 0.0, %v1467
  %v1469 = vpop.f32.mrf.mxu0
  %1470 = vdwg.mxu0
  %v1471 = vadd.f32 %v1388, %v1468
  %v1472 = vld [vmem:[#allocation2 + $0xe] sm:$0x3]
  %v1473 = vld [vmem:[%s3 + $0x1c0] sm:$0xff]
  %v1474 = vld [vmem:[%s3 + $0x1c8] sm:$0xff]
  %v1475 = vld [vmem:[%s3 + $0x1d0] sm:$0xff]
  %v1476 = vld [vmem:[%s3 + $0x1d8] sm:$0xff]
  %v1477 = vld [vmem:[%s3 + $0x1e0] sm:$0xff]
  %v1478 = vld [vmem:[%s3 + $0x1e8] sm:$0xff]
  %v1479 = vld [vmem:[%s3 + $0x1f0] sm:$0xff]
  %v1480 = vld [vmem:[%s3 + $0x1f8] sm:$0xff]
  %v1482 = vsel %vm888, %v1472, 0
  %1484 = vmatprep.subr.mxu0 0.0
  %1485 = vmatpush1.msra.mxu0 0.0
  %1486 = vmatprep.subr.mxu0 0.0
  %1487 = vmatpush1.msra.mxu0 0.0
  %1488 = vmatprep.subr.mxu0 0.0
  %1489 = vmatpush1.msra.mxu0 0.0
  %1490 = vmatprep.subr.mxu0 0.0
  %1491 = vmatpush1.msra.mxu0 0.0
  %1492 = vmatprep.subr.mxu0 0.0
  %1493 = vmatpush1.msra.mxu0 0.0
  %1494 = vmatprep.subr.mxu0 0.0
  %1495 = vmatpush1.msra.mxu0 0.0
  %1496 = vmatprep.subr.mxu0 0.0
  %1497 = vmatpush1.msra.mxu0 0.0
  %1498 = vmatprep.subr.mxu0 0.0
  %1499 = vmatpush1.msra.mxu0 0.0
  %1500 = vmatprep.subr.mxu0 0.0
  %1501 = vmatpush1.msra.mxu0 %v1480
  %1502 = vmatprep.subr.mxu0 0.0
  %1503 = vmatpush1.msra.mxu0 %v1479
  %1504 = vmatprep.subr.mxu0 0.0
  %1505 = vmatpush1.msra.mxu0 %v1478
  %1506 = vmatprep.subr.mxu0 0.0
  %1507 = vmatpush1.msra.mxu0 %v1477
  %1508 = vmatprep.subr.mxu0 0.0
  %1509 = vmatpush1.msra.mxu0 %v1476
  %1510 = vmatprep.subr.mxu0 0.0
  %1511 = vmatpush1.msra.mxu0 %v1475
  %1512 = vmatprep.subr.mxu0 0.0
  %1513 = vmatpush1.msra.mxu0 %v1474
  %1514 = vmatprep.subr.mxu0 0.0
  %1515 = vmatpush1.msra.mxu0 %v1473
  %1516 = vmatprep.subr.mxu0 0.0
  %1517 = vmatpush2.msra.mxu0 0.0
  %1518 = vmatprep.subr.mxu0 0.0
  %1519 = vmatpush2.msra.mxu0 0.0
  %1520 = vmatprep.subr.mxu0 0.0
  %1521 = vmatpush2.msra.mxu0 0.0
  %1522 = vmatprep.subr.mxu0 0.0
  %1523 = vmatpush2.msra.mxu0 0.0
  %1524 = vmatprep.subr.mxu0 0.0
  %1525 = vmatpush2.msra.mxu0 0.0
  %1526 = vmatprep.subr.mxu0 0.0
  %1527 = vmatpush2.msra.mxu0 0.0
  %1528 = vmatprep.subr.mxu0 0.0
  %1529 = vmatpush2.msra.mxu0 0.0
  %1530 = vmatprep.subr.mxu0 0.0
  %1531 = vmatpush2.msra.mxu0 0.0
  %1532 = vmatprep.subr.mxu0 0.0
  %1533 = vmatpush2.msra.mxu0 0.0
  %1534 = vmatprep.subr.mxu0 0.0
  %1535 = vmatpush2.msra.mxu0 0.0
  %1536 = vmatprep.subr.mxu0 0.0
  %1537 = vmatpush2.msra.mxu0 0.0
  %1538 = vmatprep.subr.mxu0 0.0
  %1539 = vmatpush2.msra.mxu0 0.0
  %1540 = vmatprep.subr.mxu0 0.0
  %1541 = vmatpush2.msra.mxu0 0.0
  %1542 = vmatprep.subr.mxu0 0.0
  %1543 = vmatpush2.msra.mxu0 0.0
  %1544 = vmatprep.subr.mxu0 0.0
  %1545 = vmatpush2.msra.mxu0 0.0
  %1546 = vmatprep.subr.mxu0 0.0
  %1547 = vmatpush2.msra.mxu0 0.0
  %1548 = vmatprep.mubr.f32.mxu0 0.0
  %1549 = vmatmul.mubr.f32.gmra.mxu0 %v1482
  %v1550 = vpop.f32.mrf.mxu0
  %v1551 = vadd.f32 0.0, %v1550
  %v1552 = vpop.f32.mrf.mxu0
  %1553 = vdwg.mxu0
  %v1554 = vadd.f32 %v1471, %v1551
  %v1555 = vld [vmem:[#allocation2 + $0x10] sm:$0x3]
  %v1556 = vld [vmem:[%s3 + $0x200] sm:$0xff]
  %v1557 = vld [vmem:[%s3 + $0x208] sm:$0xff]
  %v1558 = vld [vmem:[%s3 + $0x210] sm:$0xff]
  %v1559 = vld [vmem:[%s3 + $0x218] sm:$0xff]
  %v1560 = vld [vmem:[%s3 + $0x220] sm:$0xff]
  %v1561 = vld [vmem:[%s3 + $0x228] sm:$0xff]
  %v1562 = vld [vmem:[%s3 + $0x230] sm:$0xff]
  %v1563 = vld [vmem:[%s3 + $0x238] sm:$0xff]
  %v1565 = vsel %vm888, %v1555, 0
  %1567 = vmatprep.subr.mxu0 0.0
  %1568 = vmatpush1.msra.mxu0 0.0
  %1569 = vmatprep.subr.mxu0 0.0
  %1570 = vmatpush1.msra.mxu0 0.0
  %1571 = vmatprep.subr.mxu0 0.0
  %1572 = vmatpush1.msra.mxu0 0.0
  %1573 = vmatprep.subr.mxu0 0.0
  %1574 = vmatpush1.msra.mxu0 0.0
  %1575 = vmatprep.subr.mxu0 0.0
  %1576 = vmatpush1.msra.mxu0 0.0
  %1577 = vmatprep.subr.mxu0 0.0
  %1578 = vmatpush1.msra.mxu0 0.0
  %1579 = vmatprep.subr.mxu0 0.0
  %1580 = vmatpush1.msra.mxu0 0.0
  %1581 = vmatprep.subr.mxu0 0.0
  %1582 = vmatpush1.msra.mxu0 0.0
  %1583 = vmatprep.subr.mxu0 0.0
  %1584 = vmatpush1.msra.mxu0 %v1563
  %1585 = vmatprep.subr.mxu0 0.0
  %1586 = vmatpush1.msra.mxu0 %v1562
  %1587 = vmatprep.subr.mxu0 0.0
  %1588 = vmatpush1.msra.mxu0 %v1561
  %1589 = vmatprep.subr.mxu0 0.0
  %1590 = vmatpush1.msra.mxu0 %v1560
  %1591 = vmatprep.subr.mxu0 0.0
  %1592 = vmatpush1.msra.mxu0 %v1559
  %1593 = vmatprep.subr.mxu0 0.0
  %1594 = vmatpush1.msra.mxu0 %v1558
  %1595 = vmatprep.subr.mxu0 0.0
  %1596 = vmatpush1.msra.mxu0 %v1557
  %1597 = vmatprep.subr.mxu0 0.0
  %1598 = vmatpush1.msra.mxu0 %v1556
  %1599 = vmatprep.subr.mxu0 0.0
  %1600 = vmatpush2.msra.mxu0 0.0
  %1601 = vmatprep.subr.mxu0 0.0
  %1602 = vmatpush2.msra.mxu0 0.0
  %1603 = vmatprep.subr.mxu0 0.0
  %1604 = vmatpush2.msra.mxu0 0.0
  %1605 = vmatprep.subr.mxu0 0.0
  %1606 = vmatpush2.msra.mxu0 0.0
  %1607 = vmatprep.subr.mxu0 0.0
  %1608 = vmatpush2.msra.mxu0 0.0
  %1609 = vmatprep.subr.mxu0 0.0
  %1610 = vmatpush2.msra.mxu0 0.0
  %1611 = vmatprep.subr.mxu0 0.0
  %1612 = vmatpush2.msra.mxu0 0.0
  %1613 = vmatprep.subr.mxu0 0.0
  %1614 = vmatpush2.msra.mxu0 0.0
  %1615 = vmatprep.subr.mxu0 0.0
  %1616 = vmatpush2.msra.mxu0 0.0
  %1617 = vmatprep.subr.mxu0 0.0
  %1618 = vmatpush2.msra.mxu0 0.0
  %1619 = vmatprep.subr.mxu0 0.0
  %1620 = vmatpush2.msra.mxu0 0.0
  %1621 = vmatprep.subr.mxu0 0.0
  %1622 = vmatpush2.msra.mxu0 0.0
  %1623 = vmatprep.subr.mxu0 0.0
  %1624 = vmatpush2.msra.mxu0 0.0
  %1625 = vmatprep.subr.mxu0 0.0
  %1626 = vmatpush2.msra.mxu0 0.0
  %1627 = vmatprep.subr.mxu0 0.0
  %1628 = vmatpush2.msra.mxu0 0.0
  %1629 = vmatprep.subr.mxu0 0.0
  %1630 = vmatpush2.msra.mxu0 0.0
  %1631 = vmatprep.mubr.f32.mxu0 0.0
  %1632 = vmatmul.mubr.f32.gmra.mxu0 %v1565
  %v1633 = vpop.f32.mrf.mxu0
  %v1634 = vadd.f32 0.0, %v1633
  %v1635 = vpop.f32.mrf.mxu0
  %1636 = vdwg.mxu0
  %v1637 = vadd.f32 %v1554, %v1634
  %v1638 = vld [vmem:[#allocation2 + $0x12] sm:$0x3]
  %v1639 = vld [vmem:[%s3 + $0x240] sm:$0xff]
  %v1640 = vld [vmem:[%s3 + $0x248] sm:$0xff]
  %v1641 = vld [vmem:[%s3 + $0x250] sm:$0xff]
  %v1642 = vld [vmem:[%s3 + $0x258] sm:$0xff]
  %v1643 = vld [vmem:[%s3 + $0x260] sm:$0xff]
  %v1644 = vld [vmem:[%s3 + $0x268] sm:$0xff]
  %v1645 = vld [vmem:[%s3 + $0x270] sm:$0xff]
  %v1646 = vld [vmem:[%s3 + $0x278] sm:$0xff]
  %v1648 = vsel %vm888, %v1638, 0
  %1650 = vmatprep.subr.mxu0 0.0
  %1651 = vmatpush1.msra.mxu0 0.0
  %1652 = vmatprep.subr.mxu0 0.0
  %1653 = vmatpush1.msra.mxu0 0.0
  %1654 = vmatprep.subr.mxu0 0.0
  %1655 = vmatpush1.msra.mxu0 0.0
  %1656 = vmatprep.subr.mxu0 0.0
  %1657 = vmatpush1.msra.mxu0 0.0
  %1658 = vmatprep.subr.mxu0 0.0
  %1659 = vmatpush1.msra.mxu0 0.0
  %1660 = vmatprep.subr.mxu0 0.0
  %1661 = vmatpush1.msra.mxu0 0.0
  %1662 = vmatprep.subr.mxu0 0.0
  %1663 = vmatpush1.msra.mxu0 0.0
  %1664 = vmatprep.subr.mxu0 0.0
  %1665 = vmatpush1.msra.mxu0 0.0
  %1666 = vmatprep.subr.mxu0 0.0
  %1667 = vmatpush1.msra.mxu0 %v1646
  %1668 = vmatprep.subr.mxu0 0.0
  %1669 = vmatpush1.msra.mxu0 %v1645
  %1670 = vmatprep.subr.mxu0 0.0
  %1671 = vmatpush1.msra.mxu0 %v1644
  %1672 = vmatprep.subr.mxu0 0.0
  %1673 = vmatpush1.msra.mxu0 %v1643
  %1674 = vmatprep.subr.mxu0 0.0
  %1675 = vmatpush1.msra.mxu0 %v1642
  %1676 = vmatprep.subr.mxu0 0.0
  %1677 = vmatpush1.msra.mxu0 %v1641
  %1678 = vmatprep.subr.mxu0 0.0
  %1679 = vmatpush1.msra.mxu0 %v1640
  %1680 = vmatprep.subr.mxu0 0.0
  %1681 = vmatpush1.msra.mxu0 %v1639
  %1682 = vmatprep.subr.mxu0 0.0
  %1683 = vmatpush2.msra.mxu0 0.0
  %1684 = vmatprep.subr.mxu0 0.0
  %1685 = vmatpush2.msra.mxu0 0.0
  %1686 = vmatprep.subr.mxu0 0.0
  %1687 = vmatpush2.msra.mxu0 0.0
  %1688 = vmatprep.subr.mxu0 0.0
  %1689 = vmatpush2.msra.mxu0 0.0
  %1690 = vmatprep.subr.mxu0 0.0
  %1691 = vmatpush2.msra.mxu0 0.0
  %1692 = vmatprep.subr.mxu0 0.0
  %1693 = vmatpush2.msra.mxu0 0.0
  %1694 = vmatprep.subr.mxu0 0.0
  %1695 = vmatpush2.msra.mxu0 0.0
  %1696 = vmatprep.subr.mxu0 0.0
  %1697 = vmatpush2.msra.mxu0 0.0
  %1698 = vmatprep.subr.mxu0 0.0
  %1699 = vmatpush2.msra.mxu0 0.0
  %1700 = vmatprep.subr.mxu0 0.0
  %1701 = vmatpush2.msra.mxu0 0.0
  %1702 = vmatprep.subr.mxu0 0.0
  %1703 = vmatpush2.msra.mxu0 0.0
  %1704 = vmatprep.subr.mxu0 0.0
  %1705 = vmatpush2.msra.mxu0 0.0
  %1706 = vmatprep.subr.mxu0 0.0
  %1707 = vmatpush2.msra.mxu0 0.0
  %1708 = vmatprep.subr.mxu0 0.0
  %1709 = vmatpush2.msra.mxu0 0.0
  %1710 = vmatprep.subr.mxu0 0.0
  %1711 = vmatpush2.msra.mxu0 0.0
  %1712 = vmatprep.subr.mxu0 0.0
  %1713 = vmatpush2.msra.mxu0 0.0
  %1714 = vmatprep.mubr.f32.mxu0 0.0
  %1715 = vmatmul.mubr.f32.gmra.mxu0 %v1648
  %v1716 = vpop.f32.mrf.mxu0
  %v1717 = vadd.f32 0.0, %v1716
  %v1718 = vpop.f32.mrf.mxu0
  %1719 = vdwg.mxu0
  %v1720 = vadd.f32 %v1637, %v1717
  %v1721 = vld [vmem:[#allocation2 + $0x14] sm:$0x3]
  %v1722 = vld [vmem:[%s3 + $0x280] sm:$0xff]
  %v1723 = vld [vmem:[%s3 + $0x288] sm:$0xff]
  %v1724 = vld [vmem:[%s3 + $0x290] sm:$0xff]
  %v1725 = vld [vmem:[%s3 + $0x298] sm:$0xff]
  %v1726 = vld [vmem:[%s3 + $0x2a0] sm:$0xff]
  %v1727 = vld [vmem:[%s3 + $0x2a8] sm:$0xff]
  %v1728 = vld [vmem:[%s3 + $0x2b0] sm:$0xff]
  %v1729 = vld [vmem:[%s3 + $0x2b8] sm:$0xff]
  %v1731 = vsel %vm888, %v1721, 0
  %1733 = vmatprep.subr.mxu0 0.0
  %1734 = vmatpush1.msra.mxu0 0.0
  %1735 = vmatprep.subr.mxu0 0.0
  %1736 = vmatpush1.msra.mxu0 0.0
  %1737 = vmatprep.subr.mxu0 0.0
  %1738 = vmatpush1.msra.mxu0 0.0
  %1739 = vmatprep.subr.mxu0 0.0
  %1740 = vmatpush1.msra.mxu0 0.0
  %1741 = vmatprep.subr.mxu0 0.0
  %1742 = vmatpush1.msra.mxu0 0.0
  %1743 = vmatprep.subr.mxu0 0.0
  %1744 = vmatpush1.msra.mxu0 0.0
  %1745 = vmatprep.subr.mxu0 0.0
  %1746 = vmatpush1.msra.mxu0 0.0
  %1747 = vmatprep.subr.mxu0 0.0
  %1748 = vmatpush1.msra.mxu0 0.0
  %1749 = vmatprep.subr.mxu0 0.0
  %1750 = vmatpush1.msra.mxu0 %v1729
  %1751 = vmatprep.subr.mxu0 0.0
  %1752 = vmatpush1.msra.mxu0 %v1728
  %1753 = vmatprep.subr.mxu0 0.0
  %1754 = vmatpush1.msra.mxu0 %v1727
  %1755 = vmatprep.subr.mxu0 0.0
  %1756 = vmatpush1.msra.mxu0 %v1726
  %1757 = vmatprep.subr.mxu0 0.0
  %1758 = vmatpush1.msra.mxu0 %v1725
  %1759 = vmatprep.subr.mxu0 0.0
  %1760 = vmatpush1.msra.mxu0 %v1724
  %1761 = vmatprep.subr.mxu0 0.0
  %1762 = vmatpush1.msra.mxu0 %v1723
  %1763 = vmatprep.subr.mxu0 0.0
  %1764 = vmatpush1.msra.mxu0 %v1722
  %1765 = vmatprep.subr.mxu0 0.0
  %1766 = vmatpush2.msra.mxu0 0.0
  %1767 = vmatprep.subr.mxu0 0.0
  %1768 = vmatpush2.msra.mxu0 0.0
  %1769 = vmatprep.subr.mxu0 0.0
  %1770 = vmatpush2.msra.mxu0 0.0
  %1771 = vmatprep.subr.mxu0 0.0
  %1772 = vmatpush2.msra.mxu0 0.0
  %1773 = vmatprep.subr.mxu0 0.0
  %1774 = vmatpush2.msra.mxu0 0.0
  %1775 = vmatprep.subr.mxu0 0.0
  %1776 = vmatpush2.msra.mxu0 0.0
  %1777 = vmatprep.subr.mxu0 0.0
  %1778 = vmatpush2.msra.mxu0 0.0
  %1779 = vmatprep.subr.mxu0 0.0
  %1780 = vmatpush2.msra.mxu0 0.0
  %1781 = vmatprep.subr.mxu0 0.0
  %1782 = vmatpush2.msra.mxu0 0.0
  %1783 = vmatprep.subr.mxu0 0.0
  %1784 = vmatpush2.msra.mxu0 0.0
  %1785 = vmatprep.subr.mxu0 0.0
  %1786 = vmatpush2.msra.mxu0 0.0
  %1787 = vmatprep.subr.mxu0 0.0
  %1788 = vmatpush2.msra.mxu0 0.0
  %1789 = vmatprep.subr.mxu0 0.0
  %1790 = vmatpush2.msra.mxu0 0.0
  %1791 = vmatprep.subr.mxu0 0.0
  %1792 = vmatpush2.msra.mxu0 0.0
  %1793 = vmatprep.subr.mxu0 0.0
  %1794 = vmatpush2.msra.mxu0 0.0
  %1795 = vmatprep.subr.mxu0 0.0
  %1796 = vmatpush2.msra.mxu0 0.0
  %1797 = vmatprep.mubr.f32.mxu0 0.0
  %1798 = vmatmul.mubr.f32.gmra.mxu0 %v1731
  %v1799 = vpop.f32.mrf.mxu0
  %v1800 = vadd.f32 0.0, %v1799
  %v1801 = vpop.f32.mrf.mxu0
  %1802 = vdwg.mxu0
  %v1803 = vadd.f32 %v1720, %v1800
  %v1804 = vld [vmem:[#allocation2 + $0x16] sm:$0x3]
  %v1805 = vld [vmem:[%s3 + $0x2c0] sm:$0xff]
  %v1806 = vld [vmem:[%s3 + $0x2c8] sm:$0xff]
  %v1807 = vld [vmem:[%s3 + $0x2d0] sm:$0xff]
  %v1808 = vld [vmem:[%s3 + $0x2d8] sm:$0xff]
  %v1809 = vld [vmem:[%s3 + $0x2e0] sm:$0xff]
  %v1810 = vld [vmem:[%s3 + $0x2e8] sm:$0xff]
  %v1811 = vld [vmem:[%s3 + $0x2f0] sm:$0xff]
  %v1812 = vld [vmem:[%s3 + $0x2f8] sm:$0xff]
  %v1814 = vsel %vm888, %v1804, 0
  %1816 = vmatprep.subr.mxu0 0.0
  %1817 = vmatpush1.msra.mxu0 0.0
  %1818 = vmatprep.subr.mxu0 0.0
  %1819 = vmatpush1.msra.mxu0 0.0
  %1820 = vmatprep.subr.mxu0 0.0
  %1821 = vmatpush1.msra.mxu0 0.0
  %1822 = vmatprep.subr.mxu0 0.0
  %1823 = vmatpush1.msra.mxu0 0.0
  %1824 = vmatprep.subr.mxu0 0.0
  %1825 = vmatpush1.msra.mxu0 0.0
  %1826 = vmatprep.subr.mxu0 0.0
  %1827 = vmatpush1.msra.mxu0 0.0
  %1828 = vmatprep.subr.mxu0 0.0
  %1829 = vmatpush1.msra.mxu0 0.0
  %1830 = vmatprep.subr.mxu0 0.0
  %1831 = vmatpush1.msra.mxu0 0.0
  %1832 = vmatprep.subr.mxu0 0.0
  %1833 = vmatpush1.msra.mxu0 %v1812
  %1834 = vmatprep.subr.mxu0 0.0
  %1835 = vmatpush1.msra.mxu0 %v1811
  %1836 = vmatprep.subr.mxu0 0.0
  %1837 = vmatpush1.msra.mxu0 %v1810
  %1838 = vmatprep.subr.mxu0 0.0
  %1839 = vmatpush1.msra.mxu0 %v1809
  %1840 = vmatprep.subr.mxu0 0.0
  %1841 = vmatpush1.msra.mxu0 %v1808
  %1842 = vmatprep.subr.mxu0 0.0
  %1843 = vmatpush1.msra.mxu0 %v1807
  %1844 = vmatprep.subr.mxu0 0.0
  %1845 = vmatpush1.msra.mxu0 %v1806
  %1846 = vmatprep.subr.mxu0 0.0
  %1847 = vmatpush1.msra.mxu0 %v1805
  %1848 = vmatprep.subr.mxu0 0.0
  %1849 = vmatpush2.msra.mxu0 0.0
  %1850 = vmatprep.subr.mxu0 0.0
  %1851 = vmatpush2.msra.mxu0 0.0
  %1852 = vmatprep.subr.mxu0 0.0
  %1853 = vmatpush2.msra.mxu0 0.0
  %1854 = vmatprep.subr.mxu0 0.0
  %1855 = vmatpush2.msra.mxu0 0.0
  %1856 = vmatprep.subr.mxu0 0.0
  %1857 = vmatpush2.msra.mxu0 0.0
  %1858 = vmatprep.subr.mxu0 0.0
  %1859 = vmatpush2.msra.mxu0 0.0
  %1860 = vmatprep.subr.mxu0 0.0
  %1861 = vmatpush2.msra.mxu0 0.0
  %1862 = vmatprep.subr.mxu0 0.0
  %1863 = vmatpush2.msra.mxu0 0.0
  %1864 = vmatprep.subr.mxu0 0.0
  %1865 = vmatpush2.msra.mxu0 0.0
  %1866 = vmatprep.subr.mxu0 0.0
  %1867 = vmatpush2.msra.mxu0 0.0
  %1868 = vmatprep.subr.mxu0 0.0
  %1869 = vmatpush2.msra.mxu0 0.0
  %1870 = vmatprep.subr.mxu0 0.0
  %1871 = vmatpush2.msra.mxu0 0.0
  %1872 = vmatprep.subr.mxu0 0.0
  %1873 = vmatpush2.msra.mxu0 0.0
  %1874 = vmatprep.subr.mxu0 0.0
  %1875 = vmatpush2.msra.mxu0 0.0
  %1876 = vmatprep.subr.mxu0 0.0
  %1877 = vmatpush2.msra.mxu0 0.0
  %1878 = vmatprep.subr.mxu0 0.0
  %1879 = vmatpush2.msra.mxu0 0.0
  %1880 = vmatprep.mubr.f32.mxu0 0.0
  %1881 = vmatmul.mubr.f32.gmra.mxu0 %v1814
  %v1882 = vpop.f32.mrf.mxu0
  %v1883 = vadd.f32 0.0, %v1882
  %v1884 = vpop.f32.mrf.mxu0
  %1885 = vdwg.mxu0
  %v1886 = vadd.f32 %v1803, %v1883
  %v1887 = vld [vmem:[#allocation2 + $0x18] sm:$0x3]
  %v1888 = vld [vmem:[%s3 + $0x300] sm:$0xff]
  %v1889 = vld [vmem:[%s3 + $0x308] sm:$0xff]
  %v1890 = vld [vmem:[%s3 + $0x310] sm:$0xff]
  %v1891 = vld [vmem:[%s3 + $0x318] sm:$0xff]
  %v1892 = vld [vmem:[%s3 + $0x320] sm:$0xff]
  %v1893 = vld [vmem:[%s3 + $0x328] sm:$0xff]
  %v1894 = vld [vmem:[%s3 + $0x330] sm:$0xff]
  %v1895 = vld [vmem:[%s3 + $0x338] sm:$0xff]
  %v1897 = vsel %vm888, %v1887, 0
  %1899 = vmatprep.subr.mxu0 0.0
  %1900 = vmatpush1.msra.mxu0 0.0
  %1901 = vmatprep.subr.mxu0 0.0
  %1902 = vmatpush1.msra.mxu0 0.0
  %1903 = vmatprep.subr.mxu0 0.0
  %1904 = vmatpush1.msra.mxu0 0.0
  %1905 = vmatprep.subr.mxu0 0.0
  %1906 = vmatpush1.msra.mxu0 0.0
  %1907 = vmatprep.subr.mxu0 0.0
  %1908 = vmatpush1.msra.mxu0 0.0
  %1909 = vmatprep.subr.mxu0 0.0
  %1910 = vmatpush1.msra.mxu0 0.0
  %1911 = vmatprep.subr.mxu0 0.0
  %1912 = vmatpush1.msra.mxu0 0.0
  %1913 = vmatprep.subr.mxu0 0.0
  %1914 = vmatpush1.msra.mxu0 0.0
  %1915 = vmatprep.subr.mxu0 0.0
  %1916 = vmatpush1.msra.mxu0 %v1895
  %1917 = vmatprep.subr.mxu0 0.0
  %1918 = vmatpush1.msra.mxu0 %v1894
  %1919 = vmatprep.subr.mxu0 0.0
  %1920 = vmatpush1.msra.mxu0 %v1893
  %1921 = vmatprep.subr.mxu0 0.0
  %1922 = vmatpush1.msra.mxu0 %v1892
  %1923 = vmatprep.subr.mxu0 0.0
  %1924 = vmatpush1.msra.mxu0 %v1891
  %1925 = vmatprep.subr.mxu0 0.0
  %1926 = vmatpush1.msra.mxu0 %v1890
  %1927 = vmatprep.subr.mxu0 0.0
  %1928 = vmatpush1.msra.mxu0 %v1889
  %1929 = vmatprep.subr.mxu0 0.0
  %1930 = vmatpush1.msra.mxu0 %v1888
  %1931 = vmatprep.subr.mxu0 0.0
  %1932 = vmatpush2.msra.mxu0 0.0
  %1933 = vmatprep.subr.mxu0 0.0
  %1934 = vmatpush2.msra.mxu0 0.0
  %1935 = vmatprep.subr.mxu0 0.0
  %1936 = vmatpush2.msra.mxu0 0.0
  %1937 = vmatprep.subr.mxu0 0.0
  %1938 = vmatpush2.msra.mxu0 0.0
  %1939 = vmatprep.subr.mxu0 0.0
  %1940 = vmatpush2.msra.mxu0 0.0
  %1941 = vmatprep.subr.mxu0 0.0
  %1942 = vmatpush2.msra.mxu0 0.0
  %1943 = vmatprep.subr.mxu0 0.0
  %1944 = vmatpush2.msra.mxu0 0.0
  %1945 = vmatprep.subr.mxu0 0.0
  %1946 = vmatpush2.msra.mxu0 0.0
  %1947 = vmatprep.subr.mxu0 0.0
  %1948 = vmatpush2.msra.mxu0 0.0
  %1949 = vmatprep.subr.mxu0 0.0
  %1950 = vmatpush2.msra.mxu0 0.0
  %1951 = vmatprep.subr.mxu0 0.0
  %1952 = vmatpush2.msra.mxu0 0.0
  %1953 = vmatprep.subr.mxu0 0.0
  %1954 = vmatpush2.msra.mxu0 0.0
  %1955 = vmatprep.subr.mxu0 0.0
  %1956 = vmatpush2.msra.mxu0 0.0
  %1957 = vmatprep.subr.mxu0 0.0
  %1958 = vmatpush2.msra.mxu0 0.0
  %1959 = vmatprep.subr.mxu0 0.0
  %1960 = vmatpush2.msra.mxu0 0.0
  %1961 = vmatprep.subr.mxu0 0.0
  %1962 = vmatpush2.msra.mxu0 0.0
  %1963 = vmatprep.mubr.f32.mxu0 0.0
  %1964 = vmatmul.mubr.f32.gmra.mxu0 %v1897
  %v1965 = vpop.f32.mrf.mxu0
  %v1966 = vadd.f32 0.0, %v1965
  %v1967 = vpop.f32.mrf.mxu0
  %1968 = vdwg.mxu0
  %v1969 = vadd.f32 %v1886, %v1966
  %v1970 = vld [vmem:[#allocation2 + $0x1a] sm:$0x3]
  %v1971 = vld [vmem:[%s3 + $0x340] sm:$0xff]
  %v1972 = vld [vmem:[%s3 + $0x348] sm:$0xff]
  %v1973 = vld [vmem:[%s3 + $0x350] sm:$0xff]
  %v1974 = vld [vmem:[%s3 + $0x358] sm:$0xff]
  %v1975 = vld [vmem:[%s3 + $0x360] sm:$0xff]
  %v1976 = vld [vmem:[%s3 + $0x368] sm:$0xff]
  %v1977 = vld [vmem:[%s3 + $0x370] sm:$0xff]
  %v1978 = vld [vmem:[%s3 + $0x378] sm:$0xff]
  %v1980 = vsel %vm888, %v1970, 0
  %1982 = vmatprep.subr.mxu0 0.0
  %1983 = vmatpush1.msra.mxu0 0.0
  %1984 = vmatprep.subr.mxu0 0.0
  %1985 = vmatpush1.msra.mxu0 0.0
  %1986 = vmatprep.subr.mxu0 0.0
  %1987 = vmatpush1.msra.mxu0 0.0
  %1988 = vmatprep.subr.mxu0 0.0
  %1989 = vmatpush1.msra.mxu0 0.0
  %1990 = vmatprep.subr.mxu0 0.0
  %1991 = vmatpush1.msra.mxu0 0.0
  %1992 = vmatprep.subr.mxu0 0.0
  %1993 = vmatpush1.msra.mxu0 0.0
  %1994 = vmatprep.subr.mxu0 0.0
  %1995 = vmatpush1.msra.mxu0 0.0
  %1996 = vmatprep.subr.mxu0 0.0
  %1997 = vmatpush1.msra.mxu0 0.0
  %1998 = vmatprep.subr.mxu0 0.0
  %1999 = vmatpush1.msra.mxu0 %v1978
  %2000 = vmatprep.subr.mxu0 0.0
  %2001 = vmatpush1.msra.mxu0 %v1977
  %2002 = vmatprep.subr.mxu0 0.0
  %2003 = vmatpush1.msra.mxu0 %v1976
  %2004 = vmatprep.subr.mxu0 0.0
  %2005 = vmatpush1.msra.mxu0 %v1975
  %2006 = vmatprep.subr.mxu0 0.0
  %2007 = vmatpush1.msra.mxu0 %v1974
  %2008 = vmatprep.subr.mxu0 0.0
  %2009 = vmatpush1.msra.mxu0 %v1973
  %2010 = vmatprep.subr.mxu0 0.0
  %2011 = vmatpush1.msra.mxu0 %v1972
  %2012 = vmatprep.subr.mxu0 0.0
  %2013 = vmatpush1.msra.mxu0 %v1971
  %2014 = vmatprep.subr.mxu0 0.0
  %2015 = vmatpush2.msra.mxu0 0.0
  %2016 = vmatprep.subr.mxu0 0.0
  %2017 = vmatpush2.msra.mxu0 0.0
  %2018 = vmatprep.subr.mxu0 0.0
  %2019 = vmatpush2.msra.mxu0 0.0
  %2020 = vmatprep.subr.mxu0 0.0
  %2021 = vmatpush2.msra.mxu0 0.0
  %2022 = vmatprep.subr.mxu0 0.0
  %2023 = vmatpush2.msra.mxu0 0.0
  %2024 = vmatprep.subr.mxu0 0.0
  %2025 = vmatpush2.msra.mxu0 0.0
  %2026 = vmatprep.subr.mxu0 0.0
  %2027 = vmatpush2.msra.mxu0 0.0
  %2028 = vmatprep.subr.mxu0 0.0
  %2029 = vmatpush2.msra.mxu0 0.0
  %2030 = vmatprep.subr.mxu0 0.0
  %2031 = vmatpush2.msra.mxu0 0.0
  %2032 = vmatprep.subr.mxu0 0.0
  %2033 = vmatpush2.msra.mxu0 0.0
  %2034 = vmatprep.subr.mxu0 0.0
  %2035 = vmatpush2.msra.mxu0 0.0
  %2036 = vmatprep.subr.mxu0 0.0
  %2037 = vmatpush2.msra.mxu0 0.0
  %2038 = vmatprep.subr.mxu0 0.0
  %2039 = vmatpush2.msra.mxu0 0.0
  %2040 = vmatprep.subr.mxu0 0.0
  %2041 = vmatpush2.msra.mxu0 0.0
  %2042 = vmatprep.subr.mxu0 0.0
  %2043 = vmatpush2.msra.mxu0 0.0
  %2044 = vmatprep.subr.mxu0 0.0
  %2045 = vmatpush2.msra.mxu0 0.0
  %2046 = vmatprep.mubr.f32.mxu0 0.0
  %2047 = vmatmul.mubr.f32.gmra.mxu0 %v1980
  %v2048 = vpop.f32.mrf.mxu0
  %v2049 = vadd.f32 0.0, %v2048
  %v2050 = vpop.f32.mrf.mxu0
  %2051 = vdwg.mxu0
  %v2052 = vadd.f32 %v1969, %v2049
  %v2053 = vld [vmem:[#allocation2 + $0x1c] sm:$0x3]
  %v2054 = vld [vmem:[%s3 + $0x380] sm:$0xff]
  %v2055 = vld [vmem:[%s3 + $0x388] sm:$0xff]
  %v2056 = vld [vmem:[%s3 + $0x390] sm:$0xff]
  %v2057 = vld [vmem:[%s3 + $0x398] sm:$0xff]
  %v2058 = vld [vmem:[%s3 + $0x3a0] sm:$0xff]
  %v2059 = vld [vmem:[%s3 + $0x3a8] sm:$0xff]
  %v2060 = vld [vmem:[%s3 + $0x3b0] sm:$0xff]
  %v2061 = vld [vmem:[%s3 + $0x3b8] sm:$0xff]
  %v2063 = vsel %vm888, %v2053, 0
  %2065 = vmatprep.subr.mxu0 0.0
  %2066 = vmatpush1.msra.mxu0 0.0
  %2067 = vmatprep.subr.mxu0 0.0
  %2068 = vmatpush1.msra.mxu0 0.0
  %2069 = vmatprep.subr.mxu0 0.0
  %2070 = vmatpush1.msra.mxu0 0.0
  %2071 = vmatprep.subr.mxu0 0.0
  %2072 = vmatpush1.msra.mxu0 0.0
  %2073 = vmatprep.subr.mxu0 0.0
  %2074 = vmatpush1.msra.mxu0 0.0
  %2075 = vmatprep.subr.mxu0 0.0
  %2076 = vmatpush1.msra.mxu0 0.0
  %2077 = vmatprep.subr.mxu0 0.0
  %2078 = vmatpush1.msra.mxu0 0.0
  %2079 = vmatprep.subr.mxu0 0.0
  %2080 = vmatpush1.msra.mxu0 0.0
  %2081 = vmatprep.subr.mxu0 0.0
  %2082 = vmatpush1.msra.mxu0 %v2061
  %2083 = vmatprep.subr.mxu0 0.0
  %2084 = vmatpush1.msra.mxu0 %v2060
  %2085 = vmatprep.subr.mxu0 0.0
  %2086 = vmatpush1.msra.mxu0 %v2059
  %2087 = vmatprep.subr.mxu0 0.0
  %2088 = vmatpush1.msra.mxu0 %v2058
  %2089 = vmatprep.subr.mxu0 0.0
  %2090 = vmatpush1.msra.mxu0 %v2057
  %2091 = vmatprep.subr.mxu0 0.0
  %2092 = vmatpush1.msra.mxu0 %v2056
  %2093 = vmatprep.subr.mxu0 0.0
  %2094 = vmatpush1.msra.mxu0 %v2055
  %2095 = vmatprep.subr.mxu0 0.0
  %2096 = vmatpush1.msra.mxu0 %v2054
  %2097 = vmatprep.subr.mxu0 0.0
  %2098 = vmatpush2.msra.mxu0 0.0
  %2099 = vmatprep.subr.mxu0 0.0
  %2100 = vmatpush2.msra.mxu0 0.0
  %2101 = vmatprep.subr.mxu0 0.0
  %2102 = vmatpush2.msra.mxu0 0.0
  %2103 = vmatprep.subr.mxu0 0.0
  %2104 = vmatpush2.msra.mxu0 0.0
  %2105 = vmatprep.subr.mxu0 0.0
  %2106 = vmatpush2.msra.mxu0 0.0
  %2107 = vmatprep.subr.mxu0 0.0
  %2108 = vmatpush2.msra.mxu0 0.0
  %2109 = vmatprep.subr.mxu0 0.0
  %2110 = vmatpush2.msra.mxu0 0.0
  %2111 = vmatprep.subr.mxu0 0.0
  %2112 = vmatpush2.msra.mxu0 0.0
  %2113 = vmatprep.subr.mxu0 0.0
  %2114 = vmatpush2.msra.mxu0 0.0
  %2115 = vmatprep.subr.mxu0 0.0
  %2116 = vmatpush2.msra.mxu0 0.0
  %2117 = vmatprep.subr.mxu0 0.0
  %2118 = vmatpush2.msra.mxu0 0.0
  %2119 = vmatprep.subr.mxu0 0.0
  %2120 = vmatpush2.msra.mxu0 0.0
  %2121 = vmatprep.subr.mxu0 0.0
  %2122 = vmatpush2.msra.mxu0 0.0
  %2123 = vmatprep.subr.mxu0 0.0
  %2124 = vmatpush2.msra.mxu0 0.0
  %2125 = vmatprep.subr.mxu0 0.0
  %2126 = vmatpush2.msra.mxu0 0.0
  %2127 = vmatprep.subr.mxu0 0.0
  %2128 = vmatpush2.msra.mxu0 0.0
  %2129 = vmatprep.mubr.f32.mxu0 0.0
  %2130 = vmatmul.mubr.f32.gmra.mxu0 %v2063
  %v2131 = vpop.f32.mrf.mxu0
  %v2132 = vadd.f32 0.0, %v2131
  %v2133 = vpop.f32.mrf.mxu0
  %2134 = vdwg.mxu0
  %v2135 = vadd.f32 %v2052, %v2132
  %v2136 = vld [vmem:[#allocation2 + $0x1e] sm:$0x3]
  %v2137 = vld [vmem:[%s3 + $0x3c0] sm:$0xff]
  %v2138 = vld [vmem:[%s3 + $0x3c8] sm:$0xff]
  %v2139 = vld [vmem:[%s3 + $0x3d0] sm:$0xff]
  %v2140 = vld [vmem:[%s3 + $0x3d8] sm:$0xff]
  %v2141 = vld [vmem:[%s3 + $0x3e0] sm:$0xff]
  %v2142 = vld [vmem:[%s3 + $0x3e8] sm:$0xff]
  %v2143 = vld [vmem:[%s3 + $0x3f0] sm:$0xff]
  %v2144 = vld [vmem:[%s3 + $0x3f8] sm:$0xff]
  %v2146 = vsel %vm888, %v2136, 0
  %2148 = vmatprep.subr.mxu0 0.0
  %2149 = vmatpush1.msra.mxu0 0.0
  %2150 = vmatprep.subr.mxu0 0.0
  %2151 = vmatpush1.msra.mxu0 0.0
  %2152 = vmatprep.subr.mxu0 0.0
  %2153 = vmatpush1.msra.mxu0 0.0
  %2154 = vmatprep.subr.mxu0 0.0
  %2155 = vmatpush1.msra.mxu0 0.0
  %2156 = vmatprep.subr.mxu0 0.0
  %2157 = vmatpush1.msra.mxu0 0.0
  %2158 = vmatprep.subr.mxu0 0.0
  %2159 = vmatpush1.msra.mxu0 0.0
  %2160 = vmatprep.subr.mxu0 0.0
  %2161 = vmatpush1.msra.mxu0 0.0
  %2162 = vmatprep.subr.mxu0 0.0
  %2163 = vmatpush1.msra.mxu0 0.0
  %2164 = vmatprep.subr.mxu0 0.0
  %2165 = vmatpush1.msra.mxu0 %v2144
  %2166 = vmatprep.subr.mxu0 0.0
  %2167 = vmatpush1.msra.mxu0 %v2143
  %2168 = vmatprep.subr.mxu0 0.0
  %2169 = vmatpush1.msra.mxu0 %v2142
  %2170 = vmatprep.subr.mxu0 0.0
  %2171 = vmatpush1.msra.mxu0 %v2141
  %2172 = vmatprep.subr.mxu0 0.0
  %2173 = vmatpush1.msra.mxu0 %v2140
  %2174 = vmatprep.subr.mxu0 0.0
  %2175 = vmatpush1.msra.mxu0 %v2139
  %2176 = vmatprep.subr.mxu0 0.0
  %2177 = vmatpush1.msra.mxu0 %v2138
  %2178 = vmatprep.subr.mxu0 0.0
  %2179 = vmatpush1.msra.mxu0 %v2137
  %2180 = vmatprep.subr.mxu0 0.0
  %2181 = vmatpush2.msra.mxu0 0.0
  %2182 = vmatprep.subr.mxu0 0.0
  %2183 = vmatpush2.msra.mxu0 0.0
  %2184 = vmatprep.subr.mxu0 0.0
  %2185 = vmatpush2.msra.mxu0 0.0
  %2186 = vmatprep.subr.mxu0 0.0
  %2187 = vmatpush2.msra.mxu0 0.0
  %2188 = vmatprep.subr.mxu0 0.0
  %2189 = vmatpush2.msra.mxu0 0.0
  %2190 = vmatprep.subr.mxu0 0.0
  %2191 = vmatpush2.msra.mxu0 0.0
  %2192 = vmatprep.subr.mxu0 0.0
  %2193 = vmatpush2.msra.mxu0 0.0
  %2194 = vmatprep.subr.mxu0 0.0
  %2195 = vmatpush2.msra.mxu0 0.0
  %2196 = vmatprep.subr.mxu0 0.0
  %2197 = vmatpush2.msra.mxu0 0.0
  %2198 = vmatprep.subr.mxu0 0.0
  %2199 = vmatpush2.msra.mxu0 0.0
  %2200 = vmatprep.subr.mxu0 0.0
  %2201 = vmatpush2.msra.mxu0 0.0
  %2202 = vmatprep.subr.mxu0 0.0
  %2203 = vmatpush2.msra.mxu0 0.0
  %2204 = vmatprep.subr.mxu0 0.0
  %2205 = vmatpush2.msra.mxu0 0.0
  %2206 = vmatprep.subr.mxu0 0.0
  %2207 = vmatpush2.msra.mxu0 0.0
  %2208 = vmatprep.subr.mxu0 0.0
  %2209 = vmatpush2.msra.mxu0 0.0
  %2210 = vmatprep.subr.mxu0 0.0
  %2211 = vmatpush2.msra.mxu0 0.0
  %2212 = vmatprep.mubr.f32.mxu0 0.0
  %2213 = vmatmul.mubr.f32.gmra.mxu0 %v2146
  %v2214 = vpop.f32.mrf.mxu0
  %v2215 = vadd.f32 0.0, %v2214
  %v2216 = vpop.f32.mrf.mxu0
  %2217 = vdwg.mxu0
  %v2218 = vadd.f32 %v2135, %v2215
  %v2219 = vld [vmem:[%s4] sm:$0x1]
  %v2221 = vlaneseq
  %v2222 = vshrl.u32 %v2221, 7
  %v2223 = vsub.s32 0, %v2222
  %v2224 = vrot.slane %v2219, %v2223
  %v2226 = vadd.f32 %v2218, %v2224
  %vm2227 = vcmask 123904
  %2228 = vst.msk [vmem:[%s5] sm:$0x3] %vm2227, %v2226
  // Predicated region
  $region22: #{convnet_forward.3} parent=0 // pred_check
    _
  $region23: #{convnet_forward.3} parent=0 // pred_check_branch
    %2230 = sbr.rel (0) target = $region25
  $region24: #{convnet_forward.3} parent=0 // pred_region
    _
  $region25: #{convnet_forward.3} parent=0 // pred_fallthru
    _
  // Predicated region
  $region26: #{convnet_forward.3} parent=0 // pred_check
    _
  $region27: #{convnet_forward.3} parent=0 // pred_check_branch
    %2232 = sbr.rel (0) target = $region29
  $region28: #{convnet_forward.3} parent=0 // pred_region
    _
  $region29: #{convnet_forward.3} parent=0 // pred_fallthru
    _

</llo_original>
